<compile_context>
chip_gen: v7x
topology: tpu7x:2x2x1
jax: 0.10.0
libtpu: 0.0.40
codegen_flags: <defaults>
</compile_context>

<pallas_src>
import functools

import jax
import jax.numpy as jnp
from jax import lax
from jax.experimental import pallas as pl
from jax.experimental.pallas import tpu as pltpu

EPS = 1e-5
_NEG_INF = -1e30   # additive mask for cross-batch attention blocks


def _tla_kernel(x_ref, gamma_ref, beta_ref, p_ref, mask_ref,
                wqkv_ref, bqkv_ref, wout_ref, bout_ref,
                o_ref, qkv_scr, out_scr, *, scale):
    bb, t, lp = x_ref.shape          # lp = PACK * L (lane-packed hidden dim)
    f32 = jnp.float32

    x3 = x_ref[...].astype(f32)                               # (BB, T, LP)

    # ---- GroupNorm (two-pass variance), f32 ----
    # T-sums are sublane (XLU) reductions; group averaging uses the (LP, LP)
    # matrix P (1/(T*cpg) folded in; block-diagonal, so packed batches and
    # groups never mix).
    rs = jnp.sum(x3, axis=1)                                   # (BB, LP) sum_t x
    mu_g = jnp.dot(rs, p_ref[...], preferred_element_type=f32) # (BB, LP) E[x]
    d = x3 - mu_g[:, None, :]                                  # centered, reused by xn
    rsq = jnp.sum(d * d, axis=1)                               # (BB, LP) sum_t (x-mu)^2
    var_g = jnp.dot(rsq, p_ref[...], preferred_element_type=f32)  # biased variance
    inv_g = lax.rsqrt(var_g + EPS)
    gamma = gamma_ref[...].reshape(1, 1, lp)
    beta = beta_ref[...].reshape(1, 1, lp)
    xn = d * inv_g[:, None, :] * gamma + beta                  # (BB, T, LP) f32

    # ---- fused QKV projection: one (BB*T, LP) @ (LP, 3*LP) bf16 MXU matmul ----
    xnb = xn.reshape(bb * t, lp).astype(jnp.bfloat16)
    qkv = jnp.dot(xnb, wqkv_ref[...], preferred_element_type=f32) + bqkv_ref[...]
    qkv_scr[...] = qkv.reshape(bb, t, 3 * lp).astype(jnp.bfloat16)

    # ---- channel attention, one packed batch (PACK real batches) per step ----
    # Staging q/k/v and the attention output through VMEM scratch bounds the
    # vreg live range of dots/e/attn to one packed batch.
    def attn_body(bi, carry):
        qkvb = qkv_scr[bi]                                     # (T, 3*LP) bf16
        qb = qkvb[:, :lp]
        kb = qkvb[:, lp:2 * lp]
        vb = qkvb[:, 2 * lp:]
        # dots[i, j] = sum_t q[t, i] * k[t, j]
        dots = lax.dot_general(qb, kb, (((0,), (0,)), ((), ())),
                               preferred_element_type=f32)     # (LP, LP)
        dots = dots * scale + mask_ref[...]                    # cross-batch -> -1e30
        m = jnp.max(dots, axis=-1, keepdims=True)
        e = jnp.exp(dots - m)
        denom = jnp.sum(e, axis=-1, keepdims=True)
        attn = (e * pl.reciprocal(denom, approx=True)).astype(jnp.bfloat16)
        # out[t, i] = sum_j v[t, j] * attn[i, j]
        outb = lax.dot_general(vb, attn, (((1,), (1,)), ((), ())),
                               preferred_element_type=f32)     # (T, LP)
        out_scr[bi] = outb
        return carry

    lax.fori_loop(0, bb, attn_body, 0, unroll=True)

    # ---- output projection + residual (f32 accumulate / add) ----
    out2 = out_scr[...].reshape(bb * t, lp).astype(jnp.bfloat16)
    y = (jnp.dot(out2, wout_ref[...], preferred_element_type=f32)
         + bout_ref[...]
         + x_ref[...].astype(f32).reshape(bb * t, lp))
    o_ref[...] = y.reshape(bb, t, lp).astype(o_ref.dtype)      # 128-lane dense store


def _pick_batch_block(bp, t):
    """Packed batches per grid step.

    Single-TC chips (v5e/v6e): take everything in one step (grid=(1,)) -- the
    kernel is latency-bound and all weights are resident.  Two-TC chips (v7x):
    keep the grid even so megacore sharding gives each TensorCore a step.
    """
    try:
        kind = jax.devices()[0].device_kind.lower()
    except Exception:
        kind = ""
    two_tc = "v7" in kind
    max_rows = 1024                      # cap per-step (rows, 128) activation tile
    bb = 1
    for d in range(1, bp + 1):
        if bp % d == 0 and d * t <= max_rows:
            bb = d
    if two_tc and bb == bp and bp % 2 == 0 and bp >= 2:
        bb = bp // 2                     # grid=(2,) so both TensorCores get work
    return bb


def temporal_linear_attention(x, gamma, beta, wqkv, bqkv, wout, bout,
                              num_groups, batch_block=None, lane_pack=None):
    """x: (B, T, L). Weights in PyTorch layout: wqkv (3L, L), wout (L, L)."""
    b, t, l = x.shape
    g = num_groups
    assert l % g == 0
    cpg = l // g
    f32, bf16 = jnp.float32, jnp.bfloat16

    # Lane packing: put `pack` real batches side by side on the 128-lane axis.
    if lane_pack is None:
        pack = max(1, min(b, 128 // l)) if l <= 128 else 1
        while pack > 1 and b % pack:
            pack -= 1
    else:
        pack = lane_pack
    assert b % pack == 0
    lp = pack * l
    bp = b // pack

    bb = batch_block or _pick_batch_block(bp, t)
    assert bp % bb == 0

    # Packed input: (B, T, L) -> (B/pack, T, pack*L); lane = pack_slot*L + channel.
    xp = x.reshape(bp, pack, t, l).transpose(0, 2, 1, 3).reshape(bp, t, lp)

    # Group-averaging matrix (block diagonal; cpg | L so groups never cross
    # packed-batch boundaries).
    ch = jnp.arange(lp)
    p_mat = ((ch[:, None] // cpg) == (ch[None, :] // cpg)).astype(f32) / float(t * cpg)
    # Additive softmax mask: 0 within a real batch's L x L block, -1e30 across.
    attn_mask = jnp.where((ch[:, None] // l) == (ch[None, :] // l),
                          0.0, _NEG_INF).astype(f32)

    # Block-diagonal packed weights (kron with identity); QKV fused along N.
    eye = jnp.eye(pack, dtype=f32)
    wq_p = jnp.kron(eye, wqkv[:l].T)
    wk_p = jnp.kron(eye, wqkv[l:2 * l].T)
    wv_p = jnp.kron(eye, wqkv[2 * l:].T)
    wqkv_p = jnp.concatenate([wq_p, wk_p, wv_p], axis=1).astype(bf16)     # (LP, 3LP)
    bqkv_p = jnp.concatenate([jnp.tile(bqkv[:l], pack),
                              jnp.tile(bqkv[l:2 * l], pack),
                              jnp.tile(bqkv[2 * l:], pack)]
                             ).reshape(1, 3 * lp).astype(f32)
    wout_p = jnp.kron(eye, wout.T).astype(bf16)                           # (LP, LP)
    bout_p = jnp.tile(bout, pack).reshape(1, lp).astype(f32)
    gamma_p = jnp.tile(gamma, pack).reshape(1, lp).astype(f32)
    beta_p = jnp.tile(beta, pack).reshape(1, lp).astype(f32)

    const2 = lambda i: (0, 0)
    kernel = functools.partial(_tla_kernel, scale=float(l) ** -0.5)

    yp = pl.pallas_call(
        kernel,
        out_shape=jax.ShapeDtypeStruct((bp, t, lp), x.dtype),
        grid_spec=pltpu.PrefetchScalarGridSpec(
            num_scalar_prefetch=0,
            grid=(bp // bb,),
            in_specs=[
                pl.BlockSpec((bb, t, lp), lambda i: (i, 0, 0)),   # x (lane-packed)
                pl.BlockSpec((1, lp), const2),                    # gamma (packed)
                pl.BlockSpec((1, lp), const2),                    # beta (packed)
                pl.BlockSpec((lp, lp), const2),                   # P group-avg
                pl.BlockSpec((lp, lp), const2),                   # softmax mask
                pl.BlockSpec((lp, 3 * lp), const2),               # W_qkv^T (bf16)
                pl.BlockSpec((1, 3 * lp), const2),                # b_qkv
                pl.BlockSpec((lp, lp), const2),                   # W_out^T (bf16)
                pl.BlockSpec((1, lp), const2),                    # b_out
            ],
            out_specs=pl.BlockSpec((bb, t, lp), lambda i: (i, 0, 0)),
            scratch_shapes=[
                pltpu.VMEM((bb, t, 3 * lp), bf16),                # staged q|k|v
                pltpu.VMEM((bb, t, lp), f32),                     # attention output
            ],
        ),
        compiler_params=pltpu.CompilerParams(
            dimension_semantics=("parallel",)),
    )(xp, gamma_p, beta_p, p_mat, attn_mask, wqkv_p, bqkv_p, wout_p, bout_p)

    # Unpack lanes back to (B, T, L).
    return yp.reshape(bp, t, pack, l).transpose(0, 2, 1, 3).reshape(b, t, l)


def _reference(x, gamma, beta, wqkv, bqkv, wout, bout, num_groups):
    """Pure-JAX (f32) transcription of vanilla_forward for verification."""
    b, t, l = x.shape
    g = num_groups
    cpg = l // g
    xc = jnp.swapaxes(x, -1, -2)                     # (B, L, T)
    xg = xc.reshape(b, g, cpg, t)
    mu = xg.mean(axis=(2, 3), keepdims=True)
    var = xg.var(axis=(2, 3), keepdims=True)
    xn = (xg - mu) / jnp.sqrt(var + EPS)
    xn = xn.reshape(b, l, t) * gamma[None, :, None] + beta[None, :, None]
    xn = jnp.swapaxes(xn, -1, -2)                    # (B, T, L)
    qkv = xn @ wqkv.T + bqkv
    q, k, v = qkv[..., :l], qkv[..., l:2 * l], qkv[..., 2 * l:]
    qs = jnp.swapaxes(q, 1, -1)                      # (B, L, T)
    vs = jnp.swapaxes(v, 1, -1)                      # (B, L, T)
    dots = jnp.einsum('blt,btm->blm', qs, k) * (l ** -0.5)
    attn = jax.nn.softmax(dots, axis=-1)
    out = jnp.einsum('blm,bmt->blt', attn, vs)       # (B, L, T)
    out = jnp.swapaxes(out, 1, -1)                   # (B, T, L)
    return out @ wout.T + bout + x


if __name__ == "__main__":
    B, T, L = 32, 8, 32          # PACK=4 -> 128-lane packed hidden, BP=8 packed batches
    NUM_GROUPS = 8               # norm='gn'

    key = jax.random.PRNGKey(0)
    kx, kg, kb, kw1, kb1, kw2, kb2 = jax.random.split(key, 7)

    x = jax.random.normal(kx, (B, T, L), dtype=jnp.float32)
    gamma = 1.0 + 0.1 * jax.random.normal(kg, (L,), dtype=jnp.float32)
    beta = 0.1 * jax.random.normal(kb, (L,), dtype=jnp.float32)
    wqkv = jax.random.normal(kw1, (3 * L, L), dtype=jnp.float32) / jnp.sqrt(L)
    bqkv = 0.1 * jax.random.normal(kb1, (3 * L,), dtype=jnp.float32)
    wout = jax.random.normal(kw2, (L, L), dtype=jnp.float32) / jnp.sqrt(L)
    bout = 0.1 * jax.random.normal(kb2, (L,), dtype=jnp.float32)

    out = temporal_linear_attention(x, gamma, beta, wqkv, bqkv, wout, bout,
                                    NUM_GROUPS)
    out = jax.block_until_ready(out)

    ref = _reference(x, gamma, beta, wqkv, bqkv, wout, bout, NUM_GROUPS)
    ref = jax.block_until_ready(ref)

    assert out.shape == (B, T, L)
    diff = out.astype(jnp.float32) - ref
    max_abs = float(jnp.max(jnp.abs(diff)))
    rel = float(jnp.linalg.norm(diff) / jnp.linalg.norm(ref))
    # Tolerances reflect bf16 MXU operands (f32 accumulation) vs. an f32 reference.
    assert max_abs < 1e-1 and rel < 1e-2, (max_abs, rel)
    print("KERNEL_OK")
</pallas_src>

<mosaic_0001>
module attributes {stable_mosaic.version = 11 : i64} {
  func.func @_tla_kernel(%arg0: i32, %arg1: memref<8x8x128xf32, #tpu.memory_space<vmem>>, %arg2: memref<1x128xf32, #tpu.memory_space<vmem>>, %arg3: memref<1x128xf32, #tpu.memory_space<vmem>>, %arg4: memref<128x128xf32, #tpu.memory_space<vmem>>, %arg5: memref<128x128xf32, #tpu.memory_space<vmem>>, %arg6: memref<128x384xbf16, #tpu.memory_space<vmem>>, %arg7: memref<1x384xf32, #tpu.memory_space<vmem>>, %arg8: memref<128x128xbf16, #tpu.memory_space<vmem>>, %arg9: memref<1x128xf32, #tpu.memory_space<vmem>>, %arg10: memref<8x8x128xf32, #tpu.memory_space<vmem>>, %arg11: memref<8x8x384xbf16, #tpu.memory_space<vmem>>, %arg12: memref<8x8x128xf32, #tpu.memory_space<vmem>>) attributes {dimension_semantics = [#tpu.dimension_semantics<parallel>], iteration_bounds = array<i64: 1>, scalar_prefetch = 0 : i64, scratch_operands = 2 : i64, tpu.core_type = #tpu.core_type<tc>, window_params = [{transform_indices = @transform_0, window_bounds = array<i64: 8, 8, 128>}, {pipeline_mode = #tpu.pipeline_mode<synchronous>, transform_indices = @transform_1, window_bounds = array<i64: 1, 128>}, {pipeline_mode = #tpu.pipeline_mode<synchronous>, transform_indices = @transform_2, window_bounds = array<i64: 1, 128>}, {pipeline_mode = #tpu.pipeline_mode<synchronous>, transform_indices = @transform_3, window_bounds = array<i64: 128, 128>}, {pipeline_mode = #tpu.pipeline_mode<synchronous>, transform_indices = @transform_4, window_bounds = array<i64: 128, 128>}, {pipeline_mode = #tpu.pipeline_mode<synchronous>, transform_indices = @transform_5, window_bounds = array<i64: 128, 384>}, {pipeline_mode = #tpu.pipeline_mode<synchronous>, transform_indices = @transform_6, window_bounds = array<i64: 1, 384>}, {pipeline_mode = #tpu.pipeline_mode<synchronous>, transform_indices = @transform_7, window_bounds = array<i64: 128, 128>}, {pipeline_mode = #tpu.pipeline_mode<synchronous>, transform_indices = @transform_8, window_bounds = array<i64: 1, 128>}, {transform_indices = @transform_9, window_bounds = array<i64: 8, 8, 128>}]} {
    %c0 = arith.constant 0 : index
    %c0_0 = arith.constant 0 : index
    %c0_1 = arith.constant 0 : index
    %0 = vector.load %arg1[%c0, %c0_0, %c0_1] : memref<8x8x128xf32, #tpu.memory_space<vmem>>, vector<8x8x128xf32>
    %cst = arith.constant dense<0.000000e+00> : vector<8x128xf32>
    %1 = vector.multi_reduction <add>, %0, %cst [1] : vector<8x8x128xf32> to vector<8x128xf32>
    %c0_2 = arith.constant 0 : index
    %c0_3 = arith.constant 0 : index
    %2 = vector.load %arg4[%c0_2, %c0_3] : memref<128x128xf32, #tpu.memory_space<vmem>>, vector<128x128xf32>
    %cst_4 = arith.constant dense<0.000000e+00> : vector<8x128xf32>
    %3 = tpu.matmul %1, %2, %cst_4 {dimension_numbers = #tpu.dot_dimension_numbers<[1], [0], [0], [1], [0, 0, 1, 1], [], []>} : vector<8x128xf32>, vector<128x128xf32>, vector<8x128xf32> -> vector<8x128xf32>
    %4 = vector.shape_cast %3 : vector<8x128xf32> to vector<8x1x128xf32>
    %5 = vector.broadcast %4 : vector<8x1x128xf32> to vector<8x8x128xf32>
    %6 = arith.subf %0, %5 : vector<8x8x128xf32>
    %7 = arith.mulf %6, %6 : vector<8x8x128xf32>
    %cst_5 = arith.constant dense<0.000000e+00> : vector<8x128xf32>
    %8 = vector.multi_reduction <add>, %7, %cst_5 [1] : vector<8x8x128xf32> to vector<8x128xf32>
    %c0_6 = arith.constant 0 : index
    %c0_7 = arith.constant 0 : index
    %9 = vector.load %arg4[%c0_6, %c0_7] : memref<128x128xf32, #tpu.memory_space<vmem>>, vector<128x128xf32>
    %cst_8 = arith.constant dense<0.000000e+00> : vector<8x128xf32>
    %10 = tpu.matmul %8, %9, %cst_8 {dimension_numbers = #tpu.dot_dimension_numbers<[1], [0], [0], [1], [0, 0, 1, 1], [], []>} : vector<8x128xf32>, vector<128x128xf32>, vector<8x128xf32> -> vector<8x128xf32>
    %cst_9 = arith.constant 9.99999974E-6 : f32
    %11 = vector.broadcast %cst_9 : f32 to vector<8x128xf32>
    %12 = arith.addf %10, %11 : vector<8x128xf32>
    %13 = math.rsqrt %12 : vector<8x128xf32>
    %c0_10 = arith.constant 0 : index
    %c0_11 = arith.constant 0 : index
    %14 = vector.load %arg2[%c0_10, %c0_11] : memref<1x128xf32, #tpu.memory_space<vmem>>, vector<1x128xf32>
    %15 = vector.shape_cast %14 : vector<1x128xf32> to vector<1x1x128xf32>
    %c0_12 = arith.constant 0 : index
    %c0_13 = arith.constant 0 : index
    %16 = vector.load %arg3[%c0_12, %c0_13] : memref<1x128xf32, #tpu.memory_space<vmem>>, vector<1x128xf32>
    %17 = vector.shape_cast %16 : vector<1x128xf32> to vector<1x1x128xf32>
    %18 = vector.shape_cast %13 : vector<8x128xf32> to vector<8x1x128xf32>
    %19 = vector.broadcast %18 : vector<8x1x128xf32> to vector<8x8x128xf32>
    %20 = arith.mulf %6, %19 : vector<8x8x128xf32>
    %21 = vector.broadcast %15 : vector<1x1x128xf32> to vector<8x8x128xf32>
    %22 = arith.mulf %20, %21 : vector<8x8x128xf32>
    %23 = vector.broadcast %17 : vector<1x1x128xf32> to vector<8x8x128xf32>
    %24 = arith.addf %22, %23 : vector<8x8x128xf32>
    %25 = vector.shape_cast %24 : vector<8x8x128xf32> to vector<64x128xf32>
    %26 = arith.truncf %25 : vector<64x128xf32> to vector<64x128xbf16>
    %c0_14 = arith.constant 0 : index
    %c0_15 = arith.constant 0 : index
    %27 = vector.load %arg6[%c0_14, %c0_15] : memref<128x384xbf16, #tpu.memory_space<vmem>>, vector<128x384xbf16>
    %cst_16 = arith.constant dense<0.000000e+00> : vector<64x384xf32>
    %28 = tpu.matmul %26, %27, %cst_16 {dimension_numbers = #tpu.dot_dimension_numbers<[1], [0], [0], [1], [0, 0, 1, 1], [], []>} : vector<64x128xbf16>, vector<128x384xbf16>, vector<64x384xf32> -> vector<64x384xf32>
    %c0_17 = arith.constant 0 : index
    %c0_18 = arith.constant 0 : index
    %29 = vector.load %arg7[%c0_17, %c0_18] : memref<1x384xf32, #tpu.memory_space<vmem>>, vector<1x384xf32>
    %30 = vector.broadcast %29 : vector<1x384xf32> to vector<64x384xf32>
    %31 = arith.addf %28, %30 : vector<64x384xf32>
    %32 = vector.shape_cast %31 : vector<64x384xf32> to vector<8x8x384xf32>
    %33 = arith.truncf %32 : vector<8x8x384xf32> to vector<8x8x384xbf16>
    %c0_19 = arith.constant 0 : index
    %c0_20 = arith.constant 0 : index
    %c0_21 = arith.constant 0 : index
    %34 = vector.load %arg11[%c0_19, %c0_20, %c0_21] : memref<8x8x384xbf16, #tpu.memory_space<vmem>>, vector<8x8x384xbf16>
    tpu.vector_store %arg11[%c0_19, %c0_20, %c0_21], %33 {strides = array<i32>} : memref<8x8x384xbf16, #tpu.memory_space<vmem>>, vector<8x8x384xbf16>,
    %c0_i32 = arith.constant 0 : i32
    %35 = arith.index_cast %c0_i32 : i32 to index
    %c0_22 = arith.constant 0 : index
    %c0_23 = arith.constant 0 : index
    %36 = vector.load %arg11[%35, %c0_22, %c0_23] : memref<8x8x384xbf16, #tpu.memory_space<vmem>>, vector<1x8x384xbf16>
    %37 = vector.shape_cast %36 : vector<1x8x384xbf16> to vector<8x384xbf16>
    %38 = vector.extract_strided_slice %37 {offsets = [0, 0], sizes = [8, 128], strides = [1, 1]} : vector<8x384xbf16> to vector<8x128xbf16>
    %39 = vector.extract_strided_slice %37 {offsets = [0, 128], sizes = [8, 128], strides = [1, 1]} : vector<8x384xbf16> to vector<8x128xbf16>
    %40 = vector.extract_strided_slice %37 {offsets = [0, 256], sizes = [8, 128], strides = [1, 1]} : vector<8x384xbf16> to vector<8x128xbf16>
    %cst_24 = arith.constant dense<0.000000e+00> : vector<128x128xf32>
    %41 = tpu.matmul %38, %39, %cst_24 {dimension_numbers = #tpu.dot_dimension_numbers<[0], [0], [1], [1], [0, 1, 1, 1], [], []>} : vector<8x128xbf16>, vector<8x128xbf16>, vector<128x128xf32> -> vector<128x128xf32>
    %cst_25 = arith.constant 0.176776692 : f32
    %42 = vector.broadcast %cst_25 : f32 to vector<128x128xf32>
    %43 = arith.mulf %41, %42 : vector<128x128xf32>
    %c0_26 = arith.constant 0 : index
    %c0_27 = arith.constant 0 : index
    %44 = vector.load %arg5[%c0_26, %c0_27] : memref<128x128xf32, #tpu.memory_space<vmem>>, vector<128x128xf32>
    %45 = arith.addf %43, %44 : vector<128x128xf32>
    %cst_28 = arith.constant dense<0xFF800000> : vector<128xf32>
    %46 = vector.multi_reduction <maximumf>, %45, %cst_28 [1] : vector<128x128xf32> to vector<128xf32>
    %47 = vector.shape_cast %46 : vector<128xf32> to vector<128x1xf32>
    %48 = vector.broadcast %47 : vector<128x1xf32> to vector<128x128xf32>
    %49 = arith.subf %45, %48 : vector<128x128xf32>
    %50 = math.exp %49 : vector<128x128xf32>
    %cst_29 = arith.constant dense<0.000000e+00> : vector<128xf32>
    %51 = vector.multi_reduction <add>, %50, %cst_29 [1] : vector<128x128xf32> to vector<128xf32>
    %52 = vector.shape_cast %51 : vector<128xf32> to vector<128x1xf32>
    %53 = tpu.reciprocal %52 {approx = true} : vector<128x1xf32> -> vector<128x1xf32>
    %54 = vector.broadcast %53 : vector<128x1xf32> to vector<128x128xf32>
    %55 = arith.mulf %50, %54 : vector<128x128xf32>
    %56 = arith.truncf %55 : vector<128x128xf32> to vector<128x128xbf16>
    %cst_30 = arith.constant dense<0.000000e+00> : vector<8x128xf32>
    %57 = tpu.matmul %40, %56, %cst_30 {dimension_numbers = #tpu.dot_dimension_numbers<[1], [1], [0], [0], [0, 0, 1, 0], [], []>} : vector<8x128xbf16>, vector<128x128xbf16>, vector<8x128xf32> -> vector<8x128xf32>
    %58 = arith.index_cast %c0_i32 : i32 to index
    %c0_31 = arith.constant 0 : index
    %c0_32 = arith.constant 0 : index
    %59 = vector.load %arg12[%58, %c0_31, %c0_32] : memref<8x8x128xf32, #tpu.memory_space<vmem>>, vector<1x8x128xf32>
    %60 = vector.shape_cast %59 : vector<1x8x128xf32> to vector<8x128xf32>
    %61 = vector.shape_cast %57 : vector<8x128xf32> to vector<1x8x128xf32>
    tpu.vector_store %arg12[%58, %c0_31, %c0_32], %61 {strides = array<i32>} : memref<8x8x128xf32, #tpu.memory_space<vmem>>, vector<1x8x128xf32>,
    %c1_i32 = arith.constant 1 : i32
    %62 = arith.index_cast %c1_i32 : i32 to index
    %c0_33 = arith.constant 0 : index
    %c0_34 = arith.constant 0 : index
    %63 = vector.load %arg11[%62, %c0_33, %c0_34] : memref<8x8x384xbf16, #tpu.memory_space<vmem>>, vector<1x8x384xbf16>
    %64 = vector.shape_cast %63 : vector<1x8x384xbf16> to vector<8x384xbf16>
    %65 = vector.extract_strided_slice %64 {offsets = [0, 0], sizes = [8, 128], strides = [1, 1]} : vector<8x384xbf16> to vector<8x128xbf16>
    %66 = vector.extract_strided_slice %64 {offsets = [0, 128], sizes = [8, 128], strides = [1, 1]} : vector<8x384xbf16> to vector<8x128xbf16>
    %67 = vector.extract_strided_slice %64 {offsets = [0, 256], sizes = [8, 128], strides = [1, 1]} : vector<8x384xbf16> to vector<8x128xbf16>
    %cst_35 = arith.constant dense<0.000000e+00> : vector<128x128xf32>
    %68 = tpu.matmul %65, %66, %cst_35 {dimension_numbers = #tpu.dot_dimension_numbers<[0], [0], [1], [1], [0, 1, 1, 1], [], []>} : vector<8x128xbf16>, vector<8x128xbf16>, vector<128x128xf32> -> vector<128x128xf32>
    %cst_36 = arith.constant 0.176776692 : f32
    %69 = vector.broadcast %cst_36 : f32 to vector<128x128xf32>
    %70 = arith.mulf %68, %69 : vector<128x128xf32>
    %c0_37 = arith.constant 0 : index
    %c0_38 = arith.constant 0 : index
    %71 = vector.load %arg5[%c0_37, %c0_38] : memref<128x128xf32, #tpu.memory_space<vmem>>, vector<128x128xf32>
    %72 = arith.addf %70, %71 : vector<128x128xf32>
    %cst_39 = arith.constant dense<0xFF800000> : vector<128xf32>
    %73 = vector.multi_reduction <maximumf>, %72, %cst_39 [1] : vector<128x128xf32> to vector<128xf32>
    %74 = vector.shape_cast %73 : vector<128xf32> to vector<128x1xf32>
    %75 = vector.broadcast %74 : vector<128x1xf32> to vector<128x128xf32>
    %76 = arith.subf %72, %75 : vector<128x128xf32>
    %77 = math.exp %76 : vector<128x128xf32>
    %cst_40 = arith.constant dense<0.000000e+00> : vector<128xf32>
    %78 = vector.multi_reduction <add>, %77, %cst_40 [1] : vector<128x128xf32> to vector<128xf32>
    %79 = vector.shape_cast %78 : vector<128xf32> to vector<128x1xf32>
    %80 = tpu.reciprocal %79 {approx = true} : vector<128x1xf32> -> vector<128x1xf32>
    %81 = vector.broadcast %80 : vector<128x1xf32> to vector<128x128xf32>
    %82 = arith.mulf %77, %81 : vector<128x128xf32>
    %83 = arith.truncf %82 : vector<128x128xf32> to vector<128x128xbf16>
    %cst_41 = arith.constant dense<0.000000e+00> : vector<8x128xf32>
    %84 = tpu.matmul %67, %83, %cst_41 {dimension_numbers = #tpu.dot_dimension_numbers<[1], [1], [0], [0], [0, 0, 1, 0], [], []>} : vector<8x128xbf16>, vector<128x128xbf16>, vector<8x128xf32> -> vector<8x128xf32>
    %85 = arith.index_cast %c1_i32 : i32 to index
    %c0_42 = arith.constant 0 : index
    %c0_43 = arith.constant 0 : index
    %86 = vector.load %arg12[%85, %c0_42, %c0_43] : memref<8x8x128xf32, #tpu.memory_space<vmem>>, vector<1x8x128xf32>
    %87 = vector.shape_cast %86 : vector<1x8x128xf32> to vector<8x128xf32>
    %88 = vector.shape_cast %84 : vector<8x128xf32> to vector<1x8x128xf32>
    tpu.vector_store %arg12[%85, %c0_42, %c0_43], %88 {strides = array<i32>} : memref<8x8x128xf32, #tpu.memory_space<vmem>>, vector<1x8x128xf32>,
    %c2_i32 = arith.constant 2 : i32
    %89 = arith.index_cast %c2_i32 : i32 to index
    %c0_44 = arith.constant 0 : index
    %c0_45 = arith.constant 0 : index
    %90 = vector.load %arg11[%89, %c0_44, %c0_45] : memref<8x8x384xbf16, #tpu.memory_space<vmem>>, vector<1x8x384xbf16>
    %91 = vector.shape_cast %90 : vector<1x8x384xbf16> to vector<8x384xbf16>
    %92 = vector.extract_strided_slice %91 {offsets = [0, 0], sizes = [8, 128], strides = [1, 1]} : vector<8x384xbf16> to vector<8x128xbf16>
    %93 = vector.extract_strided_slice %91 {offsets = [0, 128], sizes = [8, 128], strides = [1, 1]} : vector<8x384xbf16> to vector<8x128xbf16>
    %94 = vector.extract_strided_slice %91 {offsets = [0, 256], sizes = [8, 128], strides = [1, 1]} : vector<8x384xbf16> to vector<8x128xbf16>
    %cst_46 = arith.constant dense<0.000000e+00> : vector<128x128xf32>
    %95 = tpu.matmul %92, %93, %cst_46 {dimension_numbers = #tpu.dot_dimension_numbers<[0], [0], [1], [1], [0, 1, 1, 1], [], []>} : vector<8x128xbf16>, vector<8x128xbf16>, vector<128x128xf32> -> vector<128x128xf32>
    %cst_47 = arith.constant 0.176776692 : f32
    %96 = vector.broadcast %cst_47 : f32 to vector<128x128xf32>
    %97 = arith.mulf %95, %96 : vector<128x128xf32>
    %c0_48 = arith.constant 0 : index
    %c0_49 = arith.constant 0 : index
    %98 = vector.load %arg5[%c0_48, %c0_49] : memref<128x128xf32, #tpu.memory_space<vmem>>, vector<128x128xf32>
    %99 = arith.addf %97, %98 : vector<128x128xf32>
    %cst_50 = arith.constant dense<0xFF800000> : vector<128xf32>
    %100 = vector.multi_reduction <maximumf>, %99, %cst_50 [1] : vector<128x128xf32> to vector<128xf32>
    %101 = vector.shape_cast %100 : vector<128xf32> to vector<128x1xf32>
    %102 = vector.broadcast %101 : vector<128x1xf32> to vector<128x128xf32>
    %103 = arith.subf %99, %102 : vector<128x128xf32>
    %104 = math.exp %103 : vector<128x128xf32>
    %cst_51 = arith.constant dense<0.000000e+00> : vector<128xf32>
    %105 = vector.multi_reduction <add>, %104, %cst_51 [1] : vector<128x128xf32> to vector<128xf32>
    %106 = vector.shape_cast %105 : vector<128xf32> to vector<128x1xf32>
    %107 = tpu.reciprocal %106 {approx = true} : vector<128x1xf32> -> vector<128x1xf32>
    %108 = vector.broadcast %107 : vector<128x1xf32> to vector<128x128xf32>
    %109 = arith.mulf %104, %108 : vector<128x128xf32>
    %110 = arith.truncf %109 : vector<128x128xf32> to vector<128x128xbf16>
    %cst_52 = arith.constant dense<0.000000e+00> : vector<8x128xf32>
    %111 = tpu.matmul %94, %110, %cst_52 {dimension_numbers = #tpu.dot_dimension_numbers<[1], [1], [0], [0], [0, 0, 1, 0], [], []>} : vector<8x128xbf16>, vector<128x128xbf16>, vector<8x128xf32> -> vector<8x128xf32>
    %112 = arith.index_cast %c2_i32 : i32 to index
    %c0_53 = arith.constant 0 : index
    %c0_54 = arith.constant 0 : index
    %113 = vector.load %arg12[%112, %c0_53, %c0_54] : memref<8x8x128xf32, #tpu.memory_space<vmem>>, vector<1x8x128xf32>
    %114 = vector.shape_cast %113 : vector<1x8x128xf32> to vector<8x128xf32>
    %115 = vector.shape_cast %111 : vector<8x128xf32> to vector<1x8x128xf32>
    tpu.vector_store %arg12[%112, %c0_53, %c0_54], %115 {strides = array<i32>} : memref<8x8x128xf32, #tpu.memory_space<vmem>>, vector<1x8x128xf32>,
    %c3_i32 = arith.constant 3 : i32
    %116 = arith.index_cast %c3_i32 : i32 to index
    %c0_55 = arith.constant 0 : index
    %c0_56 = arith.constant 0 : index
    %117 = vector.load %arg11[%116, %c0_55, %c0_56] : memref<8x8x384xbf16, #tpu.memory_space<vmem>>, vector<1x8x384xbf16>
    %118 = vector.shape_cast %117 : vector<1x8x384xbf16> to vector<8x384xbf16>
    %119 = vector.extract_strided_slice %118 {offsets = [0, 0], sizes = [8, 128], strides = [1, 1]} : vector<8x384xbf16> to vector<8x128xbf16>
    %120 = vector.extract_strided_slice %118 {offsets = [0, 128], sizes = [8, 128], strides = [1, 1]} : vector<8x384xbf16> to vector<8x128xbf16>
    %121 = vector.extract_strided_slice %118 {offsets = [0, 256], sizes = [8, 128], strides = [1, 1]} : vector<8x384xbf16> to vector<8x128xbf16>
    %cst_57 = arith.constant dense<0.000000e+00> : vector<128x128xf32>
    %122 = tpu.matmul %119, %120, %cst_57 {dimension_numbers = #tpu.dot_dimension_numbers<[0], [0], [1], [1], [0, 1, 1, 1], [], []>} : vector<8x128xbf16>, vector<8x128xbf16>, vector<128x128xf32> -> vector<128x128xf32>
    %cst_58 = arith.constant 0.176776692 : f32
    %123 = vector.broadcast %cst_58 : f32 to vector<128x128xf32>
    %124 = arith.mulf %122, %123 : vector<128x128xf32>
    %c0_59 = arith.constant 0 : index
    %c0_60 = arith.constant 0 : index
    %125 = vector.load %arg5[%c0_59, %c0_60] : memref<128x128xf32, #tpu.memory_space<vmem>>, vector<128x128xf32>
    %126 = arith.addf %124, %125 : vector<128x128xf32>
    %cst_61 = arith.constant dense<0xFF800000> : vector<128xf32>
    %127 = vector.multi_reduction <maximumf>, %126, %cst_61 [1] : vector<128x128xf32> to vector<128xf32>
    %128 = vector.shape_cast %127 : vector<128xf32> to vector<128x1xf32>
    %129 = vector.broadcast %128 : vector<128x1xf32> to vector<128x128xf32>
    %130 = arith.subf %126, %129 : vector<128x128xf32>
    %131 = math.exp %130 : vector<128x128xf32>
    %cst_62 = arith.constant dense<0.000000e+00> : vector<128xf32>
    %132 = vector.multi_reduction <add>, %131, %cst_62 [1] : vector<128x128xf32> to vector<128xf32>
    %133 = vector.shape_cast %132 : vector<128xf32> to vector<128x1xf32>
    %134 = tpu.reciprocal %133 {approx = true} : vector<128x1xf32> -> vector<128x1xf32>
    %135 = vector.broadcast %134 : vector<128x1xf32> to vector<128x128xf32>
    %136 = arith.mulf %131, %135 : vector<128x128xf32>
    %137 = arith.truncf %136 : vector<128x128xf32> to vector<128x128xbf16>
    %cst_63 = arith.constant dense<0.000000e+00> : vector<8x128xf32>
    %138 = tpu.matmul %121, %137, %cst_63 {dimension_numbers = #tpu.dot_dimension_numbers<[1], [1], [0], [0], [0, 0, 1, 0], [], []>} : vector<8x128xbf16>, vector<128x128xbf16>, vector<8x128xf32> -> vector<8x128xf32>
    %139 = arith.index_cast %c3_i32 : i32 to index
    %c0_64 = arith.constant 0 : index
    %c0_65 = arith.constant 0 : index
    %140 = vector.load %arg12[%139, %c0_64, %c0_65] : memref<8x8x128xf32, #tpu.memory_space<vmem>>, vector<1x8x128xf32>
    %141 = vector.shape_cast %140 : vector<1x8x128xf32> to vector<8x128xf32>
    %142 = vector.shape_cast %138 : vector<8x128xf32> to vector<1x8x128xf32>
    tpu.vector_store %arg12[%139, %c0_64, %c0_65], %142 {strides = array<i32>} : memref<8x8x128xf32, #tpu.memory_space<vmem>>, vector<1x8x128xf32>,
    %c4_i32 = arith.constant 4 : i32
    %143 = arith.index_cast %c4_i32 : i32 to index
    %c0_66 = arith.constant 0 : index
    %c0_67 = arith.constant 0 : index
    %144 = vector.load %arg11[%143, %c0_66, %c0_67] : memref<8x8x384xbf16, #tpu.memory_space<vmem>>, vector<1x8x384xbf16>
    %145 = vector.shape_cast %144 : vector<1x8x384xbf16> to vector<8x384xbf16>
    %146 = vector.extract_strided_slice %145 {offsets = [0, 0], sizes = [8, 128], strides = [1, 1]} : vector<8x384xbf16> to vector<8x128xbf16>
    %147 = vector.extract_strided_slice %145 {offsets = [0, 128], sizes = [8, 128], strides = [1, 1]} : vector<8x384xbf16> to vector<8x128xbf16>
    %148 = vector.extract_strided_slice %145 {offsets = [0, 256], sizes = [8, 128], strides = [1, 1]} : vector<8x384xbf16> to vector<8x128xbf16>
    %cst_68 = arith.constant dense<0.000000e+00> : vector<128x128xf32>
    %149 = tpu.matmul %146, %147, %cst_68 {dimension_numbers = #tpu.dot_dimension_numbers<[0], [0], [1], [1], [0, 1, 1, 1], [], []>} : vector<8x128xbf16>, vector<8x128xbf16>, vector<128x128xf32> -> vector<128x128xf32>
    %cst_69 = arith.constant 0.176776692 : f32
    %150 = vector.broadcast %cst_69 : f32 to vector<128x128xf32>
    %151 = arith.mulf %149, %150 : vector<128x128xf32>
    %c0_70 = arith.constant 0 : index
    %c0_71 = arith.constant 0 : index
    %152 = vector.load %arg5[%c0_70, %c0_71] : memref<128x128xf32, #tpu.memory_space<vmem>>, vector<128x128xf32>
    %153 = arith.addf %151, %152 : vector<128x128xf32>
    %cst_72 = arith.constant dense<0xFF800000> : vector<128xf32>
    %154 = vector.multi_reduction <maximumf>, %153, %cst_72 [1] : vector<128x128xf32> to vector<128xf32>
    %155 = vector.shape_cast %154 : vector<128xf32> to vector<128x1xf32>
    %156 = vector.broadcast %155 : vector<128x1xf32> to vector<128x128xf32>
    %157 = arith.subf %153, %156 : vector<128x128xf32>
    %158 = math.exp %157 : vector<128x128xf32>
    %cst_73 = arith.constant dense<0.000000e+00> : vector<128xf32>
    %159 = vector.multi_reduction <add>, %158, %cst_73 [1] : vector<128x128xf32> to vector<128xf32>
    %160 = vector.shape_cast %159 : vector<128xf32> to vector<128x1xf32>
    %161 = tpu.reciprocal %160 {approx = true} : vector<128x1xf32> -> vector<128x1xf32>
    %162 = vector.broadcast %161 : vector<128x1xf32> to vector<128x128xf32>
    %163 = arith.mulf %158, %162 : vector<128x128xf32>
    %164 = arith.truncf %163 : vector<128x128xf32> to vector<128x128xbf16>
    %cst_74 = arith.constant dense<0.000000e+00> : vector<8x128xf32>
    %165 = tpu.matmul %148, %164, %cst_74 {dimension_numbers = #tpu.dot_dimension_numbers<[1], [1], [0], [0], [0, 0, 1, 0], [], []>} : vector<8x128xbf16>, vector<128x128xbf16>, vector<8x128xf32> -> vector<8x128xf32>
    %166 = arith.index_cast %c4_i32 : i32 to index
    %c0_75 = arith.constant 0 : index
    %c0_76 = arith.constant 0 : index
    %167 = vector.load %arg12[%166, %c0_75, %c0_76] : memref<8x8x128xf32, #tpu.memory_space<vmem>>, vector<1x8x128xf32>
    %168 = vector.shape_cast %167 : vector<1x8x128xf32> to vector<8x128xf32>
    %169 = vector.shape_cast %165 : vector<8x128xf32> to vector<1x8x128xf32>
    tpu.vector_store %arg12[%166, %c0_75, %c0_76], %169 {strides = array<i32>} : memref<8x8x128xf32, #tpu.memory_space<vmem>>, vector<1x8x128xf32>,
    %c5_i32 = arith.constant 5 : i32
    %170 = arith.index_cast %c5_i32 : i32 to index
    %c0_77 = arith.constant 0 : index
    %c0_78 = arith.constant 0 : index
    %171 = vector.load %arg11[%170, %c0_77, %c0_78] : memref<8x8x384xbf16, #tpu.memory_space<vmem>>, vector<1x8x384xbf16>
    %172 = vector.shape_cast %171 : vector<1x8x384xbf16> to vector<8x384xbf16>
    %173 = vector.extract_strided_slice %172 {offsets = [0, 0], sizes = [8, 128], strides = [1, 1]} : vector<8x384xbf16> to vector<8x128xbf16>
    %174 = vector.extract_strided_slice %172 {offsets = [0, 128], sizes = [8, 128], strides = [1, 1]} : vector<8x384xbf16> to vector<8x128xbf16>
    %175 = vector.extract_strided_slice %172 {offsets = [0, 256], sizes = [8, 128], strides = [1, 1]} : vector<8x384xbf16> to vector<8x128xbf16>
    %cst_79 = arith.constant dense<0.000000e+00> : vector<128x128xf32>
    %176 = tpu.matmul %173, %174, %cst_79 {dimension_numbers = #tpu.dot_dimension_numbers<[0], [0], [1], [1], [0, 1, 1, 1], [], []>} : vector<8x128xbf16>, vector<8x128xbf16>, vector<128x128xf32> -> vector<128x128xf32>
    %cst_80 = arith.constant 0.176776692 : f32
    %177 = vector.broadcast %cst_80 : f32 to vector<128x128xf32>
    %178 = arith.mulf %176, %177 : vector<128x128xf32>
    %c0_81 = arith.constant 0 : index
    %c0_82 = arith.constant 0 : index
    %179 = vector.load %arg5[%c0_81, %c0_82] : memref<128x128xf32, #tpu.memory_space<vmem>>, vector<128x128xf32>
    %180 = arith.addf %178, %179 : vector<128x128xf32>
    %cst_83 = arith.constant dense<0xFF800000> : vector<128xf32>
    %181 = vector.multi_reduction <maximumf>, %180, %cst_83 [1] : vector<128x128xf32> to vector<128xf32>
    %182 = vector.shape_cast %181 : vector<128xf32> to vector<128x1xf32>
    %183 = vector.broadcast %182 : vector<128x1xf32> to vector<128x128xf32>
    %184 = arith.subf %180, %183 : vector<128x128xf32>
    %185 = math.exp %184 : vector<128x128xf32>
    %cst_84 = arith.constant dense<0.000000e+00> : vector<128xf32>
    %186 = vector.multi_reduction <add>, %185, %cst_84 [1] : vector<128x128xf32> to vector<128xf32>
    %187 = vector.shape_cast %186 : vector<128xf32> to vector<128x1xf32>
    %188 = tpu.reciprocal %187 {approx = true} : vector<128x1xf32> -> vector<128x1xf32>
    %189 = vector.broadcast %188 : vector<128x1xf32> to vector<128x128xf32>
    %190 = arith.mulf %185, %189 : vector<128x128xf32>
    %191 = arith.truncf %190 : vector<128x128xf32> to vector<128x128xbf16>
    %cst_85 = arith.constant dense<0.000000e+00> : vector<8x128xf32>
    %192 = tpu.matmul %175, %191, %cst_85 {dimension_numbers = #tpu.dot_dimension_numbers<[1], [1], [0], [0], [0, 0, 1, 0], [], []>} : vector<8x128xbf16>, vector<128x128xbf16>, vector<8x128xf32> -> vector<8x128xf32>
    %193 = arith.index_cast %c5_i32 : i32 to index
    %c0_86 = arith.constant 0 : index
    %c0_87 = arith.constant 0 : index
    %194 = vector.load %arg12[%193, %c0_86, %c0_87] : memref<8x8x128xf32, #tpu.memory_space<vmem>>, vector<1x8x128xf32>
    %195 = vector.shape_cast %194 : vector<1x8x128xf32> to vector<8x128xf32>
    %196 = vector.shape_cast %192 : vector<8x128xf32> to vector<1x8x128xf32>
    tpu.vector_store %arg12[%193, %c0_86, %c0_87], %196 {strides = array<i32>} : memref<8x8x128xf32, #tpu.memory_space<vmem>>, vector<1x8x128xf32>,
    %c6_i32 = arith.constant 6 : i32
    %197 = arith.index_cast %c6_i32 : i32 to index
    %c0_88 = arith.constant 0 : index
    %c0_89 = arith.constant 0 : index
    %198 = vector.load %arg11[%197, %c0_88, %c0_89] : memref<8x8x384xbf16, #tpu.memory_space<vmem>>, vector<1x8x384xbf16>
    %199 = vector.shape_cast %198 : vector<1x8x384xbf16> to vector<8x384xbf16>
    %200 = vector.extract_strided_slice %199 {offsets = [0, 0], sizes = [8, 128], strides = [1, 1]} : vector<8x384xbf16> to vector<8x128xbf16>
    %201 = vector.extract_strided_slice %199 {offsets = [0, 128], sizes = [8, 128], strides = [1, 1]} : vector<8x384xbf16> to vector<8x128xbf16>
    %202 = vector.extract_strided_slice %199 {offsets = [0, 256], sizes = [8, 128], strides = [1, 1]} : vector<8x384xbf16> to vector<8x128xbf16>
    %cst_90 = arith.constant dense<0.000000e+00> : vector<128x128xf32>
    %203 = tpu.matmul %200, %201, %cst_90 {dimension_numbers = #tpu.dot_dimension_numbers<[0], [0], [1], [1], [0, 1, 1, 1], [], []>} : vector<8x128xbf16>, vector<8x128xbf16>, vector<128x128xf32> -> vector<128x128xf32>
    %cst_91 = arith.constant 0.176776692 : f32
    %204 = vector.broadcast %cst_91 : f32 to vector<128x128xf32>
    %205 = arith.mulf %203, %204 : vector<128x128xf32>
    %c0_92 = arith.constant 0 : index
    %c0_93 = arith.constant 0 : index
    %206 = vector.load %arg5[%c0_92, %c0_93] : memref<128x128xf32, #tpu.memory_space<vmem>>, vector<128x128xf32>
    %207 = arith.addf %205, %206 : vector<128x128xf32>
    %cst_94 = arith.constant dense<0xFF800000> : vector<128xf32>
    %208 = vector.multi_reduction <maximumf>, %207, %cst_94 [1] : vector<128x128xf32> to vector<128xf32>
    %209 = vector.shape_cast %208 : vector<128xf32> to vector<128x1xf32>
    %210 = vector.broadcast %209 : vector<128x1xf32> to vector<128x128xf32>
    %211 = arith.subf %207, %210 : vector<128x128xf32>
    %212 = math.exp %211 : vector<128x128xf32>
    %cst_95 = arith.constant dense<0.000000e+00> : vector<128xf32>
    %213 = vector.multi_reduction <add>, %212, %cst_95 [1] : vector<128x128xf32> to vector<128xf32>
    %214 = vector.shape_cast %213 : vector<128xf32> to vector<128x1xf32>
    %215 = tpu.reciprocal %214 {approx = true} : vector<128x1xf32> -> vector<128x1xf32>
    %216 = vector.broadcast %215 : vector<128x1xf32> to vector<128x128xf32>
    %217 = arith.mulf %212, %216 : vector<128x128xf32>
    %218 = arith.truncf %217 : vector<128x128xf32> to vector<128x128xbf16>
    %cst_96 = arith.constant dense<0.000000e+00> : vector<8x128xf32>
    %219 = tpu.matmul %202, %218, %cst_96 {dimension_numbers = #tpu.dot_dimension_numbers<[1], [1], [0], [0], [0, 0, 1, 0], [], []>} : vector<8x128xbf16>, vector<128x128xbf16>, vector<8x128xf32> -> vector<8x128xf32>
    %220 = arith.index_cast %c6_i32 : i32 to index
    %c0_97 = arith.constant 0 : index
    %c0_98 = arith.constant 0 : index
    %221 = vector.load %arg12[%220, %c0_97, %c0_98] : memref<8x8x128xf32, #tpu.memory_space<vmem>>, vector<1x8x128xf32>
    %222 = vector.shape_cast %221 : vector<1x8x128xf32> to vector<8x128xf32>
    %223 = vector.shape_cast %219 : vector<8x128xf32> to vector<1x8x128xf32>
    tpu.vector_store %arg12[%220, %c0_97, %c0_98], %223 {strides = array<i32>} : memref<8x8x128xf32, #tpu.memory_space<vmem>>, vector<1x8x128xf32>,
    %c7_i32 = arith.constant 7 : i32
    %224 = arith.index_cast %c7_i32 : i32 to index
    %c0_99 = arith.constant 0 : index
    %c0_100 = arith.constant 0 : index
    %225 = vector.load %arg11[%224, %c0_99, %c0_100] : memref<8x8x384xbf16, #tpu.memory_space<vmem>>, vector<1x8x384xbf16>
    %226 = vector.shape_cast %225 : vector<1x8x384xbf16> to vector<8x384xbf16>
    %227 = vector.extract_strided_slice %226 {offsets = [0, 0], sizes = [8, 128], strides = [1, 1]} : vector<8x384xbf16> to vector<8x128xbf16>
    %228 = vector.extract_strided_slice %226 {offsets = [0, 128], sizes = [8, 128], strides = [1, 1]} : vector<8x384xbf16> to vector<8x128xbf16>
    %229 = vector.extract_strided_slice %226 {offsets = [0, 256], sizes = [8, 128], strides = [1, 1]} : vector<8x384xbf16> to vector<8x128xbf16>
    %cst_101 = arith.constant dense<0.000000e+00> : vector<128x128xf32>
    %230 = tpu.matmul %227, %228, %cst_101 {dimension_numbers = #tpu.dot_dimension_numbers<[0], [0], [1], [1], [0, 1, 1, 1], [], []>} : vector<8x128xbf16>, vector<8x128xbf16>, vector<128x128xf32> -> vector<128x128xf32>
    %cst_102 = arith.constant 0.176776692 : f32
    %231 = vector.broadcast %cst_102 : f32 to vector<128x128xf32>
    %232 = arith.mulf %230, %231 : vector<128x128xf32>
    %c0_103 = arith.constant 0 : index
    %c0_104 = arith.constant 0 : index
    %233 = vector.load %arg5[%c0_103, %c0_104] : memref<128x128xf32, #tpu.memory_space<vmem>>, vector<128x128xf32>
    %234 = arith.addf %232, %233 : vector<128x128xf32>
    %cst_105 = arith.constant dense<0xFF800000> : vector<128xf32>
    %235 = vector.multi_reduction <maximumf>, %234, %cst_105 [1] : vector<128x128xf32> to vector<128xf32>
    %236 = vector.shape_cast %235 : vector<128xf32> to vector<128x1xf32>
    %237 = vector.broadcast %236 : vector<128x1xf32> to vector<128x128xf32>
    %238 = arith.subf %234, %237 : vector<128x128xf32>
    %239 = math.exp %238 : vector<128x128xf32>
    %cst_106 = arith.constant dense<0.000000e+00> : vector<128xf32>
    %240 = vector.multi_reduction <add>, %239, %cst_106 [1] : vector<128x128xf32> to vector<128xf32>
    %241 = vector.shape_cast %240 : vector<128xf32> to vector<128x1xf32>
    %242 = tpu.reciprocal %241 {approx = true} : vector<128x1xf32> -> vector<128x1xf32>
    %243 = vector.broadcast %242 : vector<128x1xf32> to vector<128x128xf32>
    %244 = arith.mulf %239, %243 : vector<128x128xf32>
    %245 = arith.truncf %244 : vector<128x128xf32> to vector<128x128xbf16>
    %cst_107 = arith.constant dense<0.000000e+00> : vector<8x128xf32>
    %246 = tpu.matmul %229, %245, %cst_107 {dimension_numbers = #tpu.dot_dimension_numbers<[1], [1], [0], [0], [0, 0, 1, 0], [], []>} : vector<8x128xbf16>, vector<128x128xbf16>, vector<8x128xf32> -> vector<8x128xf32>
    %247 = arith.index_cast %c7_i32 : i32 to index
    %c0_108 = arith.constant 0 : index
    %c0_109 = arith.constant 0 : index
    %248 = vector.load %arg12[%247, %c0_108, %c0_109] : memref<8x8x128xf32, #tpu.memory_space<vmem>>, vector<1x8x128xf32>
    %249 = vector.shape_cast %248 : vector<1x8x128xf32> to vector<8x128xf32>
    %250 = vector.shape_cast %246 : vector<8x128xf32> to vector<1x8x128xf32>
    tpu.vector_store %arg12[%247, %c0_108, %c0_109], %250 {strides = array<i32>} : memref<8x8x128xf32, #tpu.memory_space<vmem>>, vector<1x8x128xf32>,
    %c8_i32 = arith.constant 8 : i32
    %c0_110 = arith.constant 0 : index
    %c0_111 = arith.constant 0 : index
    %c0_112 = arith.constant 0 : index
    %251 = vector.load %arg12[%c0_110, %c0_111, %c0_112] : memref<8x8x128xf32, #tpu.memory_space<vmem>>, vector<8x8x128xf32>
    %252 = vector.shape_cast %251 : vector<8x8x128xf32> to vector<64x128xf32>
    %253 = arith.truncf %252 : vector<64x128xf32> to vector<64x128xbf16>
    %c0_113 = arith.constant 0 : index
    %c0_114 = arith.constant 0 : index
    %254 = vector.load %arg8[%c0_113, %c0_114] : memref<128x128xbf16, #tpu.memory_space<vmem>>, vector<128x128xbf16>
    %cst_115 = arith.constant dense<0.000000e+00> : vector<64x128xf32>
    %255 = tpu.matmul %253, %254, %cst_115 {dimension_numbers = #tpu.dot_dimension_numbers<[1], [0], [0], [1], [0, 0, 1, 1], [], []>} : vector<64x128xbf16>, vector<128x128xbf16>, vector<64x128xf32> -> vector<64x128xf32>
    %c0_116 = arith.constant 0 : index
    %c0_117 = arith.constant 0 : index
    %256 = vector.load %arg9[%c0_116, %c0_117] : memref<1x128xf32, #tpu.memory_space<vmem>>, vector<1x128xf32>
    %257 = vector.broadcast %256 : vector<1x128xf32> to vector<64x128xf32>
    %258 = arith.addf %255, %257 : vector<64x128xf32>
    %c0_118 = arith.constant 0 : index
    %c0_119 = arith.constant 0 : index
    %c0_120 = arith.constant 0 : index
    %259 = vector.load %arg1[%c0_118, %c0_119, %c0_120] : memref<8x8x128xf32, #tpu.memory_space<vmem>>, vector<8x8x128xf32>
    %260 = vector.shape_cast %259 : vector<8x8x128xf32> to vector<64x128xf32>
    %261 = arith.addf %258, %260 : vector<64x128xf32>
    %262 = vector.shape_cast %261 : vector<64x128xf32> to vector<8x8x128xf32>
    %c0_121 = arith.constant 0 : index
    %c0_122 = arith.constant 0 : index
    %c0_123 = arith.constant 0 : index
    %263 = vector.load %arg10[%c0_121, %c0_122, %c0_123] : memref<8x8x128xf32, #tpu.memory_space<vmem>>, vector<8x8x128xf32>
    tpu.vector_store %arg10[%c0_121, %c0_122, %c0_123], %262 {strides = array<i32>} : memref<8x8x128xf32, #tpu.memory_space<vmem>>, vector<8x8x128xf32>,
    return
  }
  func.func @transform_0(%arg0: i32) -> (i32, i32, i32) {
    %c0_i32 = arith.constant 0 : i32
    %c0_i32_0 = arith.constant 0 : i32
    %c0_i32_1 = arith.constant 0 : i32
    return %arg0, %c0_i32, %c0_i32_0 : i32, i32, i32
  }
  func.func @transform_1(%arg0: i32) -> (i32, i32) {
    %c0_i32 = arith.constant 0 : i32
    %c0_i32_0 = arith.constant 0 : i32
    %c0_i32_1 = arith.constant 0 : i32
    return %c0_i32, %c0_i32_0 : i32, i32
  }
  func.func @transform_2(%arg0: i32) -> (i32, i32) {
    %c0_i32 = arith.constant 0 : i32
    %c0_i32_0 = arith.constant 0 : i32
    %c0_i32_1 = arith.constant 0 : i32
    return %c0_i32, %c0_i32_0 : i32, i32
  }
  func.func @transform_3(%arg0: i32) -> (i32, i32) {
    %c0_i32 = arith.constant 0 : i32
    %c0_i32_0 = arith.constant 0 : i32
    %c0_i32_1 = arith.constant 0 : i32
    return %c0_i32, %c0_i32_0 : i32, i32
  }
  func.func @transform_4(%arg0: i32) -> (i32, i32) {
    %c0_i32 = arith.constant 0 : i32
    %c0_i32_0 = arith.constant 0 : i32
    %c0_i32_1 = arith.constant 0 : i32
    return %c0_i32, %c0_i32_0 : i32, i32
  }
  func.func @transform_5(%arg0: i32) -> (i32, i32) {
    %c0_i32 = arith.constant 0 : i32
    %c0_i32_0 = arith.constant 0 : i32
    %c0_i32_1 = arith.constant 0 : i32
    return %c0_i32, %c0_i32_0 : i32, i32
  }
  func.func @transform_6(%arg0: i32) -> (i32, i32) {
    %c0_i32 = arith.constant 0 : i32
    %c0_i32_0 = arith.constant 0 : i32
    %c0_i32_1 = arith.constant 0 : i32
    return %c0_i32, %c0_i32_0 : i32, i32
  }
  func.func @transform_7(%arg0: i32) -> (i32, i32) {
    %c0_i32 = arith.constant 0 : i32
    %c0_i32_0 = arith.constant 0 : i32
    %c0_i32_1 = arith.constant 0 : i32
    return %c0_i32, %c0_i32_0 : i32, i32
  }
  func.func @transform_8(%arg0: i32) -> (i32, i32) {
    %c0_i32 = arith.constant 0 : i32
    %c0_i32_0 = arith.constant 0 : i32
    %c0_i32_1 = arith.constant 0 : i32
    return %c0_i32, %c0_i32_0 : i32, i32
  }
  func.func @transform_9(%arg0: i32) -> (i32, i32, i32) {
    %c0_i32 = arith.constant 0 : i32
    %c0_i32_0 = arith.constant 0 : i32
    %c0_i32_1 = arith.constant 0 : i32
    return %arg0, %c0_i32, %c0_i32_0 : i32, i32, i32
  }
}

</mosaic_0001>

<llo_original>
// kernel: tpu_custom_call.1
$region0: #{tpu_custom_call.1}
  #allocation0 [shape = 'u32[]', space=smem, size = 0x4, offset = 0x4, fixed_abs, tag = 'smem constant byte address 0x4 - core index']
  #allocation1 [shape = 'u32[144,128]{1,0:T(1,128)}', space=vmem, size = 0x12000, scoped, tag = 'internal scratch']
  #allocation2 [shape = 'bf16[8,8,384]{2,1,0:T(8,128)(2,1)}', space=vmem, size = 0xc000, scoped, tag = 'scratch operand']
  #allocation3 [shape = 'f32[8,8,128]{2,1,0:T(8,128)}', space=vmem, size = 0x8000, scoped, tag = 'scratch operand']
  %s0 = inlined_call_operand.hbm [shape: f32[8,8,128], index: 0, kind: input, shape index: {}]
  %s1 = inlined_call_operand.vmem [shape: f32[1,128], index: 1, kind: input, shape index: {}]
  %s2 = inlined_call_operand.vmem [shape: f32[1,128], index: 2, kind: input, shape index: {}]
  %s3 = inlined_call_operand.hbm [shape: f32[128,128], index: 3, kind: input, shape index: {}]
  %s4 = inlined_call_operand.hbm [shape: f32[128,128], index: 4, kind: input, shape index: {}]
  %s5 = inlined_call_operand.hbm [shape: bf16[128,384], index: 5, kind: input, shape index: {}]
  %s6 = inlined_call_operand.vmem [shape: f32[1,384], index: 6, kind: input, shape index: {}]
  %s7 = inlined_call_operand.hbm [shape: bf16[128,128], index: 7, kind: input, shape index: {}]
  %s8 = inlined_call_operand.vmem [shape: f32[1,128], index: 8, kind: input, shape index: {}]
  %s9 = inlined_call_operand.hbm [shape: f32[8,8,128], index: 9, kind: output, shape index: {}]
  %s10 = sld [smem:[#allocation0]]
  $region66: #{tpu_custom_call.1} parent=0
    _
  %s12 = ssub.s32 1, %s10
  %s13 = scalar_select 0, %s12, %s10
  $region1: #{tpu_custom_call.1} parent=0
    #allocation4 [shape = 'u8[32768]{0}', space=vmem, size = 0x8000, scoped, tag = 'input window, operand 0, single buffered']
    #allocation5 [shape = 's32[1]{0}', space=sflag, size = 0x4, scoped, tag = 'scoped memory for tpu_custom_call.1']
    #allocation6 [shape = 's32[1]{0}', space=sflag, size = 0x4, scoped, tag = 'scoped memory for tpu_custom_call.1']
    #allocation7 [shape = 'u8[65536]{0}', space=vmem, size = 0x10000, scoped, tag = 'input window, operand 3, single buffered']
    #allocation8 [shape = 's32[1]{0}', space=sflag, size = 0x4, scoped, tag = 'scoped memory for tpu_custom_call.1']
    #allocation9 [shape = 'u8[65536]{0}', space=vmem, size = 0x10000, scoped, tag = 'input window, operand 4, single buffered']
    #allocation10 [shape = 'u8[98304]{0}', space=vmem, size = 0x18000, scoped, tag = 'input window, operand 5, single buffered']
    #allocation11 [shape = 's32[1]{0}', space=sflag, size = 0x4, scoped, tag = 'scoped memory for tpu_custom_call.1']
    #allocation12 [shape = 'u8[32768]{0}', space=vmem, size = 0x8000, scoped, tag = 'input window, operand 7, single buffered']
    #allocation13 [shape = 'u8[32768]{0}', space=vmem, size = 0x8000, scoped, tag = 'output window, operand 0, single buffered']
    %14 = vsyncpa [#allocation5], 0
    %15 = vsyncpa [#allocation8], 0
    %16 = vsyncpa [#allocation11], 0
    %17 = vsyncpa [#allocation6], 0
    // Predicated region
    $region2: #{tpu_custom_call.1} parent=1 // pred_check
      _
    $region3: #{tpu_custom_call.1} parent=1 // pred_check_branch
      %19 = sbr.rel (0) target = $region5
    $region4: #{tpu_custom_call.1} parent=1 // pred_region
      %s21 = ssub.s32 1024, 1024
      %22 = vsyncadd [#allocation5], %s21
      %s23 = sshll.u32 [#allocation4], 4
      %s24 = int_to_ptr.vmem [resolvable:$true] %s23
      %29 = dma.hbm_to_vmem [thread:$0]  %s0, 1024, %s24, [#allocation5], 128, 128, 8
    $region5: #{tpu_custom_call.1} parent=1 // pred_fallthru
      _
    // Predicated region
    $region6: #{tpu_custom_call.1} parent=1 // pred_check
      _
    $region7: #{tpu_custom_call.1} parent=1 // pred_check_branch
      %31 = sbr.rel (0) target = $region9
    $region8: #{tpu_custom_call.1} parent=1 // pred_region
      _
    $region9: #{tpu_custom_call.1} parent=1 // pred_fallthru
      _
    // Predicated region
    $region10: #{tpu_custom_call.1} parent=1 // pred_check
      _
    $region11: #{tpu_custom_call.1} parent=1 // pred_check_branch
      %33 = sbr.rel (0) target = $region13
    $region12: #{tpu_custom_call.1} parent=1 // pred_region
      _
    $region13: #{tpu_custom_call.1} parent=1 // pred_fallthru
      _
    // Predicated region
    $region14: #{tpu_custom_call.1} parent=1 // pred_check
      _
    $region15: #{tpu_custom_call.1} parent=1 // pred_check_branch
      %35 = sbr.rel (0) target = $region17
    $region16: #{tpu_custom_call.1} parent=1 // pred_region
      %s37 = ssub.s32 2048, 2048
      %38 = vsyncadd [#allocation8], %s37
      %s39 = sshll.u32 [#allocation7], 4
      %s40 = int_to_ptr.vmem [resolvable:$true] %s39
      %45 = dma.hbm_to_vmem [thread:$0]  %s3, 2048, %s40, [#allocation8], 128, 128, 8
    $region17: #{tpu_custom_call.1} parent=1 // pred_fallthru
      _
    // Predicated region
    $region18: #{tpu_custom_call.1} parent=1 // pred_check
      _
    $region19: #{tpu_custom_call.1} parent=1 // pred_check_branch
      %47 = sbr.rel (0) target = $region21
    $region20: #{tpu_custom_call.1} parent=1 // pred_region
      %s49 = ssub.s32 2048, 2048
      %50 = vsyncadd [#allocation8], %s49
      %s51 = sshll.u32 [#allocation9], 4
      %s52 = int_to_ptr.vmem [resolvable:$true] %s51
      %57 = dma.hbm_to_vmem [thread:$0]  %s4, 2048, %s52, [#allocation8], 128, 128, 8
    $region21: #{tpu_custom_call.1} parent=1 // pred_fallthru
      _
    // Predicated region
    $region22: #{tpu_custom_call.1} parent=1 // pred_check
      _
    $region23: #{tpu_custom_call.1} parent=1 // pred_check_branch
      %59 = sbr.rel (0) target = $region25
    $region24: #{tpu_custom_call.1} parent=1 // pred_region
      %s61 = ssub.s32 3072, 3072
      %62 = vsyncadd [#allocation11], %s61
      %s63 = sshll.u32 [#allocation10], 4
      %s64 = int_to_ptr.vmem [resolvable:$true] %s63
      %69 = dma.hbm_to_vmem [thread:$0]  %s5, 3072, %s64, [#allocation11], 192, 192, 12
    $region25: #{tpu_custom_call.1} parent=1 // pred_fallthru
      _
    // Predicated region
    $region26: #{tpu_custom_call.1} parent=1 // pred_check
      _
    $region27: #{tpu_custom_call.1} parent=1 // pred_check_branch
      %71 = sbr.rel (0) target = $region29
    $region28: #{tpu_custom_call.1} parent=1 // pred_region
      _
    $region29: #{tpu_custom_call.1} parent=1 // pred_fallthru
      _
    // Predicated region
    $region30: #{tpu_custom_call.1} parent=1 // pred_check
      _
    $region31: #{tpu_custom_call.1} parent=1 // pred_check_branch
      %73 = sbr.rel (0) target = $region33
    $region32: #{tpu_custom_call.1} parent=1 // pred_region
      %s75 = ssub.s32 1024, 1024
      %76 = vsyncadd [#allocation11], %s75
      %s77 = sshll.u32 [#allocation12], 4
      %s78 = int_to_ptr.vmem [resolvable:$true] %s77
      %83 = dma.hbm_to_vmem [thread:$0]  %s7, 1024, %s78, [#allocation11], 64, 64, 4
    $region33: #{tpu_custom_call.1} parent=1 // pred_fallthru
      _
    // Predicated region
    $region34: #{tpu_custom_call.1} parent=1 // pred_check
      _
    $region35: #{tpu_custom_call.1} parent=1 // pred_check_branch
      %85 = sbr.rel (0) target = $region37
    $region36: #{tpu_custom_call.1} parent=1 // pred_region
      _
    $region37: #{tpu_custom_call.1} parent=1 // pred_fallthru
      _
    // Predicated region
    $region38: #{tpu_custom_call.1} parent=1 // pred_check
      _
    $region39: #{tpu_custom_call.1} parent=1 // pred_check_branch
      %87 = sbr.rel (0) target = $region41
    $region40: #{tpu_custom_call.1} parent=1 // pred_region
      %88 = dma.done [#allocation5], 1024
    $region41: #{tpu_custom_call.1} parent=1 // pred_fallthru
      _
    // Predicated region
    $region42: #{tpu_custom_call.1} parent=1 // pred_check
      _
    $region43: #{tpu_custom_call.1} parent=1 // pred_check_branch
      %90 = sbr.rel (0) target = $region45
    $region44: #{tpu_custom_call.1} parent=1 // pred_region
      %91 = dma.done [#allocation8], 2048
    $region45: #{tpu_custom_call.1} parent=1 // pred_fallthru
      _
    // Predicated region
    $region46: #{tpu_custom_call.1} parent=1 // pred_check
      _
    $region47: #{tpu_custom_call.1} parent=1 // pred_check_branch
      %93 = sbr.rel (0) target = $region49
    $region48: #{tpu_custom_call.1} parent=1 // pred_region
      %94 = dma.done [#allocation8], 2048
    $region49: #{tpu_custom_call.1} parent=1 // pred_fallthru
      _
    // Predicated region
    $region50: #{tpu_custom_call.1} parent=1 // pred_check
      _
    $region51: #{tpu_custom_call.1} parent=1 // pred_check_branch
      %96 = sbr.rel (0) target = $region53
    $region52: #{tpu_custom_call.1} parent=1 // pred_region
      %97 = dma.done [#allocation11], 3072
    $region53: #{tpu_custom_call.1} parent=1 // pred_fallthru
      _
    // Predicated region
    $region54: #{tpu_custom_call.1} parent=1 // pred_check
      _
    $region55: #{tpu_custom_call.1} parent=1 // pred_check_branch
      %99 = sbr.rel (0) target = $region57
    $region56: #{tpu_custom_call.1} parent=1 // pred_region
      %100 = dma.done [#allocation11], 1024
    $region57: #{tpu_custom_call.1} parent=1 // pred_fallthru
      _
    %v102 = vld [vmem:[#allocation4] sm:$0xff]
    %v103 = vld [vmem:[#allocation4 + $0x8] sm:$0xff]
    %v104 = vld [vmem:[#allocation4 + $0x10] sm:$0xff]
    %v105 = vld [vmem:[#allocation4 + $0x18] sm:$0xff]
    %v106 = vld [vmem:[#allocation4 + $0x20] sm:$0xff]
    %v107 = vld [vmem:[#allocation4 + $0x28] sm:$0xff]
    %v108 = vld [vmem:[#allocation4 + $0x30] sm:$0xff]
    %v109 = vld [vmem:[#allocation4 + $0x38] sm:$0xff]
    %v110 = vrot.slane %v102, 4
    %v111 = vadd.f32 %v102, %v110
    %v112 = vrot.slane %v111, 2
    %v113 = vadd.f32 %v111, %v112
    %v114 = vrot.slane %v113, 1
    %v115 = vadd.f32 %v113, %v114
    %v116 = vrot.slane %v103, 4
    %v117 = vadd.f32 %v103, %v116
    %v118 = vrot.slane %v117, 2
    %v119 = vadd.f32 %v117, %v118
    %v120 = vrot.slane %v119, 1
    %v121 = vadd.f32 %v119, %v120
    %v122 = vrot.slane %v104, 4
    %v123 = vadd.f32 %v104, %v122
    %v124 = vrot.slane %v123, 2
    %v125 = vadd.f32 %v123, %v124
    %v126 = vrot.slane %v125, 1
    %v127 = vadd.f32 %v125, %v126
    %v128 = vrot.slane %v105, 4
    %v129 = vadd.f32 %v105, %v128
    %v130 = vrot.slane %v129, 2
    %v131 = vadd.f32 %v129, %v130
    %v132 = vrot.slane %v131, 1
    %v133 = vadd.f32 %v131, %v132
    %v134 = vrot.slane %v106, 4
    %v135 = vadd.f32 %v106, %v134
    %v136 = vrot.slane %v135, 2
    %v137 = vadd.f32 %v135, %v136
    %v138 = vrot.slane %v137, 1
    %v139 = vadd.f32 %v137, %v138
    %v140 = vrot.slane %v107, 4
    %v141 = vadd.f32 %v107, %v140
    %v142 = vrot.slane %v141, 2
    %v143 = vadd.f32 %v141, %v142
    %v144 = vrot.slane %v143, 1
    %v145 = vadd.f32 %v143, %v144
    %v146 = vrot.slane %v108, 4
    %v147 = vadd.f32 %v108, %v146
    %v148 = vrot.slane %v147, 2
    %v149 = vadd.f32 %v147, %v148
    %v150 = vrot.slane %v149, 1
    %v151 = vadd.f32 %v149, %v150
    %v152 = vrot.slane %v109, 4
    %v153 = vadd.f32 %v109, %v152
    %v154 = vrot.slane %v153, 2
    %v155 = vadd.f32 %v153, %v154
    %v156 = vrot.slane %v155, 1
    %v157 = vadd.f32 %v155, %v156
    %v158 = vld [vmem:[#allocation7] sm:$0xff]
    %v159 = vld [vmem:[#allocation7 + $0x8] sm:$0xff]
    %v160 = vld [vmem:[#allocation7 + $0x10] sm:$0xff]
    %v161 = vld [vmem:[#allocation7 + $0x18] sm:$0xff]
    %v162 = vld [vmem:[#allocation7 + $0x20] sm:$0xff]
    %v163 = vld [vmem:[#allocation7 + $0x28] sm:$0xff]
    %v164 = vld [vmem:[#allocation7 + $0x30] sm:$0xff]
    %v165 = vld [vmem:[#allocation7 + $0x38] sm:$0xff]
    %v166 = vld [vmem:[#allocation7 + $0x40] sm:$0xff]
    %v167 = vld [vmem:[#allocation7 + $0x48] sm:$0xff]
    %v168 = vld [vmem:[#allocation7 + $0x50] sm:$0xff]
    %v169 = vld [vmem:[#allocation7 + $0x58] sm:$0xff]
    %v170 = vld [vmem:[#allocation7 + $0x60] sm:$0xff]
    %v171 = vld [vmem:[#allocation7 + $0x68] sm:$0xff]
    %v172 = vld [vmem:[#allocation7 + $0x70] sm:$0xff]
    %v173 = vld [vmem:[#allocation7 + $0x78] sm:$0xff]
    %vm182 = vcmask 1041409
    %v183 = vsel %vm182, %v121, %v115
    %vm184 = vcmask 1042434
    %v185 = vsel %vm184, %v127, %v183
    %vm186 = vcmask 1043459
    %v187 = vsel %vm186, %v133, %v185
    %vm188 = vcmask 1044484
    %v189 = vsel %vm188, %v139, %v187
    %vm190 = vcmask 1045509
    %v191 = vsel %vm190, %v145, %v189
    %vm192 = vcmask 1046534
    %v193 = vsel %vm192, %v151, %v191
    %vm194 = vcmask 1047559
    %v195 = vsel %vm194, %v157, %v193
    %197 = vmatprep.subr.mxu0 0.0
    %198 = vmatpush1.msra.mxu0 %v158
    %199 = vmatprep.subr.mxu0 0.0
    %200 = vmatpush1.msra.mxu0 %v159
    %201 = vmatprep.subr.mxu0 0.0
    %202 = vmatpush1.msra.mxu0 %v160
    %203 = vmatprep.subr.mxu0 0.0
    %204 = vmatpush1.msra.mxu0 %v161
    %205 = vmatprep.subr.mxu0 0.0
    %206 = vmatpush1.msra.mxu0 %v162
    %207 = vmatprep.subr.mxu0 0.0
    %208 = vmatpush1.msra.mxu0 %v163
    %209 = vmatprep.subr.mxu0 0.0
    %210 = vmatpush1.msra.mxu0 %v164
    %211 = vmatprep.subr.mxu0 0.0
    %212 = vmatpush1.msra.mxu0 %v165
    %213 = vmatprep.subr.mxu0 0.0
    %214 = vmatpush1.msra.mxu0 %v166
    %215 = vmatprep.subr.mxu0 0.0
    %216 = vmatpush1.msra.mxu0 %v167
    %217 = vmatprep.subr.mxu0 0.0
    %218 = vmatpush1.msra.mxu0 %v168
    %219 = vmatprep.subr.mxu0 0.0
    %220 = vmatpush1.msra.mxu0 %v169
    %221 = vmatprep.subr.mxu0 0.0
    %222 = vmatpush1.msra.mxu0 %v170
    %223 = vmatprep.subr.mxu0 0.0
    %224 = vmatpush1.msra.mxu0 %v171
    %225 = vmatprep.subr.mxu0 0.0
    %226 = vmatpush1.msra.mxu0 %v172
    %227 = vmatprep.subr.mxu0 0.0
    %228 = vmatpush1.msra.mxu0 %v173
    %229 = vmatprep.subr.mxu0 0.0
    %230 = vmatpush1.msra.mxu0 0.0
    %231 = vmatprep.subr.mxu0 0.0
    %232 = vmatpush1.msra.mxu0 0.0
    %233 = vmatprep.subr.mxu0 0.0
    %234 = vmatpush1.msra.mxu0 0.0
    %235 = vmatprep.subr.mxu0 0.0
    %236 = vmatpush1.msra.mxu0 0.0
    %237 = vmatprep.subr.mxu0 0.0
    %238 = vmatpush1.msra.mxu0 0.0
    %239 = vmatprep.subr.mxu0 0.0
    %240 = vmatpush1.msra.mxu0 0.0
    %241 = vmatprep.subr.mxu0 0.0
    %242 = vmatpush1.msra.mxu0 0.0
    %243 = vmatprep.subr.mxu0 0.0
    %244 = vmatpush1.msra.mxu0 0.0
    %245 = vmatprep.subr.mxu0 0.0
    %246 = vmatpush1.msra.mxu0 0.0
    %247 = vmatprep.subr.mxu0 0.0
    %248 = vmatpush1.msra.mxu0 0.0
    %249 = vmatprep.subr.mxu0 0.0
    %250 = vmatpush1.msra.mxu0 0.0
    %251 = vmatprep.subr.mxu0 0.0
    %252 = vmatpush1.msra.mxu0 0.0
    %253 = vmatprep.subr.mxu0 0.0
    %254 = vmatpush1.msra.mxu0 0.0
    %255 = vmatprep.subr.mxu0 0.0
    %256 = vmatpush1.msra.mxu0 0.0
    %257 = vmatprep.subr.mxu0 0.0
    %258 = vmatpush1.msra.mxu0 0.0
    %259 = vmatprep.subr.mxu0 0.0
    %260 = vmatpush1.msra.mxu0 0.0
    %261 = vmatprep.mubr.f32.mxu0 0.0
    %262 = vmatmul.mubr.f32.gmra.mrb[0].mxu0 %v195
    %v263 = vpop.f32.mrb[0].mxu0
    %v264 = vadd.f32 0.0, %v263
    %v265 = vpop.f32.mrb[0].mxu0
    %266 = vdwg.mxu0
    %v268 = vcombine.high %v264, %v264
    %v270 = vunpack.c.l.s4 1966171168
    %v271 = vunpack.c.0.s8 %v270
    %v272 = vlaneseq
    %v273 = vshrl.u32 %v272, 7
    %v274 = vsub.s32 %v271, %v273
    %v275 = vrot.slane %v264, %v274
    %v277 = vunpack.c.l.s4 1966171168
    %v278 = vunpack.c.0.s8 %v277
    %v279 = vlaneseq
    %v280 = vshrl.u32 %v279, 7
    %v281 = vsub.s32 %v278, %v280
    %v282 = vrot.slane %v268, %v281
    %v283 = vcombine.high %v275, %v275
    %v284 = vcombine.high %v282, %v282
    %v286 = vunpack.c.l.s4 1966171168
    %v287 = vunpack.c.0.s8 %v286
    %v288 = vlaneseq
    %v289 = vshrl.u32 %v288, 7
    %v290 = vsub.s32 %v287, %v289
    %v291 = vrot.slane %v275, %v290
    %v293 = vunpack.c.l.s4 1966171168
    %v294 = vunpack.c.0.s8 %v293
    %v295 = vlaneseq
    %v296 = vshrl.u32 %v295, 7
    %v297 = vsub.s32 %v294, %v296
    %v298 = vrot.slane %v282, %v297
    %v300 = vunpack.c.l.s4 1966171168
    %v301 = vunpack.c.0.s8 %v300
    %v302 = vlaneseq
    %v303 = vshrl.u32 %v302, 7
    %v304 = vsub.s32 %v301, %v303
    %v305 = vrot.slane %v283, %v304
    %v307 = vunpack.c.l.s4 1966171168
    %v308 = vunpack.c.0.s8 %v307
    %v309 = vlaneseq
    %v310 = vshrl.u32 %v309, 7
    %v311 = vsub.s32 %v308, %v310
    %v312 = vrot.slane %v284, %v311
    %v313 = vcombine.high %v291, %v291
    %v314 = vcombine.high %v298, %v298
    %v315 = vcombine.high %v305, %v305
    %v316 = vcombine.high %v312, %v312
    %v317 = vlaneseq
    %v318 = vshrl.u32 %v317, 7
    %v319 = vsub.s32 0, %v318
    %v320 = vrot.slane %v291, %v319
    %v321 = vlaneseq
    %v322 = vshrl.u32 %v321, 7
    %v323 = vsub.s32 0, %v322
    %v324 = vrot.slane %v305, %v323
    %v325 = vlaneseq
    %v326 = vshrl.u32 %v325, 7
    %v327 = vsub.s32 0, %v326
    %v328 = vrot.slane %v313, %v327
    %v329 = vlaneseq
    %v330 = vshrl.u32 %v329, 7
    %v331 = vsub.s32 0, %v330
    %v332 = vrot.slane %v315, %v331
    %v333 = vlaneseq
    %v334 = vshrl.u32 %v333, 7
    %v335 = vsub.s32 0, %v334
    %v336 = vrot.slane %v298, %v335
    %v337 = vlaneseq
    %v338 = vshrl.u32 %v337, 7
    %v339 = vsub.s32 0, %v338
    %v340 = vrot.slane %v312, %v339
    %v341 = vlaneseq
    %v342 = vshrl.u32 %v341, 7
    %v343 = vsub.s32 0, %v342
    %v344 = vrot.slane %v314, %v343
    %v345 = vlaneseq
    %v346 = vshrl.u32 %v345, 7
    %v347 = vsub.s32 0, %v346
    %v348 = vrot.slane %v316, %v347
    %v357 = vsub.f32 %v102, %v320
    %v358 = vsub.f32 %v103, %v324
    %v359 = vsub.f32 %v104, %v328
    %v360 = vsub.f32 %v105, %v332
    %v361 = vsub.f32 %v106, %v336
    %v362 = vsub.f32 %v107, %v340
    %v363 = vsub.f32 %v108, %v344
    %v364 = vsub.f32 %v109, %v348
    %v365 = vmul.f32 %v357, %v357
    %v366 = vmul.f32 %v358, %v358
    %v367 = vmul.f32 %v359, %v359
    %v368 = vmul.f32 %v360, %v360
    %v369 = vmul.f32 %v361, %v361
    %v370 = vmul.f32 %v362, %v362
    %v371 = vmul.f32 %v363, %v363
    %v372 = vmul.f32 %v364, %v364
    %v373 = vrot.slane %v365, 4
    %v374 = vadd.f32 %v365, %v373
    %v375 = vrot.slane %v374, 2
    %v376 = vadd.f32 %v374, %v375
    %v377 = vrot.slane %v376, 1
    %v378 = vadd.f32 %v376, %v377
    %v379 = vrot.slane %v366, 4
    %v380 = vadd.f32 %v366, %v379
    %v381 = vrot.slane %v380, 2
    %v382 = vadd.f32 %v380, %v381
    %v383 = vrot.slane %v382, 1
    %v384 = vadd.f32 %v382, %v383
    %v385 = vrot.slane %v367, 4
    %v386 = vadd.f32 %v367, %v385
    %v387 = vrot.slane %v386, 2
    %v388 = vadd.f32 %v386, %v387
    %v389 = vrot.slane %v388, 1
    %v390 = vadd.f32 %v388, %v389
    %v391 = vrot.slane %v368, 4
    %v392 = vadd.f32 %v368, %v391
    %v393 = vrot.slane %v392, 2
    %v394 = vadd.f32 %v392, %v393
    %v395 = vrot.slane %v394, 1
    %v396 = vadd.f32 %v394, %v395
    %v397 = vrot.slane %v369, 4
    %v398 = vadd.f32 %v369, %v397
    %v399 = vrot.slane %v398, 2
    %v400 = vadd.f32 %v398, %v399
    %v401 = vrot.slane %v400, 1
    %v402 = vadd.f32 %v400, %v401
    %v403 = vrot.slane %v370, 4
    %v404 = vadd.f32 %v370, %v403
    %v405 = vrot.slane %v404, 2
    %v406 = vadd.f32 %v404, %v405
    %v407 = vrot.slane %v406, 1
    %v408 = vadd.f32 %v406, %v407
    %v409 = vrot.slane %v371, 4
    %v410 = vadd.f32 %v371, %v409
    %v411 = vrot.slane %v410, 2
    %v412 = vadd.f32 %v410, %v411
    %v413 = vrot.slane %v412, 1
    %v414 = vadd.f32 %v412, %v413
    %v415 = vrot.slane %v372, 4
    %v416 = vadd.f32 %v372, %v415
    %v417 = vrot.slane %v416, 2
    %v418 = vadd.f32 %v416, %v417
    %v419 = vrot.slane %v418, 1
    %v420 = vadd.f32 %v418, %v419
    %v429 = vsel %vm182, %v384, %v378
    %v430 = vsel %vm184, %v390, %v429
    %v431 = vsel %vm186, %v396, %v430
    %v432 = vsel %vm188, %v402, %v431
    %v433 = vsel %vm190, %v408, %v432
    %v434 = vsel %vm192, %v414, %v433
    %v435 = vsel %vm194, %v420, %v434
    %437 = vmatprep.subr.mxu0 0.0
    %438 = vmatpush1.msra.mxu0 %v158
    %439 = vmatprep.subr.mxu0 0.0
    %440 = vmatpush1.msra.mxu0 %v159
    %441 = vmatprep.subr.mxu0 0.0
    %442 = vmatpush1.msra.mxu0 %v160
    %443 = vmatprep.subr.mxu0 0.0
    %444 = vmatpush1.msra.mxu0 %v161
    %445 = vmatprep.subr.mxu0 0.0
    %446 = vmatpush1.msra.mxu0 %v162
    %447 = vmatprep.subr.mxu0 0.0
    %448 = vmatpush1.msra.mxu0 %v163
    %449 = vmatprep.subr.mxu0 0.0
    %450 = vmatpush1.msra.mxu0 %v164
    %451 = vmatprep.subr.mxu0 0.0
    %452 = vmatpush1.msra.mxu0 %v165
    %453 = vmatprep.subr.mxu0 0.0
    %454 = vmatpush1.msra.mxu0 %v166
    %455 = vmatprep.subr.mxu0 0.0
    %456 = vmatpush1.msra.mxu0 %v167
    %457 = vmatprep.subr.mxu0 0.0
    %458 = vmatpush1.msra.mxu0 %v168
    %459 = vmatprep.subr.mxu0 0.0
    %460 = vmatpush1.msra.mxu0 %v169
    %461 = vmatprep.subr.mxu0 0.0
    %462 = vmatpush1.msra.mxu0 %v170
    %463 = vmatprep.subr.mxu0 0.0
    %464 = vmatpush1.msra.mxu0 %v171
    %465 = vmatprep.subr.mxu0 0.0
    %466 = vmatpush1.msra.mxu0 %v172
    %467 = vmatprep.subr.mxu0 0.0
    %468 = vmatpush1.msra.mxu0 %v173
    %469 = vmatprep.subr.mxu0 0.0
    %470 = vmatpush1.msra.mxu0 0.0
    %471 = vmatprep.subr.mxu0 0.0
    %472 = vmatpush1.msra.mxu0 0.0
    %473 = vmatprep.subr.mxu0 0.0
    %474 = vmatpush1.msra.mxu0 0.0
    %475 = vmatprep.subr.mxu0 0.0
    %476 = vmatpush1.msra.mxu0 0.0
    %477 = vmatprep.subr.mxu0 0.0
    %478 = vmatpush1.msra.mxu0 0.0
    %479 = vmatprep.subr.mxu0 0.0
    %480 = vmatpush1.msra.mxu0 0.0
    %481 = vmatprep.subr.mxu0 0.0
    %482 = vmatpush1.msra.mxu0 0.0
    %483 = vmatprep.subr.mxu0 0.0
    %484 = vmatpush1.msra.mxu0 0.0
    %485 = vmatprep.subr.mxu0 0.0
    %486 = vmatpush1.msra.mxu0 0.0
    %487 = vmatprep.subr.mxu0 0.0
    %488 = vmatpush1.msra.mxu0 0.0
    %489 = vmatprep.subr.mxu0 0.0
    %490 = vmatpush1.msra.mxu0 0.0
    %491 = vmatprep.subr.mxu0 0.0
    %492 = vmatpush1.msra.mxu0 0.0
    %493 = vmatprep.subr.mxu0 0.0
    %494 = vmatpush1.msra.mxu0 0.0
    %495 = vmatprep.subr.mxu0 0.0
    %496 = vmatpush1.msra.mxu0 0.0
    %497 = vmatprep.subr.mxu0 0.0
    %498 = vmatpush1.msra.mxu0 0.0
    %499 = vmatprep.subr.mxu0 0.0
    %500 = vmatpush1.msra.mxu0 0.0
    %501 = vmatprep.mubr.f32.mxu0 0.0
    %502 = vmatmul.mubr.f32.gmra.mrb[0].mxu0 %v435
    %v503 = vpop.f32.mrb[0].mxu0
    %v504 = vadd.f32 1e-05, %v503
    %v505 = vpop.f32.mrb[0].mxu0
    %506 = vdwg.mxu0
    %v507 = vrsqrt.pop %v504
    %v508 = vld [vmem:[%s1] sm:$0x1]
    %v509 = vld [vmem:[%s2] sm:$0x1]
    %v511 = vcombine.high %v507, %v507
    %v513 = vunpack.c.l.s4 1966171168
    %v514 = vunpack.c.0.s8 %v513
    %v515 = vlaneseq
    %v516 = vshrl.u32 %v515, 7
    %v517 = vsub.s32 %v514, %v516
    %v518 = vrot.slane %v507, %v517
    %v520 = vunpack.c.l.s4 1966171168
    %v521 = vunpack.c.0.s8 %v520
    %v522 = vlaneseq
    %v523 = vshrl.u32 %v522, 7
    %v524 = vsub.s32 %v521, %v523
    %v525 = vrot.slane %v511, %v524
    %v526 = vcombine.high %v518, %v518
    %v527 = vcombine.high %v525, %v525
    %v529 = vunpack.c.l.s4 1966171168
    %v530 = vunpack.c.0.s8 %v529
    %v531 = vlaneseq
    %v532 = vshrl.u32 %v531, 7
    %v533 = vsub.s32 %v530, %v532
    %v534 = vrot.slane %v518, %v533
    %v536 = vunpack.c.l.s4 1966171168
    %v537 = vunpack.c.0.s8 %v536
    %v538 = vlaneseq
    %v539 = vshrl.u32 %v538, 7
    %v540 = vsub.s32 %v537, %v539
    %v541 = vrot.slane %v525, %v540
    %v543 = vunpack.c.l.s4 1966171168
    %v544 = vunpack.c.0.s8 %v543
    %v545 = vlaneseq
    %v546 = vshrl.u32 %v545, 7
    %v547 = vsub.s32 %v544, %v546
    %v548 = vrot.slane %v526, %v547
    %v550 = vunpack.c.l.s4 1966171168
    %v551 = vunpack.c.0.s8 %v550
    %v552 = vlaneseq
    %v553 = vshrl.u32 %v552, 7
    %v554 = vsub.s32 %v551, %v553
    %v555 = vrot.slane %v527, %v554
    %v556 = vcombine.high %v534, %v534
    %v557 = vcombine.high %v541, %v541
    %v558 = vcombine.high %v548, %v548
    %v559 = vcombine.high %v555, %v555
    %v560 = vlaneseq
    %v561 = vshrl.u32 %v560, 7
    %v562 = vsub.s32 0, %v561
    %v563 = vrot.slane %v534, %v562
    %v564 = vlaneseq
    %v565 = vshrl.u32 %v564, 7
    %v566 = vsub.s32 0, %v565
    %v567 = vrot.slane %v548, %v566
    %v568 = vlaneseq
    %v569 = vshrl.u32 %v568, 7
    %v570 = vsub.s32 0, %v569
    %v571 = vrot.slane %v556, %v570
    %v572 = vlaneseq
    %v573 = vshrl.u32 %v572, 7
    %v574 = vsub.s32 0, %v573
    %v575 = vrot.slane %v558, %v574
    %v576 = vlaneseq
    %v577 = vshrl.u32 %v576, 7
    %v578 = vsub.s32 0, %v577
    %v579 = vrot.slane %v541, %v578
    %v580 = vlaneseq
    %v581 = vshrl.u32 %v580, 7
    %v582 = vsub.s32 0, %v581
    %v583 = vrot.slane %v555, %v582
    %v584 = vlaneseq
    %v585 = vshrl.u32 %v584, 7
    %v586 = vsub.s32 0, %v585
    %v587 = vrot.slane %v557, %v586
    %v588 = vlaneseq
    %v589 = vshrl.u32 %v588, 7
    %v590 = vsub.s32 0, %v589
    %v591 = vrot.slane %v559, %v590
    %v600 = vmul.f32 %v357, %v563
    %v601 = vmul.f32 %v358, %v567
    %v602 = vmul.f32 %v359, %v571
    %v603 = vmul.f32 %v360, %v575
    %v604 = vmul.f32 %v361, %v579
    %v605 = vmul.f32 %v362, %v583
    %v606 = vmul.f32 %v363, %v587
    %v607 = vmul.f32 %v364, %v591
    %v609 = vlaneseq
    %v610 = vshrl.u32 %v609, 7
    %v611 = vsub.s32 0, %v610
    %v612 = vrot.slane %v508, %v611
    %v614 = vmul.f32 %v600, %v612
    %v615 = vmul.f32 %v601, %v612
    %v616 = vmul.f32 %v602, %v612
    %v617 = vmul.f32 %v603, %v612
    %v618 = vmul.f32 %v604, %v612
    %v619 = vmul.f32 %v605, %v612
    %v620 = vmul.f32 %v606, %v612
    %v621 = vmul.f32 %v607, %v612
    %v623 = vlaneseq
    %v624 = vshrl.u32 %v623, 7
    %v625 = vsub.s32 0, %v624
    %v626 = vrot.slane %v509, %v625
    %v628 = vadd.f32 %v614, %v626
    %v629 = vadd.f32 %v615, %v626
    %v630 = vadd.f32 %v616, %v626
    %v631 = vadd.f32 %v617, %v626
    %v632 = vadd.f32 %v618, %v626
    %v633 = vadd.f32 %v619, %v626
    %v634 = vadd.f32 %v620, %v626
    %v635 = vadd.f32 %v621, %v626
    %v636 = vpack.c.bf16 %v629, %v628
    %v637 = vpack.c.bf16 %v631, %v630
    %v638 = vpack.c.bf16 %v633, %v632
    %v639 = vpack.c.bf16 %v635, %v634
    %v640 = vld [vmem:[#allocation10] sm:$0xff]
    %v641 = vld [vmem:[#allocation10 + $0x8] sm:$0xf]
    %v642 = vld [vmem:[#allocation10 + $0xc] sm:$0xff]
    %v643 = vld [vmem:[#allocation10 + $0x14] sm:$0xf]
    %v644 = vld [vmem:[#allocation10 + $0x18] sm:$0xff]
    %v645 = vld [vmem:[#allocation10 + $0x20] sm:$0xf]
    %v646 = vld [vmem:[#allocation10 + $0x24] sm:$0xff]
    %v647 = vld [vmem:[#allocation10 + $0x2c] sm:$0xf]
    %v648 = vld [vmem:[#allocation10 + $0x30] sm:$0xff]
    %v649 = vld [vmem:[#allocation10 + $0x38] sm:$0xf]
    %v650 = vld [vmem:[#allocation10 + $0x3c] sm:$0xff]
    %v651 = vld [vmem:[#allocation10 + $0x44] sm:$0xf]
    %v652 = vld [vmem:[#allocation10 + $0x48] sm:$0xff]
    %v653 = vld [vmem:[#allocation10 + $0x50] sm:$0xf]
    %v654 = vld [vmem:[#allocation10 + $0x54] sm:$0xff]
    %v655 = vld [vmem:[#allocation10 + $0x5c] sm:$0xf]
    %v656 = vld [vmem:[#allocation10 + $0x60] sm:$0xff]
    %v657 = vld [vmem:[#allocation10 + $0x68] sm:$0xf]
    %v658 = vld [vmem:[#allocation10 + $0x6c] sm:$0xff]
    %v659 = vld [vmem:[#allocation10 + $0x74] sm:$0xf]
    %v660 = vld [vmem:[#allocation10 + $0x78] sm:$0xff]
    %v661 = vld [vmem:[#allocation10 + $0x80] sm:$0xf]
    %v662 = vld [vmem:[#allocation10 + $0x84] sm:$0xff]
    %v663 = vld [vmem:[#allocation10 + $0x8c] sm:$0xf]
    %v664 = vld [vmem:[#allocation10 + $0x90] sm:$0xff]
    %v665 = vld [vmem:[#allocation10 + $0x98] sm:$0xf]
    %v666 = vld [vmem:[#allocation10 + $0x9c] sm:$0xff]
    %v667 = vld [vmem:[#allocation10 + $0xa4] sm:$0xf]
    %v668 = vld [vmem:[#allocation10 + $0xa8] sm:$0xff]
    %v669 = vld [vmem:[#allocation10 + $0xb0] sm:$0xf]
    %v670 = vld [vmem:[#allocation10 + $0xb4] sm:$0xff]
    %v671 = vld [vmem:[#allocation10 + $0xbc] sm:$0xf]
    %v672 = vld [vmem:[%s6] sm:$0x7]
    %v674 = vlaneseq
    %v675 = vshrl.u32 %v674, 7
    %v676 = vsub.s32 0, %v675
    %v677 = vrot.slane %v672, %v676
    %v678 = vlaneseq
    %v679 = vshrl.u32 %v678, 7
    %v680 = vsub.s32 1, %v679
    %v681 = vrot.slane %v672, %v680
    %v682 = vlaneseq
    %v683 = vshrl.u32 %v682, 7
    %v684 = vsub.s32 2, %v683
    %v685 = vrot.slane %v672, %v684
    %v721 = vunpack.c.l.b16 %v640
    %v722 = vunpack.c.h.b16 %v640
    %v723 = vunpack.c.l.b16 %v641
    %v724 = vunpack.c.l.b16 %v642
    %v725 = vunpack.c.h.b16 %v642
    %v726 = vunpack.c.l.b16 %v643
    %v727 = vunpack.c.l.b16 %v644
    %v728 = vunpack.c.h.b16 %v644
    %v729 = vunpack.c.l.b16 %v645
    %v730 = vunpack.c.l.b16 %v646
    %v731 = vunpack.c.h.b16 %v646
    %v732 = vunpack.c.l.b16 %v647
    %v733 = vunpack.c.l.b16 %v648
    %v734 = vunpack.c.h.b16 %v648
    %v735 = vunpack.c.l.b16 %v649
    %v736 = vunpack.c.l.b16 %v650
    %v737 = vunpack.c.h.b16 %v650
    %v738 = vunpack.c.l.b16 %v651
    %v739 = vunpack.c.l.b16 %v652
    %v740 = vunpack.c.h.b16 %v652
    %v741 = vunpack.c.l.b16 %v653
    %v742 = vunpack.c.l.b16 %v654
    %v743 = vunpack.c.h.b16 %v654
    %v744 = vunpack.c.l.b16 %v655
    %v745 = vunpack.c.l.b16 %v656
    %v746 = vunpack.c.h.b16 %v656
    %v747 = vunpack.c.l.b16 %v657
    %v748 = vunpack.c.l.b16 %v658
    %v749 = vunpack.c.h.b16 %v658
    %v750 = vunpack.c.l.b16 %v659
    %v751 = vunpack.c.l.b16 %v660
    %v752 = vunpack.c.h.b16 %v660
    %v753 = vunpack.c.l.b16 %v661
    %v754 = vunpack.c.l.b16 %v662
    %v755 = vunpack.c.h.b16 %v662
    %v756 = vunpack.c.l.b16 %v663
    %v757 = vunpack.c.l.b16 %v664
    %v758 = vunpack.c.h.b16 %v664
    %v759 = vunpack.c.l.b16 %v665
    %v760 = vunpack.c.l.b16 %v666
    %v761 = vunpack.c.h.b16 %v666
    %v762 = vunpack.c.l.b16 %v667
    %v763 = vunpack.c.l.b16 %v668
    %v764 = vunpack.c.h.b16 %v668
    %v765 = vunpack.c.l.b16 %v669
    %v766 = vunpack.c.l.b16 %v670
    %v767 = vunpack.c.h.b16 %v670
    %v768 = vunpack.c.l.b16 %v671
    %v769 = vpack.c.b16 %v724, %v721
    %v770 = vpack.c.b16 %v725, %v722
    %v771 = vpack.c.b16 %v726, %v723
    %v772 = vpack.c.b16 %v730, %v727
    %v773 = vpack.c.b16 %v731, %v728
    %v774 = vpack.c.b16 %v732, %v729
    %v775 = vpack.c.b16 %v736, %v733
    %v776 = vpack.c.b16 %v737, %v734
    %v777 = vpack.c.b16 %v738, %v735
    %v778 = vpack.c.b16 %v742, %v739
    %v779 = vpack.c.b16 %v743, %v740
    %v780 = vpack.c.b16 %v744, %v741
    %v781 = vpack.c.b16 %v748, %v745
    %v782 = vpack.c.b16 %v749, %v746
    %v783 = vpack.c.b16 %v750, %v747
    %v784 = vpack.c.b16 %v754, %v751
    %v785 = vpack.c.b16 %v755, %v752
    %v786 = vpack.c.b16 %v756, %v753
    %v787 = vpack.c.b16 %v760, %v757
    %v788 = vpack.c.b16 %v761, %v758
    %v789 = vpack.c.b16 %v762, %v759
    %v790 = vpack.c.b16 %v766, %v763
    %v791 = vpack.c.b16 %v767, %v764
    %v792 = vpack.c.b16 %v768, %v765
    %817 = vmatprep.subr.bf16.mxu0 %v770
    %818 = vmatpush1.bf16.msra.mxu0 %v769
    %819 = vmatprep.subr.bf16.mxu0 %v773
    %820 = vmatpush1.bf16.msra.mxu0 %v772
    %821 = vmatprep.subr.bf16.mxu0 %v776
    %822 = vmatpush1.bf16.msra.mxu0 %v775
    %823 = vmatprep.subr.bf16.mxu0 %v779
    %824 = vmatpush1.bf16.msra.mxu0 %v778
    %825 = vmatprep.subr.bf16.mxu0 %v782
    %826 = vmatpush1.bf16.msra.mxu0 %v781
    %827 = vmatprep.subr.bf16.mxu0 %v785
    %828 = vmatpush1.bf16.msra.mxu0 %v784
    %829 = vmatprep.subr.bf16.mxu0 %v788
    %830 = vmatpush1.bf16.msra.mxu0 %v787
    %831 = vmatprep.subr.bf16.mxu0 %v791
    %832 = vmatpush1.bf16.msra.mxu0 %v790
    %833 = vmatprep.subr.bf16.mxu0 0
    %834 = vmatpush1.bf16.msra.mxu0 0
    %835 = vmatprep.subr.bf16.mxu0 0
    %836 = vmatpush1.bf16.msra.mxu0 0
    %837 = vmatprep.subr.bf16.mxu0 0
    %838 = vmatpush1.bf16.msra.mxu0 0
    %839 = vmatprep.subr.bf16.mxu0 0
    %840 = vmatpush1.bf16.msra.mxu0 0
    %841 = vmatprep.subr.bf16.mxu0 0
    %842 = vmatpush1.bf16.msra.mxu0 0
    %843 = vmatprep.subr.bf16.mxu0 0
    %844 = vmatpush1.bf16.msra.mxu0 0
    %845 = vmatprep.subr.bf16.mxu0 0
    %846 = vmatpush1.bf16.msra.mxu0 0
    %847 = vmatprep.subr.bf16.mxu0 0
    %848 = vmatpush1.bf16.msra.mxu0 0
    %849 = vmatprep.mubr.bf16.mxu0 0
    %850 = vmatmul.mubr.bf16.gmra.mrb[0].mxu0 %v636
    %v851 = vpop.f32.mrb[0].mxu0
    %v852 = vadd.f32 %v677, %v851
    %v853 = vpop.f32.mrb[0].mxu0
    %v854 = vadd.f32 %v681, %v853
    %v855 = vpop.f32.mrb[0].mxu0
    %v856 = vadd.f32 %v677, %v855
    %v857 = vpop.f32.mrb[0].mxu0
    %v858 = vadd.f32 %v681, %v857
    %859 = vmatprep.mubr.bf16.mxu0 0
    %860 = vmatmul.mubr.bf16.gmra.mrb[0].mxu0 %v637
    %v861 = vpop.f32.mrb[0].mxu0
    %v862 = vadd.f32 %v677, %v861
    %v863 = vpop.f32.mrb[0].mxu0
    %v864 = vadd.f32 %v681, %v863
    %v865 = vpop.f32.mrb[0].mxu0
    %v866 = vadd.f32 %v677, %v865
    %v867 = vpop.f32.mrb[0].mxu0
    %v868 = vadd.f32 %v681, %v867
    %869 = vmatprep.mubr.bf16.mxu0 0
    %870 = vmatmul.mubr.bf16.gmra.mrb[0].mxu0 %v638
    %v871 = vpop.f32.mrb[0].mxu0
    %v872 = vadd.f32 %v677, %v871
    %v873 = vpop.f32.mrb[0].mxu0
    %v874 = vadd.f32 %v681, %v873
    %v875 = vpop.f32.mrb[0].mxu0
    %v876 = vadd.f32 %v677, %v875
    %v877 = vpop.f32.mrb[0].mxu0
    %v878 = vadd.f32 %v681, %v877
    %879 = vmatprep.mubr.bf16.mxu0 0
    %880 = vmatmul.mubr.bf16.gmra.mrb[0].mxu0 %v639
    %v881 = vpop.f32.mrb[0].mxu0
    %v882 = vadd.f32 %v677, %v881
    %v883 = vpop.f32.mrb[0].mxu0
    %v884 = vadd.f32 %v681, %v883
    %v885 = vpop.f32.mrb[0].mxu0
    %v886 = vadd.f32 %v677, %v885
    %v887 = vpop.f32.mrb[0].mxu0
    %v888 = vadd.f32 %v681, %v887
    %889 = vdwg.mxu0
    %890 = vmatprep.subr.bf16.mxu0 0
    %891 = vmatpush1.bf16.msra.mxu0 %v771
    %892 = vmatprep.subr.bf16.mxu0 0
    %893 = vmatpush1.bf16.msra.mxu0 %v774
    %894 = vmatprep.subr.bf16.mxu0 0
    %895 = vmatpush1.bf16.msra.mxu0 %v777
    %896 = vmatprep.subr.bf16.mxu0 0
    %897 = vmatpush1.bf16.msra.mxu0 %v780
    %898 = vmatprep.subr.bf16.mxu0 0
    %899 = vmatpush1.bf16.msra.mxu0 %v783
    %900 = vmatprep.subr.bf16.mxu0 0
    %901 = vmatpush1.bf16.msra.mxu0 %v786
    %902 = vmatprep.subr.bf16.mxu0 0
    %903 = vmatpush1.bf16.msra.mxu0 %v789
    %904 = vmatprep.subr.bf16.mxu0 0
    %905 = vmatpush1.bf16.msra.mxu0 %v792
    %906 = vmatprep.subr.bf16.mxu0 0
    %907 = vmatpush1.bf16.msra.mxu0 0
    %908 = vmatprep.subr.bf16.mxu0 0
    %909 = vmatpush1.bf16.msra.mxu0 0
    %910 = vmatprep.subr.bf16.mxu0 0
    %911 = vmatpush1.bf16.msra.mxu0 0
    %912 = vmatprep.subr.bf16.mxu0 0
    %913 = vmatpush1.bf16.msra.mxu0 0
    %914 = vmatprep.subr.bf16.mxu0 0
    %915 = vmatpush1.bf16.msra.mxu0 0
    %916 = vmatprep.subr.bf16.mxu0 0
    %917 = vmatpush1.bf16.msra.mxu0 0
    %918 = vmatprep.subr.bf16.mxu0 0
    %919 = vmatpush1.bf16.msra.mxu0 0
    %920 = vmatprep.subr.bf16.mxu0 0
    %921 = vmatpush1.bf16.msra.mxu0 0
    %922 = vmatprep.mubr.bf16.mxu0 0
    %923 = vmatmul.mubr.bf16.gmra.mrb[0].mxu0 %v636
    %v924 = vpop.f32.mrb[0].mxu0
    %v925 = vadd.f32 %v685, %v924
    %v926 = vpop.f32.mrb[0].mxu0
    %v927 = vpop.f32.mrb[0].mxu0
    %v928 = vadd.f32 %v685, %v927
    %v929 = vpop.f32.mrb[0].mxu0
    %930 = vmatprep.mubr.bf16.mxu0 0
    %931 = vmatmul.mubr.bf16.gmra.mrb[0].mxu0 %v637
    %v932 = vpop.f32.mrb[0].mxu0
    %v933 = vadd.f32 %v685, %v932
    %v934 = vpop.f32.mrb[0].mxu0
    %v935 = vpop.f32.mrb[0].mxu0
    %v936 = vadd.f32 %v685, %v935
    %v937 = vpop.f32.mrb[0].mxu0
    %938 = vmatprep.mubr.bf16.mxu0 0
    %939 = vmatmul.mubr.bf16.gmra.mrb[0].mxu0 %v638
    %v940 = vpop.f32.mrb[0].mxu0
    %v941 = vadd.f32 %v685, %v940
    %v942 = vpop.f32.mrb[0].mxu0
    %v943 = vpop.f32.mrb[0].mxu0
    %v944 = vadd.f32 %v685, %v943
    %v945 = vpop.f32.mrb[0].mxu0
    %946 = vmatprep.mubr.bf16.mxu0 0
    %947 = vmatmul.mubr.bf16.gmra.mrb[0].mxu0 %v639
    %v948 = vpop.f32.mrb[0].mxu0
    %v949 = vadd.f32 %v685, %v948
    %v950 = vpop.f32.mrb[0].mxu0
    %v951 = vpop.f32.mrb[0].mxu0
    %v952 = vadd.f32 %v685, %v951
    %v953 = vpop.f32.mrb[0].mxu0
    %954 = vdwg.mxu0
    %v955 = vpack.c.bf16 %v852, %v852
    %v956 = vpack.c.bf16 %v854, %v854
    %v957 = vpack.c.bf16 %v925, %v925
    %v958 = vpack.c.bf16 %v856, %v856
    %v959 = vpack.c.bf16 %v858, %v858
    %v960 = vpack.c.bf16 %v928, %v928
    %v961 = vpack.c.bf16 %v862, %v862
    %v962 = vpack.c.bf16 %v864, %v864
    %v963 = vpack.c.bf16 %v933, %v933
    %v964 = vpack.c.bf16 %v866, %v866
    %v965 = vpack.c.bf16 %v868, %v868
    %v966 = vpack.c.bf16 %v936, %v936
    %v967 = vpack.c.bf16 %v872, %v872
    %v968 = vpack.c.bf16 %v874, %v874
    %v969 = vpack.c.bf16 %v941, %v941
    %v970 = vpack.c.bf16 %v876, %v876
    %v971 = vpack.c.bf16 %v878, %v878
    %v972 = vpack.c.bf16 %v944, %v944
    %v973 = vpack.c.bf16 %v882, %v882
    %v974 = vpack.c.bf16 %v884, %v884
    %v975 = vpack.c.bf16 %v949, %v949
    %v976 = vpack.c.bf16 %v886, %v886
    %v977 = vpack.c.bf16 %v888, %v888
    %v978 = vpack.c.bf16 %v952, %v952
    %v1003 = vunpack.c.l.b16 %v955
    %v1004 = vunpack.c.l.b16 %v956
    %v1005 = vunpack.c.l.b16 %v957
    %v1006 = vunpack.c.l.b16 %v958
    %v1007 = vunpack.c.l.b16 %v959
    %v1008 = vunpack.c.l.b16 %v960
    %v1009 = vunpack.c.l.b16 %v961
    %v1010 = vunpack.c.l.b16 %v962
    %v1011 = vunpack.c.l.b16 %v963
    %v1012 = vunpack.c.l.b16 %v964
    %v1013 = vunpack.c.l.b16 %v965
    %v1014 = vunpack.c.l.b16 %v966
    %v1015 = vunpack.c.l.b16 %v967
    %v1016 = vunpack.c.l.b16 %v968
    %v1017 = vunpack.c.l.b16 %v969
    %v1018 = vunpack.c.l.b16 %v970
    %v1019 = vunpack.c.l.b16 %v971
    %v1020 = vunpack.c.l.b16 %v972
    %v1021 = vunpack.c.l.b16 %v973
    %v1022 = vunpack.c.l.b16 %v974
    %v1023 = vunpack.c.l.b16 %v975
    %v1024 = vunpack.c.l.b16 %v976
    %v1025 = vunpack.c.l.b16 %v977
    %v1026 = vunpack.c.l.b16 %v978
    %v1027 = vpack.c.b16 %v1004, %v1003
    %v1028 = vpack.c.b16 %v1005, %v1005
    %v1029 = vpack.c.b16 %v1007, %v1006
    %v1030 = vpack.c.b16 %v1008, %v1008
    %v1031 = vpack.c.b16 %v1010, %v1009
    %v1032 = vpack.c.b16 %v1011, %v1011
    %v1033 = vpack.c.b16 %v1013, %v1012
    %v1034 = vpack.c.b16 %v1014, %v1014
    %v1035 = vpack.c.b16 %v1016, %v1015
    %v1036 = vpack.c.b16 %v1017, %v1017
    %v1037 = vpack.c.b16 %v1019, %v1018
    %v1038 = vpack.c.b16 %v1020, %v1020
    %v1039 = vpack.c.b16 %v1022, %v1021
    %v1040 = vpack.c.b16 %v1023, %v1023
    %v1041 = vpack.c.b16 %v1025, %v1024
    %v1042 = vpack.c.b16 %v1026, %v1026
    %1059 = vst [vmem:[#allocation2] sm:$0xff] %v1027
    %1060 = vst [vmem:[#allocation2 + $0x8] sm:$0xf] %v1028
    %1061 = vst [vmem:[#allocation2 + $0xc] sm:$0xff] %v1029
    %1062 = vst [vmem:[#allocation2 + $0x14] sm:$0xf] %v1030
    %1063 = vst [vmem:[#allocation2 + $0x18] sm:$0xff] %v1031
    %1064 = vst [vmem:[#allocation2 + $0x20] sm:$0xf] %v1032
    %1065 = vst [vmem:[#allocation2 + $0x24] sm:$0xff] %v1033
    %1066 = vst [vmem:[#allocation2 + $0x2c] sm:$0xf] %v1034
    %1067 = vst [vmem:[#allocation2 + $0x30] sm:$0xff] %v1035
    %1068 = vst [vmem:[#allocation2 + $0x38] sm:$0xf] %v1036
    %1069 = vst [vmem:[#allocation2 + $0x3c] sm:$0xff] %v1037
    %1070 = vst [vmem:[#allocation2 + $0x44] sm:$0xf] %v1038
    %1071 = vst [vmem:[#allocation2 + $0x48] sm:$0xff] %v1039
    %1072 = vst [vmem:[#allocation2 + $0x50] sm:$0xf] %v1040
    %1073 = vst [vmem:[#allocation2 + $0x54] sm:$0xff] %v1041
    %1074 = vst [vmem:[#allocation2 + $0x5c] sm:$0xf] %v1042
    %v1075 = vld [vmem:[#allocation2] sm:$0xff]
    %v1076 = vld [vmem:[#allocation2 + $0x8] sm:$0xf]
    %1077 = vxpose.xlu0.c.b16.start [1/8] %v1075, 128
    %1078 = vxpose.xlu0.c.b16.cont [2/8] 0, 128
    %1079 = vxpose.xlu0.c.b16.cont [3/8] 0, 128
    %1080 = vxpose.xlu0.c.b16.cont [4/8] 0, 128
    %1081 = vxpose.xlu0.c.b16.cont [5/8] 0, 128
    %1082 = vxpose.xlu0.c.b16.cont [6/8] 0, 128
    %1083 = vxpose.xlu0.c.b16.cont [7/8] 0, 128
    %1084 = vxpose.xlu0.c.b16.end [8/8] 0, 128
    %v1085 = vpop.trf.xlu0
    %v1086 = vpop.trf.xlu0
    %v1087 = vpop.trf.xlu0
    %v1088 = vpop.trf.xlu0
    %v1089 = vpop.trf.xlu0
    %v1090 = vpop.trf.xlu0
    %v1091 = vpop.trf.xlu0
    %v1092 = vpop.trf.xlu0
    %v1094 = vunpack.c.h.b16 %v1075
    %v1095 = vpack.c.b16 %v1094, %v1094
    %vm1096 = vcmask 64512
    %v1098 = vsel %vm1096, %v1085, 0
    %v1101 = vsel %vm1096, %v1086, 0
    %v1104 = vsel %vm1096, %v1087, 0
    %v1107 = vsel %vm1096, %v1088, 0
    %v1110 = vsel %vm1096, %v1089, 0
    %v1113 = vsel %vm1096, %v1090, 0
    %v1116 = vsel %vm1096, %v1091, 0
    %v1119 = vsel %vm1096, %v1092, 0
    %vm1121 = vcmask 1043456
    %v1123 = vsel %vm1121, %v1095, 0
    %1125 = vmatprep.subr.bf16.mxu0 0
    %1126 = vmatpush1.bf16.msra.mxu0 %v1123
    %1127 = vmatprep.subr.bf16.mxu0 0
    %1128 = vmatpush1.bf16.msra.mxu0 0
    %1129 = vmatprep.subr.bf16.mxu0 0
    %1130 = vmatpush1.bf16.msra.mxu0 0
    %1131 = vmatprep.subr.bf16.mxu0 0
    %1132 = vmatpush1.bf16.msra.mxu0 0
    %1133 = vmatprep.subr.bf16.mxu0 0
    %1134 = vmatpush1.bf16.msra.mxu0 0
    %1135 = vmatprep.subr.bf16.mxu0 0
    %1136 = vmatpush1.bf16.msra.mxu0 0
    %1137 = vmatprep.subr.bf16.mxu0 0
    %1138 = vmatpush1.bf16.msra.mxu0 0
    %1139 = vmatprep.subr.bf16.mxu0 0
    %1140 = vmatpush1.bf16.msra.mxu0 0
    %1141 = vmatprep.subr.bf16.mxu0 0
    %1142 = vmatpush1.bf16.msra.mxu0 0
    %1143 = vmatprep.subr.bf16.mxu0 0
    %1144 = vmatpush1.bf16.msra.mxu0 0
    %1145 = vmatprep.subr.bf16.mxu0 0
    %1146 = vmatpush1.bf16.msra.mxu0 0
    %1147 = vmatprep.subr.bf16.mxu0 0
    %1148 = vmatpush1.bf16.msra.mxu0 0
    %1149 = vmatprep.subr.bf16.mxu0 0
    %1150 = vmatpush1.bf16.msra.mxu0 0
    %1151 = vmatprep.subr.bf16.mxu0 0
    %1152 = vmatpush1.bf16.msra.mxu0 0
    %1153 = vmatprep.subr.bf16.mxu0 0
    %1154 = vmatpush1.bf16.msra.mxu0 0
    %1155 = vmatprep.subr.bf16.mxu0 0
    %1156 = vmatpush1.bf16.msra.mxu0 0
    %1157 = vmatprep.mubr.bf16.mxu0 0
    %1158 = vmatmul.mubr.bf16.gmra.mrb[0].mxu0 %v1098
    %v1159 = vpop.f32.mrb[0].mxu0
    %v1160 = vadd.f32 0.0, %v1159
    %v1161 = vpop.f32.mrb[0].mxu0
    %v1162 = vpop.f32.mrb[0].mxu0
    %v1163 = vadd.f32 0.0, %v1162
    %v1164 = vpop.f32.mrb[0].mxu0
    %1165 = vmatprep.mubr.bf16.mxu0 0
    %1166 = vmatmul.mubr.bf16.gmra.mrb[0].mxu0 %v1101
    %v1167 = vpop.f32.mrb[0].mxu0
    %v1168 = vadd.f32 0.0, %v1167
    %v1169 = vpop.f32.mrb[0].mxu0
    %v1170 = vpop.f32.mrb[0].mxu0
    %v1171 = vadd.f32 0.0, %v1170
    %v1172 = vpop.f32.mrb[0].mxu0
    %1173 = vmatprep.mubr.bf16.mxu0 0
    %1174 = vmatmul.mubr.bf16.gmra.mrb[0].mxu0 %v1104
    %v1175 = vpop.f32.mrb[0].mxu0
    %v1176 = vadd.f32 0.0, %v1175
    %v1177 = vpop.f32.mrb[0].mxu0
    %v1178 = vpop.f32.mrb[0].mxu0
    %v1179 = vadd.f32 0.0, %v1178
    %v1180 = vpop.f32.mrb[0].mxu0
    %1181 = vmatprep.mubr.bf16.mxu0 0
    %1182 = vmatmul.mubr.bf16.gmra.mrb[0].mxu0 %v1107
    %v1183 = vpop.f32.mrb[0].mxu0
    %v1184 = vadd.f32 0.0, %v1183
    %v1185 = vpop.f32.mrb[0].mxu0
    %v1186 = vpop.f32.mrb[0].mxu0
    %v1187 = vadd.f32 0.0, %v1186
    %v1188 = vpop.f32.mrb[0].mxu0
    %1189 = vmatprep.mubr.bf16.mxu0 0
    %1190 = vmatmul.mubr.bf16.gmra.mrb[0].mxu0 %v1110
    %v1191 = vpop.f32.mrb[0].mxu0
    %v1192 = vadd.f32 0.0, %v1191
    %v1193 = vpop.f32.mrb[0].mxu0
    %v1194 = vpop.f32.mrb[0].mxu0
    %v1195 = vadd.f32 0.0, %v1194
    %v1196 = vpop.f32.mrb[0].mxu0
    %1197 = vmatprep.mubr.bf16.mxu0 0
    %1198 = vmatmul.mubr.bf16.gmra.mrb[0].mxu0 %v1113
    %v1199 = vpop.f32.mrb[0].mxu0
    %v1200 = vadd.f32 0.0, %v1199
    %v1201 = vpop.f32.mrb[0].mxu0
    %v1202 = vpop.f32.mrb[0].mxu0
    %v1203 = vadd.f32 0.0, %v1202
    %v1204 = vpop.f32.mrb[0].mxu0
    %1205 = vmatprep.mubr.bf16.mxu0 0
    %1206 = vmatmul.mubr.bf16.gmra.mrb[0].mxu0 %v1116
    %v1207 = vpop.f32.mrb[0].mxu0
    %v1208 = vadd.f32 0.0, %v1207
    %v1209 = vpop.f32.mrb[0].mxu0
    %v1210 = vpop.f32.mrb[0].mxu0
    %v1211 = vadd.f32 0.0, %v1210
    %v1212 = vpop.f32.mrb[0].mxu0
    %1213 = vmatprep.mubr.bf16.mxu0 0
    %1214 = vmatmul.mubr.bf16.gmra.mrb[0].mxu0 %v1119
    %v1215 = vpop.f32.mrb[0].mxu0
    %v1216 = vadd.f32 0.0, %v1215
    %v1217 = vpop.f32.mrb[0].mxu0
    %v1218 = vpop.f32.mrb[0].mxu0
    %v1219 = vadd.f32 0.0, %v1218
    %v1220 = vpop.f32.mrb[0].mxu0
    %1221 = vdwg.mxu0
    %v1222 = vmul.f32 %v1160, 0.17677669
    %v1223 = vmul.f32 %v1163, 0.17677669
    %v1224 = vmul.f32 %v1168, 0.17677669
    %v1225 = vmul.f32 %v1171, 0.17677669
    %v1226 = vmul.f32 %v1176, 0.17677669
    %v1227 = vmul.f32 %v1179, 0.17677669
    %v1228 = vmul.f32 %v1184, 0.17677669
    %v1229 = vmul.f32 %v1187, 0.17677669
    %v1230 = vmul.f32 %v1192, 0.17677669
    %v1231 = vmul.f32 %v1195, 0.17677669
    %v1232 = vmul.f32 %v1200, 0.17677669
    %v1233 = vmul.f32 %v1203, 0.17677669
    %v1234 = vmul.f32 %v1208, 0.17677669
    %v1235 = vmul.f32 %v1211, 0.17677669
    %v1236 = vmul.f32 %v1216, 0.17677669
    %v1237 = vmul.f32 %v1219, 0.17677669
    %v1238 = vld [vmem:[#allocation9] sm:$0xff]
    %v1239 = vld [vmem:[#allocation9 + $0x8] sm:$0xff]
    %v1240 = vld [vmem:[#allocation9 + $0x10] sm:$0xff]
    %v1241 = vld [vmem:[#allocation9 + $0x18] sm:$0xff]
    %v1242 = vld [vmem:[#allocation9 + $0x20] sm:$0xff]
    %v1243 = vld [vmem:[#allocation9 + $0x28] sm:$0xff]
    %v1244 = vld [vmem:[#allocation9 + $0x30] sm:$0xff]
    %v1245 = vld [vmem:[#allocation9 + $0x38] sm:$0xff]
    %v1246 = vld [vmem:[#allocation9 + $0x40] sm:$0xff]
    %v1247 = vld [vmem:[#allocation9 + $0x48] sm:$0xff]
    %v1248 = vld [vmem:[#allocation9 + $0x50] sm:$0xff]
    %v1249 = vld [vmem:[#allocation9 + $0x58] sm:$0xff]
    %v1250 = vld [vmem:[#allocation9 + $0x60] sm:$0xff]
    %v1251 = vld [vmem:[#allocation9 + $0x68] sm:$0xff]
    %v1252 = vld [vmem:[#allocation9 + $0x70] sm:$0xff]
    %v1253 = vld [vmem:[#allocation9 + $0x78] sm:$0xff]
    %v1254 = vadd.f32 %v1222, %v1238
    %v1255 = vadd.f32 %v1223, %v1239
    %v1256 = vadd.f32 %v1224, %v1240
    %v1257 = vadd.f32 %v1225, %v1241
    %v1258 = vadd.f32 %v1226, %v1242
    %v1259 = vadd.f32 %v1227, %v1243
    %v1260 = vadd.f32 %v1228, %v1244
    %v1261 = vadd.f32 %v1229, %v1245
    %v1262 = vadd.f32 %v1230, %v1246
    %v1263 = vadd.f32 %v1231, %v1247
    %v1264 = vadd.f32 %v1232, %v1248
    %v1265 = vadd.f32 %v1233, %v1249
    %v1266 = vadd.f32 %v1234, %v1250
    %v1267 = vadd.f32 %v1235, %v1251
    %v1268 = vadd.f32 %v1236, %v1252
    %v1269 = vadd.f32 %v1237, %v1253
    %1270 = vmax.xlane.f32.xlu0 %v1254
    %v1271 = vpop.xlane.xlu0 %1270
    %1272 = vmax.xlane.f32.xlu0 %v1255
    %v1273 = vpop.xlane.xlu0 %1272
    %1274 = vmax.xlane.f32.xlu0 %v1256
    %v1275 = vpop.xlane.xlu0 %1274
    %1276 = vmax.xlane.f32.xlu0 %v1257
    %v1277 = vpop.xlane.xlu0 %1276
    %1278 = vmax.xlane.f32.xlu0 %v1258
    %v1279 = vpop.xlane.xlu0 %1278
    %1280 = vmax.xlane.f32.xlu0 %v1259
    %v1281 = vpop.xlane.xlu0 %1280
    %1282 = vmax.xlane.f32.xlu0 %v1260
    %v1283 = vpop.xlane.xlu0 %1282
    %1284 = vmax.xlane.f32.xlu0 %v1261
    %v1285 = vpop.xlane.xlu0 %1284
    %1286 = vmax.xlane.f32.xlu0 %v1262
    %v1287 = vpop.xlane.xlu0 %1286
    %1288 = vmax.xlane.f32.xlu0 %v1263
    %v1289 = vpop.xlane.xlu0 %1288
    %1290 = vmax.xlane.f32.xlu0 %v1264
    %v1291 = vpop.xlane.xlu0 %1290
    %1292 = vmax.xlane.f32.xlu0 %v1265
    %v1293 = vpop.xlane.xlu0 %1292
    %1294 = vmax.xlane.f32.xlu0 %v1266
    %v1295 = vpop.xlane.xlu0 %1294
    %1296 = vmax.xlane.f32.xlu0 %v1267
    %v1297 = vpop.xlane.xlu0 %1296
    %1298 = vmax.xlane.f32.xlu0 %v1268
    %v1299 = vpop.xlane.xlu0 %1298
    %1300 = vmax.xlane.f32.xlu0 %v1269
    %v1301 = vpop.xlane.xlu0 %1300
    %v1302 = vsub.f32 %v1254, %v1271
    %v1303 = vsub.f32 %v1255, %v1273
    %v1304 = vsub.f32 %v1256, %v1275
    %v1305 = vsub.f32 %v1257, %v1277
    %v1306 = vsub.f32 %v1258, %v1279
    %v1307 = vsub.f32 %v1259, %v1281
    %v1308 = vsub.f32 %v1260, %v1283
    %v1309 = vsub.f32 %v1261, %v1285
    %v1310 = vsub.f32 %v1262, %v1287
    %v1311 = vsub.f32 %v1263, %v1289
    %v1312 = vsub.f32 %v1264, %v1291
    %v1313 = vsub.f32 %v1265, %v1293
    %v1314 = vsub.f32 %v1266, %v1295
    %v1315 = vsub.f32 %v1267, %v1297
    %v1316 = vsub.f32 %v1268, %v1299
    %v1317 = vsub.f32 %v1269, %v1301
    %v1318 = vmul.f32 %v1302, 1.442695
    %v1319 = vpow.pop %v1318
    %v1320 = vmul.f32 %v1303, 1.442695
    %v1321 = vpow.pop %v1320
    %v1322 = vmul.f32 %v1304, 1.442695
    %v1323 = vpow.pop %v1322
    %v1324 = vmul.f32 %v1305, 1.442695
    %v1325 = vpow.pop %v1324
    %v1326 = vmul.f32 %v1306, 1.442695
    %v1327 = vpow.pop %v1326
    %v1328 = vmul.f32 %v1307, 1.442695
    %v1329 = vpow.pop %v1328
    %v1330 = vmul.f32 %v1308, 1.442695
    %v1331 = vpow.pop %v1330
    %v1332 = vmul.f32 %v1309, 1.442695
    %v1333 = vpow.pop %v1332
    %v1334 = vmul.f32 %v1310, 1.442695
    %v1335 = vpow.pop %v1334
    %v1336 = vmul.f32 %v1311, 1.442695
    %v1337 = vpow.pop %v1336
    %v1338 = vmul.f32 %v1312, 1.442695
    %v1339 = vpow.pop %v1338
    %v1340 = vmul.f32 %v1313, 1.442695
    %v1341 = vpow.pop %v1340
    %v1342 = vmul.f32 %v1314, 1.442695
    %v1343 = vpow.pop %v1342
    %v1344 = vmul.f32 %v1315, 1.442695
    %v1345 = vpow.pop %v1344
    %v1346 = vmul.f32 %v1316, 1.442695
    %v1347 = vpow.pop %v1346
    %v1348 = vmul.f32 %v1317, 1.442695
    %v1349 = vpow.pop %v1348
    %1350 = vadd.xlane.f32.xlu0 %v1319
    %v1351 = vpop.xlane.xlu0 %1350
    %1352 = vadd.xlane.f32.xlu0 %v1321
    %v1353 = vpop.xlane.xlu0 %1352
    %1354 = vadd.xlane.f32.xlu0 %v1323
    %v1355 = vpop.xlane.xlu0 %1354
    %1356 = vadd.xlane.f32.xlu0 %v1325
    %v1357 = vpop.xlane.xlu0 %1356
    %1358 = vadd.xlane.f32.xlu0 %v1327
    %v1359 = vpop.xlane.xlu0 %1358
    %1360 = vadd.xlane.f32.xlu0 %v1329
    %v1361 = vpop.xlane.xlu0 %1360
    %1362 = vadd.xlane.f32.xlu0 %v1331
    %v1363 = vpop.xlane.xlu0 %1362
    %1364 = vadd.xlane.f32.xlu0 %v1333
    %v1365 = vpop.xlane.xlu0 %1364
    %1366 = vadd.xlane.f32.xlu0 %v1335
    %v1367 = vpop.xlane.xlu0 %1366
    %1368 = vadd.xlane.f32.xlu0 %v1337
    %v1369 = vpop.xlane.xlu0 %1368
    %1370 = vadd.xlane.f32.xlu0 %v1339
    %v1371 = vpop.xlane.xlu0 %1370
    %1372 = vadd.xlane.f32.xlu0 %v1341
    %v1373 = vpop.xlane.xlu0 %1372
    %1374 = vadd.xlane.f32.xlu0 %v1343
    %v1375 = vpop.xlane.xlu0 %1374
    %1376 = vadd.xlane.f32.xlu0 %v1345
    %v1377 = vpop.xlane.xlu0 %1376
    %1378 = vadd.xlane.f32.xlu0 %v1347
    %v1379 = vpop.xlane.xlu0 %1378
    %1380 = vadd.xlane.f32.xlu0 %v1349
    %v1381 = vpop.xlane.xlu0 %1380
    %v1382 = vrcp.pop %v1351
    %v1383 = vrcp.pop %v1353
    %v1384 = vrcp.pop %v1355
    %v1385 = vrcp.pop %v1357
    %v1386 = vrcp.pop %v1359
    %v1387 = vrcp.pop %v1361
    %v1388 = vrcp.pop %v1363
    %v1389 = vrcp.pop %v1365
    %v1390 = vrcp.pop %v1367
    %v1391 = vrcp.pop %v1369
    %v1392 = vrcp.pop %v1371
    %v1393 = vrcp.pop %v1373
    %v1394 = vrcp.pop %v1375
    %v1395 = vrcp.pop %v1377
    %v1396 = vrcp.pop %v1379
    %v1397 = vrcp.pop %v1381
    %v1398 = vmul.f32 %v1319, %v1382
    %v1399 = vmul.f32 %v1321, %v1383
    %v1400 = vmul.f32 %v1323, %v1384
    %v1401 = vmul.f32 %v1325, %v1385
    %v1402 = vmul.f32 %v1327, %v1386
    %v1403 = vmul.f32 %v1329, %v1387
    %v1404 = vmul.f32 %v1331, %v1388
    %v1405 = vmul.f32 %v1333, %v1389
    %v1406 = vmul.f32 %v1335, %v1390
    %v1407 = vmul.f32 %v1337, %v1391
    %v1408 = vmul.f32 %v1339, %v1392
    %v1409 = vmul.f32 %v1341, %v1393
    %v1410 = vmul.f32 %v1343, %v1394
    %v1411 = vmul.f32 %v1345, %v1395
    %v1412 = vmul.f32 %v1347, %v1396
    %v1413 = vmul.f32 %v1349, %v1397
    %v1414 = vpack.c.bf16 %v1399, %v1398
    %v1415 = vpack.c.bf16 %v1401, %v1400
    %v1416 = vpack.c.bf16 %v1403, %v1402
    %v1417 = vpack.c.bf16 %v1405, %v1404
    %v1418 = vpack.c.bf16 %v1407, %v1406
    %v1419 = vpack.c.bf16 %v1409, %v1408
    %v1420 = vpack.c.bf16 %v1411, %v1410
    %v1421 = vpack.c.bf16 %v1413, %v1412
    %1422 = vmatprep.subr.bf16.mxu0 0
    %1423 = vmatpush1.bf16.xpose.msra.mxu0 %v1414
    %1424 = vmatprep.subr.bf16.mxu0 0
    %1425 = vmatpush1.bf16.xpose.msra.mxu0 %v1415
    %1426 = vmatprep.subr.bf16.mxu0 0
    %1427 = vmatpush1.bf16.xpose.msra.mxu0 %v1416
    %1428 = vmatprep.subr.bf16.mxu0 0
    %1429 = vmatpush1.bf16.xpose.msra.mxu0 %v1417
    %1430 = vmatprep.subr.bf16.mxu0 0
    %1431 = vmatpush1.bf16.xpose.msra.mxu0 %v1418
    %1432 = vmatprep.subr.bf16.mxu0 0
    %1433 = vmatpush1.bf16.xpose.msra.mxu0 %v1419
    %1434 = vmatprep.subr.bf16.mxu0 0
    %1435 = vmatpush1.bf16.xpose.msra.mxu0 %v1420
    %1436 = vmatprep.subr.bf16.mxu0 0
    %1437 = vmatpush1.bf16.xpose.msra.mxu0 %v1421
    %1438 = vmatprep.subr.bf16.mxu0 0
    %1439 = vmatpush1.bf16.xpose.msra.mxu0 0
    %1440 = vmatprep.subr.bf16.mxu0 0
    %1441 = vmatpush1.bf16.xpose.msra.mxu0 0
    %1442 = vmatprep.subr.bf16.mxu0 0
    %1443 = vmatpush1.bf16.xpose.msra.mxu0 0
    %1444 = vmatprep.subr.bf16.mxu0 0
    %1445 = vmatpush1.bf16.xpose.msra.mxu0 0
    %1446 = vmatprep.subr.bf16.mxu0 0
    %1447 = vmatpush1.bf16.xpose.msra.mxu0 0
    %1448 = vmatprep.subr.bf16.mxu0 0
    %1449 = vmatpush1.bf16.xpose.msra.mxu0 0
    %1450 = vmatprep.subr.bf16.mxu0 0
    %1451 = vmatpush1.bf16.xpose.msra.mxu0 0
    %1452 = vmatprep.subr.bf16.mxu0 0
    %1453 = vmatpush1.bf16.xpose.msra.mxu0 0
    %1454 = vmatprep.mubr.bf16.mxu0 0
    %1455 = vmatmul.mubr.bf16.gmra.mrb[0].mxu0 %v1076
    %v1456 = vpop.f32.mrb[0].mxu0
    %v1457 = vadd.f32 0.0, %v1456
    %v1458 = vpop.f32.mrb[0].mxu0
    %v1459 = vpop.f32.mrb[0].mxu0
    %v1460 = vpop.f32.mrb[0].mxu0
    %1461 = vdwg.mxu0
    %1462 = vst [vmem:[#allocation3] sm:$0xff] %v1457
    %s1463 = scalar_lea.vmem [#allocation2], 12
    %v1464 = vld [vmem:[%s1463] sm:$0xff]
    %v1465 = vld [vmem:[%s1463 + $0x8] sm:$0xf]
    %1466 = vxpose.xlu0.c.b16.start [1/8] %v1464, 128
    %1467 = vxpose.xlu0.c.b16.cont [2/8] 0, 128
    %1468 = vxpose.xlu0.c.b16.cont [3/8] 0, 128
    %1469 = vxpose.xlu0.c.b16.cont [4/8] 0, 128
    %1470 = vxpose.xlu0.c.b16.cont [5/8] 0, 128
    %1471 = vxpose.xlu0.c.b16.cont [6/8] 0, 128
    %1472 = vxpose.xlu0.c.b16.cont [7/8] 0, 128
    %1473 = vxpose.xlu0.c.b16.end [8/8] 0, 128
    %v1474 = vpop.trf.xlu0
    %v1475 = vpop.trf.xlu0
    %v1476 = vpop.trf.xlu0
    %v1477 = vpop.trf.xlu0
    %v1478 = vpop.trf.xlu0
    %v1479 = vpop.trf.xlu0
    %v1480 = vpop.trf.xlu0
    %v1481 = vpop.trf.xlu0
    %v1483 = vunpack.c.h.b16 %v1464
    %v1484 = vpack.c.b16 %v1483, %v1483
    %v1486 = vsel %vm1096, %v1474, 0
    %v1489 = vsel %vm1096, %v1475, 0
    %v1492 = vsel %vm1096, %v1476, 0
    %v1495 = vsel %vm1096, %v1477, 0
    %v1498 = vsel %vm1096, %v1478, 0
    %v1501 = vsel %vm1096, %v1479, 0
    %v1504 = vsel %vm1096, %v1480, 0
    %v1507 = vsel %vm1096, %v1481, 0
    %v1510 = vsel %vm1121, %v1484, 0
    %1512 = vmatprep.subr.bf16.mxu0 0
    %1513 = vmatpush1.bf16.msra.mxu0 %v1510
    %1514 = vmatprep.subr.bf16.mxu0 0
    %1515 = vmatpush1.bf16.msra.mxu0 0
    %1516 = vmatprep.subr.bf16.mxu0 0
    %1517 = vmatpush1.bf16.msra.mxu0 0
    %1518 = vmatprep.subr.bf16.mxu0 0
    %1519 = vmatpush1.bf16.msra.mxu0 0
    %1520 = vmatprep.subr.bf16.mxu0 0
    %1521 = vmatpush1.bf16.msra.mxu0 0
    %1522 = vmatprep.subr.bf16.mxu0 0
    %1523 = vmatpush1.bf16.msra.mxu0 0
    %1524 = vmatprep.subr.bf16.mxu0 0
    %1525 = vmatpush1.bf16.msra.mxu0 0
    %1526 = vmatprep.subr.bf16.mxu0 0
    %1527 = vmatpush1.bf16.msra.mxu0 0
    %1528 = vmatprep.subr.bf16.mxu0 0
    %1529 = vmatpush1.bf16.msra.mxu0 0
    %1530 = vmatprep.subr.bf16.mxu0 0
    %1531 = vmatpush1.bf16.msra.mxu0 0
    %1532 = vmatprep.subr.bf16.mxu0 0
    %1533 = vmatpush1.bf16.msra.mxu0 0
    %1534 = vmatprep.subr.bf16.mxu0 0
    %1535 = vmatpush1.bf16.msra.mxu0 0
    %1536 = vmatprep.subr.bf16.mxu0 0
    %1537 = vmatpush1.bf16.msra.mxu0 0
    %1538 = vmatprep.subr.bf16.mxu0 0
    %1539 = vmatpush1.bf16.msra.mxu0 0
    %1540 = vmatprep.subr.bf16.mxu0 0
    %1541 = vmatpush1.bf16.msra.mxu0 0
    %1542 = vmatprep.subr.bf16.mxu0 0
    %1543 = vmatpush1.bf16.msra.mxu0 0
    %1544 = vmatprep.mubr.bf16.mxu0 0
    %1545 = vmatmul.mubr.bf16.gmra.mrb[0].mxu0 %v1486
    %v1546 = vpop.f32.mrb[0].mxu0
    %v1547 = vadd.f32 0.0, %v1546
    %v1548 = vpop.f32.mrb[0].mxu0
    %v1549 = vpop.f32.mrb[0].mxu0
    %v1550 = vadd.f32 0.0, %v1549
    %v1551 = vpop.f32.mrb[0].mxu0
    %1552 = vmatprep.mubr.bf16.mxu0 0
    %1553 = vmatmul.mubr.bf16.gmra.mrb[0].mxu0 %v1489
    %v1554 = vpop.f32.mrb[0].mxu0
    %v1555 = vadd.f32 0.0, %v1554
    %v1556 = vpop.f32.mrb[0].mxu0
    %v1557 = vpop.f32.mrb[0].mxu0
    %v1558 = vadd.f32 0.0, %v1557
    %v1559 = vpop.f32.mrb[0].mxu0
    %1560 = vmatprep.mubr.bf16.mxu0 0
    %1561 = vmatmul.mubr.bf16.gmra.mrb[0].mxu0 %v1492
    %v1562 = vpop.f32.mrb[0].mxu0
    %v1563 = vadd.f32 0.0, %v1562
    %v1564 = vpop.f32.mrb[0].mxu0
    %v1565 = vpop.f32.mrb[0].mxu0
    %v1566 = vadd.f32 0.0, %v1565
    %v1567 = vpop.f32.mrb[0].mxu0
    %1568 = vmatprep.mubr.bf16.mxu0 0
    %1569 = vmatmul.mubr.bf16.gmra.mrb[0].mxu0 %v1495
    %v1570 = vpop.f32.mrb[0].mxu0
    %v1571 = vadd.f32 0.0, %v1570
    %v1572 = vpop.f32.mrb[0].mxu0
    %v1573 = vpop.f32.mrb[0].mxu0
    %v1574 = vadd.f32 0.0, %v1573
    %v1575 = vpop.f32.mrb[0].mxu0
    %1576 = vmatprep.mubr.bf16.mxu0 0
    %1577 = vmatmul.mubr.bf16.gmra.mrb[0].mxu0 %v1498
    %v1578 = vpop.f32.mrb[0].mxu0
    %v1579 = vadd.f32 0.0, %v1578
    %v1580 = vpop.f32.mrb[0].mxu0
    %v1581 = vpop.f32.mrb[0].mxu0
    %v1582 = vadd.f32 0.0, %v1581
    %v1583 = vpop.f32.mrb[0].mxu0
    %1584 = vmatprep.mubr.bf16.mxu0 0
    %1585 = vmatmul.mubr.bf16.gmra.mrb[0].mxu0 %v1501
    %v1586 = vpop.f32.mrb[0].mxu0
    %v1587 = vadd.f32 0.0, %v1586
    %v1588 = vpop.f32.mrb[0].mxu0
    %v1589 = vpop.f32.mrb[0].mxu0
    %v1590 = vadd.f32 0.0, %v1589
    %v1591 = vpop.f32.mrb[0].mxu0
    %1592 = vmatprep.mubr.bf16.mxu0 0
    %1593 = vmatmul.mubr.bf16.gmra.mrb[0].mxu0 %v1504
    %v1594 = vpop.f32.mrb[0].mxu0
    %v1595 = vadd.f32 0.0, %v1594
    %v1596 = vpop.f32.mrb[0].mxu0
    %v1597 = vpop.f32.mrb[0].mxu0
    %v1598 = vadd.f32 0.0, %v1597
    %v1599 = vpop.f32.mrb[0].mxu0
    %1600 = vmatprep.mubr.bf16.mxu0 0
    %1601 = vmatmul.mubr.bf16.gmra.mrb[0].mxu0 %v1507
    %v1602 = vpop.f32.mrb[0].mxu0
    %v1603 = vadd.f32 0.0, %v1602
    %v1604 = vpop.f32.mrb[0].mxu0
    %v1605 = vpop.f32.mrb[0].mxu0
    %v1606 = vadd.f32 0.0, %v1605
    %v1607 = vpop.f32.mrb[0].mxu0
    %1608 = vdwg.mxu0
    %v1609 = vmul.f32 %v1547, 0.17677669
    %v1610 = vmul.f32 %v1550, 0.17677669
    %v1611 = vmul.f32 %v1555, 0.17677669
    %v1612 = vmul.f32 %v1558, 0.17677669
    %v1613 = vmul.f32 %v1563, 0.17677669
    %v1614 = vmul.f32 %v1566, 0.17677669
    %v1615 = vmul.f32 %v1571, 0.17677669
    %v1616 = vmul.f32 %v1574, 0.17677669
    %v1617 = vmul.f32 %v1579, 0.17677669
    %v1618 = vmul.f32 %v1582, 0.17677669
    %v1619 = vmul.f32 %v1587, 0.17677669
    %v1620 = vmul.f32 %v1590, 0.17677669
    %v1621 = vmul.f32 %v1595, 0.17677669
    %v1622 = vmul.f32 %v1598, 0.17677669
    %v1623 = vmul.f32 %v1603, 0.17677669
    %v1624 = vmul.f32 %v1606, 0.17677669
    %v1625 = vld [vmem:[#allocation9] sm:$0xff]
    %v1626 = vld [vmem:[#allocation9 + $0x8] sm:$0xff]
    %v1627 = vld [vmem:[#allocation9 + $0x10] sm:$0xff]
    %v1628 = vld [vmem:[#allocation9 + $0x18] sm:$0xff]
    %v1629 = vld [vmem:[#allocation9 + $0x20] sm:$0xff]
    %v1630 = vld [vmem:[#allocation9 + $0x28] sm:$0xff]
    %v1631 = vld [vmem:[#allocation9 + $0x30] sm:$0xff]
    %v1632 = vld [vmem:[#allocation9 + $0x38] sm:$0xff]
    %v1633 = vld [vmem:[#allocation9 + $0x40] sm:$0xff]
    %v1634 = vld [vmem:[#allocation9 + $0x48] sm:$0xff]
    %v1635 = vld [vmem:[#allocation9 + $0x50] sm:$0xff]
    %v1636 = vld [vmem:[#allocation9 + $0x58] sm:$0xff]
    %v1637 = vld [vmem:[#allocation9 + $0x60] sm:$0xff]
    %v1638 = vld [vmem:[#allocation9 + $0x68] sm:$0xff]
    %v1639 = vld [vmem:[#allocation9 + $0x70] sm:$0xff]
    %v1640 = vld [vmem:[#allocation9 + $0x78] sm:$0xff]
    %v1641 = vadd.f32 %v1609, %v1625
    %v1642 = vadd.f32 %v1610, %v1626
    %v1643 = vadd.f32 %v1611, %v1627
    %v1644 = vadd.f32 %v1612, %v1628
    %v1645 = vadd.f32 %v1613, %v1629
    %v1646 = vadd.f32 %v1614, %v1630
    %v1647 = vadd.f32 %v1615, %v1631
    %v1648 = vadd.f32 %v1616, %v1632
    %v1649 = vadd.f32 %v1617, %v1633
    %v1650 = vadd.f32 %v1618, %v1634
    %v1651 = vadd.f32 %v1619, %v1635
    %v1652 = vadd.f32 %v1620, %v1636
    %v1653 = vadd.f32 %v1621, %v1637
    %v1654 = vadd.f32 %v1622, %v1638
    %v1655 = vadd.f32 %v1623, %v1639
    %v1656 = vadd.f32 %v1624, %v1640
    %1657 = vmax.xlane.f32.xlu0 %v1641
    %v1658 = vpop.xlane.xlu0 %1657
    %1659 = vmax.xlane.f32.xlu0 %v1642
    %v1660 = vpop.xlane.xlu0 %1659
    %1661 = vmax.xlane.f32.xlu0 %v1643
    %v1662 = vpop.xlane.xlu0 %1661
    %1663 = vmax.xlane.f32.xlu0 %v1644
    %v1664 = vpop.xlane.xlu0 %1663
    %1665 = vmax.xlane.f32.xlu0 %v1645
    %v1666 = vpop.xlane.xlu0 %1665
    %1667 = vmax.xlane.f32.xlu0 %v1646
    %v1668 = vpop.xlane.xlu0 %1667
    %1669 = vmax.xlane.f32.xlu0 %v1647
    %v1670 = vpop.xlane.xlu0 %1669
    %1671 = vmax.xlane.f32.xlu0 %v1648
    %v1672 = vpop.xlane.xlu0 %1671
    %1673 = vmax.xlane.f32.xlu0 %v1649
    %v1674 = vpop.xlane.xlu0 %1673
    %1675 = vmax.xlane.f32.xlu0 %v1650
    %v1676 = vpop.xlane.xlu0 %1675
    %1677 = vmax.xlane.f32.xlu0 %v1651
    %v1678 = vpop.xlane.xlu0 %1677
    %1679 = vmax.xlane.f32.xlu0 %v1652
    %v1680 = vpop.xlane.xlu0 %1679
    %1681 = vmax.xlane.f32.xlu0 %v1653
    %v1682 = vpop.xlane.xlu0 %1681
    %1683 = vmax.xlane.f32.xlu0 %v1654
    %v1684 = vpop.xlane.xlu0 %1683
    %1685 = vmax.xlane.f32.xlu0 %v1655
    %v1686 = vpop.xlane.xlu0 %1685
    %1687 = vmax.xlane.f32.xlu0 %v1656
    %v1688 = vpop.xlane.xlu0 %1687
    %v1689 = vsub.f32 %v1641, %v1658
    %v1690 = vsub.f32 %v1642, %v1660
    %v1691 = vsub.f32 %v1643, %v1662
    %v1692 = vsub.f32 %v1644, %v1664
    %v1693 = vsub.f32 %v1645, %v1666
    %v1694 = vsub.f32 %v1646, %v1668
    %v1695 = vsub.f32 %v1647, %v1670
    %v1696 = vsub.f32 %v1648, %v1672
    %v1697 = vsub.f32 %v1649, %v1674
    %v1698 = vsub.f32 %v1650, %v1676
    %v1699 = vsub.f32 %v1651, %v1678
    %v1700 = vsub.f32 %v1652, %v1680
    %v1701 = vsub.f32 %v1653, %v1682
    %v1702 = vsub.f32 %v1654, %v1684
    %v1703 = vsub.f32 %v1655, %v1686
    %v1704 = vsub.f32 %v1656, %v1688
    %v1705 = vmul.f32 %v1689, 1.442695
    %v1706 = vpow.pop %v1705
    %v1707 = vmul.f32 %v1690, 1.442695
    %v1708 = vpow.pop %v1707
    %v1709 = vmul.f32 %v1691, 1.442695
    %v1710 = vpow.pop %v1709
    %v1711 = vmul.f32 %v1692, 1.442695
    %v1712 = vpow.pop %v1711
    %v1713 = vmul.f32 %v1693, 1.442695
    %v1714 = vpow.pop %v1713
    %v1715 = vmul.f32 %v1694, 1.442695
    %v1716 = vpow.pop %v1715
    %v1717 = vmul.f32 %v1695, 1.442695
    %v1718 = vpow.pop %v1717
    %v1719 = vmul.f32 %v1696, 1.442695
    %v1720 = vpow.pop %v1719
    %v1721 = vmul.f32 %v1697, 1.442695
    %v1722 = vpow.pop %v1721
    %v1723 = vmul.f32 %v1698, 1.442695
    %v1724 = vpow.pop %v1723
    %v1725 = vmul.f32 %v1699, 1.442695
    %v1726 = vpow.pop %v1725
    %v1727 = vmul.f32 %v1700, 1.442695
    %v1728 = vpow.pop %v1727
    %v1729 = vmul.f32 %v1701, 1.442695
    %v1730 = vpow.pop %v1729
    %v1731 = vmul.f32 %v1702, 1.442695
    %v1732 = vpow.pop %v1731
    %v1733 = vmul.f32 %v1703, 1.442695
    %v1734 = vpow.pop %v1733
    %v1735 = vmul.f32 %v1704, 1.442695
    %v1736 = vpow.pop %v1735
    %1737 = vadd.xlane.f32.xlu0 %v1706
    %v1738 = vpop.xlane.xlu0 %1737
    %1739 = vadd.xlane.f32.xlu0 %v1708
    %v1740 = vpop.xlane.xlu0 %1739
    %1741 = vadd.xlane.f32.xlu0 %v1710
    %v1742 = vpop.xlane.xlu0 %1741
    %1743 = vadd.xlane.f32.xlu0 %v1712
    %v1744 = vpop.xlane.xlu0 %1743
    %1745 = vadd.xlane.f32.xlu0 %v1714
    %v1746 = vpop.xlane.xlu0 %1745
    %1747 = vadd.xlane.f32.xlu0 %v1716
    %v1748 = vpop.xlane.xlu0 %1747
    %1749 = vadd.xlane.f32.xlu0 %v1718
    %v1750 = vpop.xlane.xlu0 %1749
    %1751 = vadd.xlane.f32.xlu0 %v1720
    %v1752 = vpop.xlane.xlu0 %1751
    %1753 = vadd.xlane.f32.xlu0 %v1722
    %v1754 = vpop.xlane.xlu0 %1753
    %1755 = vadd.xlane.f32.xlu0 %v1724
    %v1756 = vpop.xlane.xlu0 %1755
    %1757 = vadd.xlane.f32.xlu0 %v1726
    %v1758 = vpop.xlane.xlu0 %1757
    %1759 = vadd.xlane.f32.xlu0 %v1728
    %v1760 = vpop.xlane.xlu0 %1759
    %1761 = vadd.xlane.f32.xlu0 %v1730
    %v1762 = vpop.xlane.xlu0 %1761
    %1763 = vadd.xlane.f32.xlu0 %v1732
    %v1764 = vpop.xlane.xlu0 %1763
    %1765 = vadd.xlane.f32.xlu0 %v1734
    %v1766 = vpop.xlane.xlu0 %1765
    %1767 = vadd.xlane.f32.xlu0 %v1736
    %v1768 = vpop.xlane.xlu0 %1767
    %v1769 = vrcp.pop %v1738
    %v1770 = vrcp.pop %v1740
    %v1771 = vrcp.pop %v1742
    %v1772 = vrcp.pop %v1744
    %v1773 = vrcp.pop %v1746
    %v1774 = vrcp.pop %v1748
    %v1775 = vrcp.pop %v1750
    %v1776 = vrcp.pop %v1752
    %v1777 = vrcp.pop %v1754
    %v1778 = vrcp.pop %v1756
    %v1779 = vrcp.pop %v1758
    %v1780 = vrcp.pop %v1760
    %v1781 = vrcp.pop %v1762
    %v1782 = vrcp.pop %v1764
    %v1783 = vrcp.pop %v1766
    %v1784 = vrcp.pop %v1768
    %v1785 = vmul.f32 %v1706, %v1769
    %v1786 = vmul.f32 %v1708, %v1770
    %v1787 = vmul.f32 %v1710, %v1771
    %v1788 = vmul.f32 %v1712, %v1772
    %v1789 = vmul.f32 %v1714, %v1773
    %v1790 = vmul.f32 %v1716, %v1774
    %v1791 = vmul.f32 %v1718, %v1775
    %v1792 = vmul.f32 %v1720, %v1776
    %v1793 = vmul.f32 %v1722, %v1777
    %v1794 = vmul.f32 %v1724, %v1778
    %v1795 = vmul.f32 %v1726, %v1779
    %v1796 = vmul.f32 %v1728, %v1780
    %v1797 = vmul.f32 %v1730, %v1781
    %v1798 = vmul.f32 %v1732, %v1782
    %v1799 = vmul.f32 %v1734, %v1783
    %v1800 = vmul.f32 %v1736, %v1784
    %v1801 = vpack.c.bf16 %v1786, %v1785
    %v1802 = vpack.c.bf16 %v1788, %v1787
    %v1803 = vpack.c.bf16 %v1790, %v1789
    %v1804 = vpack.c.bf16 %v1792, %v1791
    %v1805 = vpack.c.bf16 %v1794, %v1793
    %v1806 = vpack.c.bf16 %v1796, %v1795
    %v1807 = vpack.c.bf16 %v1798, %v1797
    %v1808 = vpack.c.bf16 %v1800, %v1799
    %1809 = vmatprep.subr.bf16.mxu0 0
    %1810 = vmatpush1.bf16.xpose.msra.mxu0 %v1801
    %1811 = vmatprep.subr.bf16.mxu0 0
    %1812 = vmatpush1.bf16.xpose.msra.mxu0 %v1802
    %1813 = vmatprep.subr.bf16.mxu0 0
    %1814 = vmatpush1.bf16.xpose.msra.mxu0 %v1803
    %1815 = vmatprep.subr.bf16.mxu0 0
    %1816 = vmatpush1.bf16.xpose.msra.mxu0 %v1804
    %1817 = vmatprep.subr.bf16.mxu0 0
    %1818 = vmatpush1.bf16.xpose.msra.mxu0 %v1805
    %1819 = vmatprep.subr.bf16.mxu0 0
    %1820 = vmatpush1.bf16.xpose.msra.mxu0 %v1806
    %1821 = vmatprep.subr.bf16.mxu0 0
    %1822 = vmatpush1.bf16.xpose.msra.mxu0 %v1807
    %1823 = vmatprep.subr.bf16.mxu0 0
    %1824 = vmatpush1.bf16.xpose.msra.mxu0 %v1808
    %1825 = vmatprep.subr.bf16.mxu0 0
    %1826 = vmatpush1.bf16.xpose.msra.mxu0 0
    %1827 = vmatprep.subr.bf16.mxu0 0
    %1828 = vmatpush1.bf16.xpose.msra.mxu0 0
    %1829 = vmatprep.subr.bf16.mxu0 0
    %1830 = vmatpush1.bf16.xpose.msra.mxu0 0
    %1831 = vmatprep.subr.bf16.mxu0 0
    %1832 = vmatpush1.bf16.xpose.msra.mxu0 0
    %1833 = vmatprep.subr.bf16.mxu0 0
    %1834 = vmatpush1.bf16.xpose.msra.mxu0 0
    %1835 = vmatprep.subr.bf16.mxu0 0
    %1836 = vmatpush1.bf16.xpose.msra.mxu0 0
    %1837 = vmatprep.subr.bf16.mxu0 0
    %1838 = vmatpush1.bf16.xpose.msra.mxu0 0
    %1839 = vmatprep.subr.bf16.mxu0 0
    %1840 = vmatpush1.bf16.xpose.msra.mxu0 0
    %1841 = vmatprep.mubr.bf16.mxu0 0
    %1842 = vmatmul.mubr.bf16.gmra.mrb[0].mxu0 %v1465
    %v1843 = vpop.f32.mrb[0].mxu0
    %v1844 = vadd.f32 0.0, %v1843
    %v1845 = vpop.f32.mrb[0].mxu0
    %v1846 = vpop.f32.mrb[0].mxu0
    %v1847 = vpop.f32.mrb[0].mxu0
    %1848 = vdwg.mxu0
    %s1849 = scalar_lea.vmem [#allocation3], 8
    %1850 = vst [vmem:[%s1849] sm:$0xff] %v1844
    %s1851 = scalar_lea.vmem [#allocation2], 24
    %v1852 = vld [vmem:[%s1851] sm:$0xff]
    %v1853 = vld [vmem:[%s1851 + $0x8] sm:$0xf]
    %1854 = vxpose.xlu0.c.b16.start [1/8] %v1852, 128
    %1855 = vxpose.xlu0.c.b16.cont [2/8] 0, 128
    %1856 = vxpose.xlu0.c.b16.cont [3/8] 0, 128
    %1857 = vxpose.xlu0.c.b16.cont [4/8] 0, 128
    %1858 = vxpose.xlu0.c.b16.cont [5/8] 0, 128
    %1859 = vxpose.xlu0.c.b16.cont [6/8] 0, 128
    %1860 = vxpose.xlu0.c.b16.cont [7/8] 0, 128
    %1861 = vxpose.xlu0.c.b16.end [8/8] 0, 128
    %v1862 = vpop.trf.xlu0
    %v1863 = vpop.trf.xlu0
    %v1864 = vpop.trf.xlu0
    %v1865 = vpop.trf.xlu0
    %v1866 = vpop.trf.xlu0
    %v1867 = vpop.trf.xlu0
    %v1868 = vpop.trf.xlu0
    %v1869 = vpop.trf.xlu0
    %v1871 = vunpack.c.h.b16 %v1852
    %v1872 = vpack.c.b16 %v1871, %v1871
    %v1874 = vsel %vm1096, %v1862, 0
    %v1877 = vsel %vm1096, %v1863, 0
    %v1880 = vsel %vm1096, %v1864, 0
    %v1883 = vsel %vm1096, %v1865, 0
    %v1886 = vsel %vm1096, %v1866, 0
    %v1889 = vsel %vm1096, %v1867, 0
    %v1892 = vsel %vm1096, %v1868, 0
    %v1895 = vsel %vm1096, %v1869, 0
    %v1898 = vsel %vm1121, %v1872, 0
    %1900 = vmatprep.subr.bf16.mxu0 0
    %1901 = vmatpush1.bf16.msra.mxu0 %v1898
    %1902 = vmatprep.subr.bf16.mxu0 0
    %1903 = vmatpush1.bf16.msra.mxu0 0
    %1904 = vmatprep.subr.bf16.mxu0 0
    %1905 = vmatpush1.bf16.msra.mxu0 0
    %1906 = vmatprep.subr.bf16.mxu0 0
    %1907 = vmatpush1.bf16.msra.mxu0 0
    %1908 = vmatprep.subr.bf16.mxu0 0
    %1909 = vmatpush1.bf16.msra.mxu0 0
    %1910 = vmatprep.subr.bf16.mxu0 0
    %1911 = vmatpush1.bf16.msra.mxu0 0
    %1912 = vmatprep.subr.bf16.mxu0 0
    %1913 = vmatpush1.bf16.msra.mxu0 0
    %1914 = vmatprep.subr.bf16.mxu0 0
    %1915 = vmatpush1.bf16.msra.mxu0 0
    %1916 = vmatprep.subr.bf16.mxu0 0
    %1917 = vmatpush1.bf16.msra.mxu0 0
    %1918 = vmatprep.subr.bf16.mxu0 0
    %1919 = vmatpush1.bf16.msra.mxu0 0
    %1920 = vmatprep.subr.bf16.mxu0 0
    %1921 = vmatpush1.bf16.msra.mxu0 0
    %1922 = vmatprep.subr.bf16.mxu0 0
    %1923 = vmatpush1.bf16.msra.mxu0 0
    %1924 = vmatprep.subr.bf16.mxu0 0
    %1925 = vmatpush1.bf16.msra.mxu0 0
    %1926 = vmatprep.subr.bf16.mxu0 0
    %1927 = vmatpush1.bf16.msra.mxu0 0
    %1928 = vmatprep.subr.bf16.mxu0 0
    %1929 = vmatpush1.bf16.msra.mxu0 0
    %1930 = vmatprep.subr.bf16.mxu0 0
    %1931 = vmatpush1.bf16.msra.mxu0 0
    %1932 = vmatprep.mubr.bf16.mxu0 0
    %1933 = vmatmul.mubr.bf16.gmra.mrb[0].mxu0 %v1874
    %v1934 = vpop.f32.mrb[0].mxu0
    %v1935 = vadd.f32 0.0, %v1934
    %v1936 = vpop.f32.mrb[0].mxu0
    %v1937 = vpop.f32.mrb[0].mxu0
    %v1938 = vadd.f32 0.0, %v1937
    %v1939 = vpop.f32.mrb[0].mxu0
    %1940 = vmatprep.mubr.bf16.mxu0 0
    %1941 = vmatmul.mubr.bf16.gmra.mrb[0].mxu0 %v1877
    %v1942 = vpop.f32.mrb[0].mxu0
    %v1943 = vadd.f32 0.0, %v1942
    %v1944 = vpop.f32.mrb[0].mxu0
    %v1945 = vpop.f32.mrb[0].mxu0
    %v1946 = vadd.f32 0.0, %v1945
    %v1947 = vpop.f32.mrb[0].mxu0
    %1948 = vmatprep.mubr.bf16.mxu0 0
    %1949 = vmatmul.mubr.bf16.gmra.mrb[0].mxu0 %v1880
    %v1950 = vpop.f32.mrb[0].mxu0
    %v1951 = vadd.f32 0.0, %v1950
    %v1952 = vpop.f32.mrb[0].mxu0
    %v1953 = vpop.f32.mrb[0].mxu0
    %v1954 = vadd.f32 0.0, %v1953
    %v1955 = vpop.f32.mrb[0].mxu0
    %1956 = vmatprep.mubr.bf16.mxu0 0
    %1957 = vmatmul.mubr.bf16.gmra.mrb[0].mxu0 %v1883
    %v1958 = vpop.f32.mrb[0].mxu0
    %v1959 = vadd.f32 0.0, %v1958
    %v1960 = vpop.f32.mrb[0].mxu0
    %v1961 = vpop.f32.mrb[0].mxu0
    %v1962 = vadd.f32 0.0, %v1961
    %v1963 = vpop.f32.mrb[0].mxu0
    %1964 = vmatprep.mubr.bf16.mxu0 0
    %1965 = vmatmul.mubr.bf16.gmra.mrb[0].mxu0 %v1886
    %v1966 = vpop.f32.mrb[0].mxu0
    %v1967 = vadd.f32 0.0, %v1966
    %v1968 = vpop.f32.mrb[0].mxu0
    %v1969 = vpop.f32.mrb[0].mxu0
    %v1970 = vadd.f32 0.0, %v1969
    %v1971 = vpop.f32.mrb[0].mxu0
    %1972 = vmatprep.mubr.bf16.mxu0 0
    %1973 = vmatmul.mubr.bf16.gmra.mrb[0].mxu0 %v1889
    %v1974 = vpop.f32.mrb[0].mxu0
    %v1975 = vadd.f32 0.0, %v1974
    %v1976 = vpop.f32.mrb[0].mxu0
    %v1977 = vpop.f32.mrb[0].mxu0
    %v1978 = vadd.f32 0.0, %v1977
    %v1979 = vpop.f32.mrb[0].mxu0
    %1980 = vmatprep.mubr.bf16.mxu0 0
    %1981 = vmatmul.mubr.bf16.gmra.mrb[0].mxu0 %v1892
    %v1982 = vpop.f32.mrb[0].mxu0
    %v1983 = vadd.f32 0.0, %v1982
    %v1984 = vpop.f32.mrb[0].mxu0
    %v1985 = vpop.f32.mrb[0].mxu0
    %v1986 = vadd.f32 0.0, %v1985
    %v1987 = vpop.f32.mrb[0].mxu0
    %1988 = vmatprep.mubr.bf16.mxu0 0
    %1989 = vmatmul.mubr.bf16.gmra.mrb[0].mxu0 %v1895
    %v1990 = vpop.f32.mrb[0].mxu0
    %v1991 = vadd.f32 0.0, %v1990
    %v1992 = vpop.f32.mrb[0].mxu0
    %v1993 = vpop.f32.mrb[0].mxu0
    %v1994 = vadd.f32 0.0, %v1993
    %v1995 = vpop.f32.mrb[0].mxu0
    %1996 = vdwg.mxu0
    %v1997 = vmul.f32 %v1935, 0.17677669
    %v1998 = vmul.f32 %v1938, 0.17677669
    %v1999 = vmul.f32 %v1943, 0.17677669
    %v2000 = vmul.f32 %v1946, 0.17677669
    %v2001 = vmul.f32 %v1951, 0.17677669
    %v2002 = vmul.f32 %v1954, 0.17677669
    %v2003 = vmul.f32 %v1959, 0.17677669
    %v2004 = vmul.f32 %v1962, 0.17677669
    %v2005 = vmul.f32 %v1967, 0.17677669
    %v2006 = vmul.f32 %v1970, 0.17677669
    %v2007 = vmul.f32 %v1975, 0.17677669
    %v2008 = vmul.f32 %v1978, 0.17677669
    %v2009 = vmul.f32 %v1983, 0.17677669
    %v2010 = vmul.f32 %v1986, 0.17677669
    %v2011 = vmul.f32 %v1991, 0.17677669
    %v2012 = vmul.f32 %v1994, 0.17677669
    %v2013 = vld [vmem:[#allocation9] sm:$0xff]
    %v2014 = vld [vmem:[#allocation9 + $0x8] sm:$0xff]
    %v2015 = vld [vmem:[#allocation9 + $0x10] sm:$0xff]
    %v2016 = vld [vmem:[#allocation9 + $0x18] sm:$0xff]
    %v2017 = vld [vmem:[#allocation9 + $0x20] sm:$0xff]
    %v2018 = vld [vmem:[#allocation9 + $0x28] sm:$0xff]
    %v2019 = vld [vmem:[#allocation9 + $0x30] sm:$0xff]
    %v2020 = vld [vmem:[#allocation9 + $0x38] sm:$0xff]
    %v2021 = vld [vmem:[#allocation9 + $0x40] sm:$0xff]
    %v2022 = vld [vmem:[#allocation9 + $0x48] sm:$0xff]
    %v2023 = vld [vmem:[#allocation9 + $0x50] sm:$0xff]
    %v2024 = vld [vmem:[#allocation9 + $0x58] sm:$0xff]
    %v2025 = vld [vmem:[#allocation9 + $0x60] sm:$0xff]
    %v2026 = vld [vmem:[#allocation9 + $0x68] sm:$0xff]
    %v2027 = vld [vmem:[#allocation9 + $0x70] sm:$0xff]
    %v2028 = vld [vmem:[#allocation9 + $0x78] sm:$0xff]
    %v2029 = vadd.f32 %v1997, %v2013
    %v2030 = vadd.f32 %v1998, %v2014
    %v2031 = vadd.f32 %v1999, %v2015
    %v2032 = vadd.f32 %v2000, %v2016
    %v2033 = vadd.f32 %v2001, %v2017
    %v2034 = vadd.f32 %v2002, %v2018
    %v2035 = vadd.f32 %v2003, %v2019
    %v2036 = vadd.f32 %v2004, %v2020
    %v2037 = vadd.f32 %v2005, %v2021
    %v2038 = vadd.f32 %v2006, %v2022
    %v2039 = vadd.f32 %v2007, %v2023
    %v2040 = vadd.f32 %v2008, %v2024
    %v2041 = vadd.f32 %v2009, %v2025
    %v2042 = vadd.f32 %v2010, %v2026
    %v2043 = vadd.f32 %v2011, %v2027
    %v2044 = vadd.f32 %v2012, %v2028
    %2045 = vmax.xlane.f32.xlu0 %v2029
    %v2046 = vpop.xlane.xlu0 %2045
    %2047 = vmax.xlane.f32.xlu0 %v2030
    %v2048 = vpop.xlane.xlu0 %2047
    %2049 = vmax.xlane.f32.xlu0 %v2031
    %v2050 = vpop.xlane.xlu0 %2049
    %2051 = vmax.xlane.f32.xlu0 %v2032
    %v2052 = vpop.xlane.xlu0 %2051
    %2053 = vmax.xlane.f32.xlu0 %v2033
    %v2054 = vpop.xlane.xlu0 %2053
    %2055 = vmax.xlane.f32.xlu0 %v2034
    %v2056 = vpop.xlane.xlu0 %2055
    %2057 = vmax.xlane.f32.xlu0 %v2035
    %v2058 = vpop.xlane.xlu0 %2057
    %2059 = vmax.xlane.f32.xlu0 %v2036
    %v2060 = vpop.xlane.xlu0 %2059
    %2061 = vmax.xlane.f32.xlu0 %v2037
    %v2062 = vpop.xlane.xlu0 %2061
    %2063 = vmax.xlane.f32.xlu0 %v2038
    %v2064 = vpop.xlane.xlu0 %2063
    %2065 = vmax.xlane.f32.xlu0 %v2039
    %v2066 = vpop.xlane.xlu0 %2065
    %2067 = vmax.xlane.f32.xlu0 %v2040
    %v2068 = vpop.xlane.xlu0 %2067
    %2069 = vmax.xlane.f32.xlu0 %v2041
    %v2070 = vpop.xlane.xlu0 %2069
    %2071 = vmax.xlane.f32.xlu0 %v2042
    %v2072 = vpop.xlane.xlu0 %2071
    %2073 = vmax.xlane.f32.xlu0 %v2043
    %v2074 = vpop.xlane.xlu0 %2073
    %2075 = vmax.xlane.f32.xlu0 %v2044
    %v2076 = vpop.xlane.xlu0 %2075
    %v2077 = vsub.f32 %v2029, %v2046
    %v2078 = vsub.f32 %v2030, %v2048
    %v2079 = vsub.f32 %v2031, %v2050
    %v2080 = vsub.f32 %v2032, %v2052
    %v2081 = vsub.f32 %v2033, %v2054
    %v2082 = vsub.f32 %v2034, %v2056
    %v2083 = vsub.f32 %v2035, %v2058
    %v2084 = vsub.f32 %v2036, %v2060
    %v2085 = vsub.f32 %v2037, %v2062
    %v2086 = vsub.f32 %v2038, %v2064
    %v2087 = vsub.f32 %v2039, %v2066
    %v2088 = vsub.f32 %v2040, %v2068
    %v2089 = vsub.f32 %v2041, %v2070
    %v2090 = vsub.f32 %v2042, %v2072
    %v2091 = vsub.f32 %v2043, %v2074
    %v2092 = vsub.f32 %v2044, %v2076
    %v2093 = vmul.f32 %v2077, 1.442695
    %v2094 = vpow.pop %v2093
    %v2095 = vmul.f32 %v2078, 1.442695
    %v2096 = vpow.pop %v2095
    %v2097 = vmul.f32 %v2079, 1.442695
    %v2098 = vpow.pop %v2097
    %v2099 = vmul.f32 %v2080, 1.442695
    %v2100 = vpow.pop %v2099
    %v2101 = vmul.f32 %v2081, 1.442695
    %v2102 = vpow.pop %v2101
    %v2103 = vmul.f32 %v2082, 1.442695
    %v2104 = vpow.pop %v2103
    %v2105 = vmul.f32 %v2083, 1.442695
    %v2106 = vpow.pop %v2105
    %v2107 = vmul.f32 %v2084, 1.442695
    %v2108 = vpow.pop %v2107
    %v2109 = vmul.f32 %v2085, 1.442695
    %v2110 = vpow.pop %v2109
    %v2111 = vmul.f32 %v2086, 1.442695
    %v2112 = vpow.pop %v2111
    %v2113 = vmul.f32 %v2087, 1.442695
    %v2114 = vpow.pop %v2113
    %v2115 = vmul.f32 %v2088, 1.442695
    %v2116 = vpow.pop %v2115
    %v2117 = vmul.f32 %v2089, 1.442695
    %v2118 = vpow.pop %v2117
    %v2119 = vmul.f32 %v2090, 1.442695
    %v2120 = vpow.pop %v2119
    %v2121 = vmul.f32 %v2091, 1.442695
    %v2122 = vpow.pop %v2121
    %v2123 = vmul.f32 %v2092, 1.442695
    %v2124 = vpow.pop %v2123
    %2125 = vadd.xlane.f32.xlu0 %v2094
    %v2126 = vpop.xlane.xlu0 %2125
    %2127 = vadd.xlane.f32.xlu0 %v2096
    %v2128 = vpop.xlane.xlu0 %2127
    %2129 = vadd.xlane.f32.xlu0 %v2098
    %v2130 = vpop.xlane.xlu0 %2129
    %2131 = vadd.xlane.f32.xlu0 %v2100
    %v2132 = vpop.xlane.xlu0 %2131
    %2133 = vadd.xlane.f32.xlu0 %v2102
    %v2134 = vpop.xlane.xlu0 %2133
    %2135 = vadd.xlane.f32.xlu0 %v2104
    %v2136 = vpop.xlane.xlu0 %2135
    %2137 = vadd.xlane.f32.xlu0 %v2106
    %v2138 = vpop.xlane.xlu0 %2137
    %2139 = vadd.xlane.f32.xlu0 %v2108
    %v2140 = vpop.xlane.xlu0 %2139
    %2141 = vadd.xlane.f32.xlu0 %v2110
    %v2142 = vpop.xlane.xlu0 %2141
    %2143 = vadd.xlane.f32.xlu0 %v2112
    %v2144 = vpop.xlane.xlu0 %2143
    %2145 = vadd.xlane.f32.xlu0 %v2114
    %v2146 = vpop.xlane.xlu0 %2145
    %2147 = vadd.xlane.f32.xlu0 %v2116
    %v2148 = vpop.xlane.xlu0 %2147
    %2149 = vadd.xlane.f32.xlu0 %v2118
    %v2150 = vpop.xlane.xlu0 %2149
    %2151 = vadd.xlane.f32.xlu0 %v2120
    %v2152 = vpop.xlane.xlu0 %2151
    %2153 = vadd.xlane.f32.xlu0 %v2122
    %v2154 = vpop.xlane.xlu0 %2153
    %2155 = vadd.xlane.f32.xlu0 %v2124
    %v2156 = vpop.xlane.xlu0 %2155
    %v2157 = vrcp.pop %v2126
    %v2158 = vrcp.pop %v2128
    %v2159 = vrcp.pop %v2130
    %v2160 = vrcp.pop %v2132
    %v2161 = vrcp.pop %v2134
    %v2162 = vrcp.pop %v2136
    %v2163 = vrcp.pop %v2138
    %v2164 = vrcp.pop %v2140
    %v2165 = vrcp.pop %v2142
    %v2166 = vrcp.pop %v2144
    %v2167 = vrcp.pop %v2146
    %v2168 = vrcp.pop %v2148
    %v2169 = vrcp.pop %v2150
    %v2170 = vrcp.pop %v2152
    %v2171 = vrcp.pop %v2154
    %v2172 = vrcp.pop %v2156
    %v2173 = vmul.f32 %v2094, %v2157
    %v2174 = vmul.f32 %v2096, %v2158
    %v2175 = vmul.f32 %v2098, %v2159
    %v2176 = vmul.f32 %v2100, %v2160
    %v2177 = vmul.f32 %v2102, %v2161
    %v2178 = vmul.f32 %v2104, %v2162
    %v2179 = vmul.f32 %v2106, %v2163
    %v2180 = vmul.f32 %v2108, %v2164
    %v2181 = vmul.f32 %v2110, %v2165
    %v2182 = vmul.f32 %v2112, %v2166
    %v2183 = vmul.f32 %v2114, %v2167
    %v2184 = vmul.f32 %v2116, %v2168
    %v2185 = vmul.f32 %v2118, %v2169
    %v2186 = vmul.f32 %v2120, %v2170
    %v2187 = vmul.f32 %v2122, %v2171
    %v2188 = vmul.f32 %v2124, %v2172
    %v2189 = vpack.c.bf16 %v2174, %v2173
    %v2190 = vpack.c.bf16 %v2176, %v2175
    %v2191 = vpack.c.bf16 %v2178, %v2177
    %v2192 = vpack.c.bf16 %v2180, %v2179
    %v2193 = vpack.c.bf16 %v2182, %v2181
    %v2194 = vpack.c.bf16 %v2184, %v2183
    %v2195 = vpack.c.bf16 %v2186, %v2185
    %v2196 = vpack.c.bf16 %v2188, %v2187
    %2197 = vmatprep.subr.bf16.mxu0 0
    %2198 = vmatpush1.bf16.xpose.msra.mxu0 %v2189
    %2199 = vmatprep.subr.bf16.mxu0 0
    %2200 = vmatpush1.bf16.xpose.msra.mxu0 %v2190
    %2201 = vmatprep.subr.bf16.mxu0 0
    %2202 = vmatpush1.bf16.xpose.msra.mxu0 %v2191
    %2203 = vmatprep.subr.bf16.mxu0 0
    %2204 = vmatpush1.bf16.xpose.msra.mxu0 %v2192
    %2205 = vmatprep.subr.bf16.mxu0 0
    %2206 = vmatpush1.bf16.xpose.msra.mxu0 %v2193
    %2207 = vmatprep.subr.bf16.mxu0 0
    %2208 = vmatpush1.bf16.xpose.msra.mxu0 %v2194
    %2209 = vmatprep.subr.bf16.mxu0 0
    %2210 = vmatpush1.bf16.xpose.msra.mxu0 %v2195
    %2211 = vmatprep.subr.bf16.mxu0 0
    %2212 = vmatpush1.bf16.xpose.msra.mxu0 %v2196
    %2213 = vmatprep.subr.bf16.mxu0 0
    %2214 = vmatpush1.bf16.xpose.msra.mxu0 0
    %2215 = vmatprep.subr.bf16.mxu0 0
    %2216 = vmatpush1.bf16.xpose.msra.mxu0 0
    %2217 = vmatprep.subr.bf16.mxu0 0
    %2218 = vmatpush1.bf16.xpose.msra.mxu0 0
    %2219 = vmatprep.subr.bf16.mxu0 0
    %2220 = vmatpush1.bf16.xpose.msra.mxu0 0
    %2221 = vmatprep.subr.bf16.mxu0 0
    %2222 = vmatpush1.bf16.xpose.msra.mxu0 0
    %2223 = vmatprep.subr.bf16.mxu0 0
    %2224 = vmatpush1.bf16.xpose.msra.mxu0 0
    %2225 = vmatprep.subr.bf16.mxu0 0
    %2226 = vmatpush1.bf16.xpose.msra.mxu0 0
    %2227 = vmatprep.subr.bf16.mxu0 0
    %2228 = vmatpush1.bf16.xpose.msra.mxu0 0
    %2229 = vmatprep.mubr.bf16.mxu0 0
    %2230 = vmatmul.mubr.bf16.gmra.mrb[0].mxu0 %v1853
    %v2231 = vpop.f32.mrb[0].mxu0
    %v2232 = vadd.f32 0.0, %v2231
    %v2233 = vpop.f32.mrb[0].mxu0
    %v2234 = vpop.f32.mrb[0].mxu0
    %v2235 = vpop.f32.mrb[0].mxu0
    %2236 = vdwg.mxu0
    %s2237 = scalar_lea.vmem [#allocation3], 16
    %2238 = vst [vmem:[%s2237] sm:$0xff] %v2232
    %s2239 = scalar_lea.vmem [#allocation2], 36
    %v2240 = vld [vmem:[%s2239] sm:$0xff]
    %v2241 = vld [vmem:[%s2239 + $0x8] sm:$0xf]
    %2242 = vxpose.xlu0.c.b16.start [1/8] %v2240, 128
    %2243 = vxpose.xlu0.c.b16.cont [2/8] 0, 128
    %2244 = vxpose.xlu0.c.b16.cont [3/8] 0, 128
    %2245 = vxpose.xlu0.c.b16.cont [4/8] 0, 128
    %2246 = vxpose.xlu0.c.b16.cont [5/8] 0, 128
    %2247 = vxpose.xlu0.c.b16.cont [6/8] 0, 128
    %2248 = vxpose.xlu0.c.b16.cont [7/8] 0, 128
    %2249 = vxpose.xlu0.c.b16.end [8/8] 0, 128
    %v2250 = vpop.trf.xlu0
    %v2251 = vpop.trf.xlu0
    %v2252 = vpop.trf.xlu0
    %v2253 = vpop.trf.xlu0
    %v2254 = vpop.trf.xlu0
    %v2255 = vpop.trf.xlu0
    %v2256 = vpop.trf.xlu0
    %v2257 = vpop.trf.xlu0
    %v2259 = vunpack.c.h.b16 %v2240
    %v2260 = vpack.c.b16 %v2259, %v2259
    %v2262 = vsel %vm1096, %v2250, 0
    %v2265 = vsel %vm1096, %v2251, 0
    %v2268 = vsel %vm1096, %v2252, 0
    %v2271 = vsel %vm1096, %v2253, 0
    %v2274 = vsel %vm1096, %v2254, 0
    %v2277 = vsel %vm1096, %v2255, 0
    %v2280 = vsel %vm1096, %v2256, 0
    %v2283 = vsel %vm1096, %v2257, 0
    %v2286 = vsel %vm1121, %v2260, 0
    %2288 = vmatprep.subr.bf16.mxu0 0
    %2289 = vmatpush1.bf16.msra.mxu0 %v2286
    %2290 = vmatprep.subr.bf16.mxu0 0
    %2291 = vmatpush1.bf16.msra.mxu0 0
    %2292 = vmatprep.subr.bf16.mxu0 0
    %2293 = vmatpush1.bf16.msra.mxu0 0
    %2294 = vmatprep.subr.bf16.mxu0 0
    %2295 = vmatpush1.bf16.msra.mxu0 0
    %2296 = vmatprep.subr.bf16.mxu0 0
    %2297 = vmatpush1.bf16.msra.mxu0 0
    %2298 = vmatprep.subr.bf16.mxu0 0
    %2299 = vmatpush1.bf16.msra.mxu0 0
    %2300 = vmatprep.subr.bf16.mxu0 0
    %2301 = vmatpush1.bf16.msra.mxu0 0
    %2302 = vmatprep.subr.bf16.mxu0 0
    %2303 = vmatpush1.bf16.msra.mxu0 0
    %2304 = vmatprep.subr.bf16.mxu0 0
    %2305 = vmatpush1.bf16.msra.mxu0 0
    %2306 = vmatprep.subr.bf16.mxu0 0
    %2307 = vmatpush1.bf16.msra.mxu0 0
    %2308 = vmatprep.subr.bf16.mxu0 0
    %2309 = vmatpush1.bf16.msra.mxu0 0
    %2310 = vmatprep.subr.bf16.mxu0 0
    %2311 = vmatpush1.bf16.msra.mxu0 0
    %2312 = vmatprep.subr.bf16.mxu0 0
    %2313 = vmatpush1.bf16.msra.mxu0 0
    %2314 = vmatprep.subr.bf16.mxu0 0
    %2315 = vmatpush1.bf16.msra.mxu0 0
    %2316 = vmatprep.subr.bf16.mxu0 0
    %2317 = vmatpush1.bf16.msra.mxu0 0
    %2318 = vmatprep.subr.bf16.mxu0 0
    %2319 = vmatpush1.bf16.msra.mxu0 0
    %2320 = vmatprep.mubr.bf16.mxu0 0
    %2321 = vmatmul.mubr.bf16.gmra.mrb[0].mxu0 %v2262
    %v2322 = vpop.f32.mrb[0].mxu0
    %v2323 = vadd.f32 0.0, %v2322
    %v2324 = vpop.f32.mrb[0].mxu0
    %v2325 = vpop.f32.mrb[0].mxu0
    %v2326 = vadd.f32 0.0, %v2325
    %v2327 = vpop.f32.mrb[0].mxu0
    %2328 = vmatprep.mubr.bf16.mxu0 0
    %2329 = vmatmul.mubr.bf16.gmra.mrb[0].mxu0 %v2265
    %v2330 = vpop.f32.mrb[0].mxu0
    %v2331 = vadd.f32 0.0, %v2330
    %v2332 = vpop.f32.mrb[0].mxu0
    %v2333 = vpop.f32.mrb[0].mxu0
    %v2334 = vadd.f32 0.0, %v2333
    %v2335 = vpop.f32.mrb[0].mxu0
    %2336 = vmatprep.mubr.bf16.mxu0 0
    %2337 = vmatmul.mubr.bf16.gmra.mrb[0].mxu0 %v2268
    %v2338 = vpop.f32.mrb[0].mxu0
    %v2339 = vadd.f32 0.0, %v2338
    %v2340 = vpop.f32.mrb[0].mxu0
    %v2341 = vpop.f32.mrb[0].mxu0
    %v2342 = vadd.f32 0.0, %v2341
    %v2343 = vpop.f32.mrb[0].mxu0
    %2344 = vmatprep.mubr.bf16.mxu0 0
    %2345 = vmatmul.mubr.bf16.gmra.mrb[0].mxu0 %v2271
    %v2346 = vpop.f32.mrb[0].mxu0
    %v2347 = vadd.f32 0.0, %v2346
    %v2348 = vpop.f32.mrb[0].mxu0
    %v2349 = vpop.f32.mrb[0].mxu0
    %v2350 = vadd.f32 0.0, %v2349
    %v2351 = vpop.f32.mrb[0].mxu0
    %2352 = vmatprep.mubr.bf16.mxu0 0
    %2353 = vmatmul.mubr.bf16.gmra.mrb[0].mxu0 %v2274
    %v2354 = vpop.f32.mrb[0].mxu0
    %v2355 = vadd.f32 0.0, %v2354
    %v2356 = vpop.f32.mrb[0].mxu0
    %v2357 = vpop.f32.mrb[0].mxu0
    %v2358 = vadd.f32 0.0, %v2357
    %v2359 = vpop.f32.mrb[0].mxu0
    %2360 = vmatprep.mubr.bf16.mxu0 0
    %2361 = vmatmul.mubr.bf16.gmra.mrb[0].mxu0 %v2277
    %v2362 = vpop.f32.mrb[0].mxu0
    %v2363 = vadd.f32 0.0, %v2362
    %v2364 = vpop.f32.mrb[0].mxu0
    %v2365 = vpop.f32.mrb[0].mxu0
    %v2366 = vadd.f32 0.0, %v2365
    %v2367 = vpop.f32.mrb[0].mxu0
    %2368 = vmatprep.mubr.bf16.mxu0 0
    %2369 = vmatmul.mubr.bf16.gmra.mrb[0].mxu0 %v2280
    %v2370 = vpop.f32.mrb[0].mxu0
    %v2371 = vadd.f32 0.0, %v2370
    %v2372 = vpop.f32.mrb[0].mxu0
    %v2373 = vpop.f32.mrb[0].mxu0
    %v2374 = vadd.f32 0.0, %v2373
    %v2375 = vpop.f32.mrb[0].mxu0
    %2376 = vmatprep.mubr.bf16.mxu0 0
    %2377 = vmatmul.mubr.bf16.gmra.mrb[0].mxu0 %v2283
    %v2378 = vpop.f32.mrb[0].mxu0
    %v2379 = vadd.f32 0.0, %v2378
    %v2380 = vpop.f32.mrb[0].mxu0
    %v2381 = vpop.f32.mrb[0].mxu0
    %v2382 = vadd.f32 0.0, %v2381
    %v2383 = vpop.f32.mrb[0].mxu0
    %2384 = vdwg.mxu0
    %v2385 = vmul.f32 %v2323, 0.17677669
    %v2386 = vmul.f32 %v2326, 0.17677669
    %v2387 = vmul.f32 %v2331, 0.17677669
    %v2388 = vmul.f32 %v2334, 0.17677669
    %v2389 = vmul.f32 %v2339, 0.17677669
    %v2390 = vmul.f32 %v2342, 0.17677669
    %v2391 = vmul.f32 %v2347, 0.17677669
    %v2392 = vmul.f32 %v2350, 0.17677669
    %v2393 = vmul.f32 %v2355, 0.17677669
    %v2394 = vmul.f32 %v2358, 0.17677669
    %v2395 = vmul.f32 %v2363, 0.17677669
    %v2396 = vmul.f32 %v2366, 0.17677669
    %v2397 = vmul.f32 %v2371, 0.17677669
    %v2398 = vmul.f32 %v2374, 0.17677669
    %v2399 = vmul.f32 %v2379, 0.17677669
    %v2400 = vmul.f32 %v2382, 0.17677669
    %v2401 = vld [vmem:[#allocation9] sm:$0xff]
    %v2402 = vld [vmem:[#allocation9 + $0x8] sm:$0xff]
    %v2403 = vld [vmem:[#allocation9 + $0x10] sm:$0xff]
    %v2404 = vld [vmem:[#allocation9 + $0x18] sm:$0xff]
    %v2405 = vld [vmem:[#allocation9 + $0x20] sm:$0xff]
    %v2406 = vld [vmem:[#allocation9 + $0x28] sm:$0xff]
    %v2407 = vld [vmem:[#allocation9 + $0x30] sm:$0xff]
    %v2408 = vld [vmem:[#allocation9 + $0x38] sm:$0xff]
    %v2409 = vld [vmem:[#allocation9 + $0x40] sm:$0xff]
    %v2410 = vld [vmem:[#allocation9 + $0x48] sm:$0xff]
    %v2411 = vld [vmem:[#allocation9 + $0x50] sm:$0xff]
    %v2412 = vld [vmem:[#allocation9 + $0x58] sm:$0xff]
    %v2413 = vld [vmem:[#allocation9 + $0x60] sm:$0xff]
    %v2414 = vld [vmem:[#allocation9 + $0x68] sm:$0xff]
    %v2415 = vld [vmem:[#allocation9 + $0x70] sm:$0xff]
    %v2416 = vld [vmem:[#allocation9 + $0x78] sm:$0xff]
    %v2417 = vadd.f32 %v2385, %v2401
    %v2418 = vadd.f32 %v2386, %v2402
    %v2419 = vadd.f32 %v2387, %v2403
    %v2420 = vadd.f32 %v2388, %v2404
    %v2421 = vadd.f32 %v2389, %v2405
    %v2422 = vadd.f32 %v2390, %v2406
    %v2423 = vadd.f32 %v2391, %v2407
    %v2424 = vadd.f32 %v2392, %v2408
    %v2425 = vadd.f32 %v2393, %v2409
    %v2426 = vadd.f32 %v2394, %v2410
    %v2427 = vadd.f32 %v2395, %v2411
    %v2428 = vadd.f32 %v2396, %v2412
    %v2429 = vadd.f32 %v2397, %v2413
    %v2430 = vadd.f32 %v2398, %v2414
    %v2431 = vadd.f32 %v2399, %v2415
    %v2432 = vadd.f32 %v2400, %v2416
    %2433 = vmax.xlane.f32.xlu0 %v2417
    %v2434 = vpop.xlane.xlu0 %2433
    %2435 = vmax.xlane.f32.xlu0 %v2418
    %v2436 = vpop.xlane.xlu0 %2435
    %2437 = vmax.xlane.f32.xlu0 %v2419
    %v2438 = vpop.xlane.xlu0 %2437
    %2439 = vmax.xlane.f32.xlu0 %v2420
    %v2440 = vpop.xlane.xlu0 %2439
    %2441 = vmax.xlane.f32.xlu0 %v2421
    %v2442 = vpop.xlane.xlu0 %2441
    %2443 = vmax.xlane.f32.xlu0 %v2422
    %v2444 = vpop.xlane.xlu0 %2443
    %2445 = vmax.xlane.f32.xlu0 %v2423
    %v2446 = vpop.xlane.xlu0 %2445
    %2447 = vmax.xlane.f32.xlu0 %v2424
    %v2448 = vpop.xlane.xlu0 %2447
    %2449 = vmax.xlane.f32.xlu0 %v2425
    %v2450 = vpop.xlane.xlu0 %2449
    %2451 = vmax.xlane.f32.xlu0 %v2426
    %v2452 = vpop.xlane.xlu0 %2451
    %2453 = vmax.xlane.f32.xlu0 %v2427
    %v2454 = vpop.xlane.xlu0 %2453
    %2455 = vmax.xlane.f32.xlu0 %v2428
    %v2456 = vpop.xlane.xlu0 %2455
    %2457 = vmax.xlane.f32.xlu0 %v2429
    %v2458 = vpop.xlane.xlu0 %2457
    %2459 = vmax.xlane.f32.xlu0 %v2430
    %v2460 = vpop.xlane.xlu0 %2459
    %2461 = vmax.xlane.f32.xlu0 %v2431
    %v2462 = vpop.xlane.xlu0 %2461
    %2463 = vmax.xlane.f32.xlu0 %v2432
    %v2464 = vpop.xlane.xlu0 %2463
    %v2465 = vsub.f32 %v2417, %v2434
    %v2466 = vsub.f32 %v2418, %v2436
    %v2467 = vsub.f32 %v2419, %v2438
    %v2468 = vsub.f32 %v2420, %v2440
    %v2469 = vsub.f32 %v2421, %v2442
    %v2470 = vsub.f32 %v2422, %v2444
    %v2471 = vsub.f32 %v2423, %v2446
    %v2472 = vsub.f32 %v2424, %v2448
    %v2473 = vsub.f32 %v2425, %v2450
    %v2474 = vsub.f32 %v2426, %v2452
    %v2475 = vsub.f32 %v2427, %v2454
    %v2476 = vsub.f32 %v2428, %v2456
    %v2477 = vsub.f32 %v2429, %v2458
    %v2478 = vsub.f32 %v2430, %v2460
    %v2479 = vsub.f32 %v2431, %v2462
    %v2480 = vsub.f32 %v2432, %v2464
    %v2481 = vmul.f32 %v2465, 1.442695
    %v2482 = vpow.pop %v2481
    %v2483 = vmul.f32 %v2466, 1.442695
    %v2484 = vpow.pop %v2483
    %v2485 = vmul.f32 %v2467, 1.442695
    %v2486 = vpow.pop %v2485
    %v2487 = vmul.f32 %v2468, 1.442695
    %v2488 = vpow.pop %v2487
    %v2489 = vmul.f32 %v2469, 1.442695
    %v2490 = vpow.pop %v2489
    %v2491 = vmul.f32 %v2470, 1.442695
    %v2492 = vpow.pop %v2491
    %v2493 = vmul.f32 %v2471, 1.442695
    %v2494 = vpow.pop %v2493
    %v2495 = vmul.f32 %v2472, 1.442695
    %v2496 = vpow.pop %v2495
    %v2497 = vmul.f32 %v2473, 1.442695
    %v2498 = vpow.pop %v2497
    %v2499 = vmul.f32 %v2474, 1.442695
    %v2500 = vpow.pop %v2499
    %v2501 = vmul.f32 %v2475, 1.442695
    %v2502 = vpow.pop %v2501
    %v2503 = vmul.f32 %v2476, 1.442695
    %v2504 = vpow.pop %v2503
    %v2505 = vmul.f32 %v2477, 1.442695
    %v2506 = vpow.pop %v2505
    %v2507 = vmul.f32 %v2478, 1.442695
    %v2508 = vpow.pop %v2507
    %v2509 = vmul.f32 %v2479, 1.442695
    %v2510 = vpow.pop %v2509
    %v2511 = vmul.f32 %v2480, 1.442695
    %v2512 = vpow.pop %v2511
    %2513 = vadd.xlane.f32.xlu0 %v2482
    %v2514 = vpop.xlane.xlu0 %2513
    %2515 = vadd.xlane.f32.xlu0 %v2484
    %v2516 = vpop.xlane.xlu0 %2515
    %2517 = vadd.xlane.f32.xlu0 %v2486
    %v2518 = vpop.xlane.xlu0 %2517
    %2519 = vadd.xlane.f32.xlu0 %v2488
    %v2520 = vpop.xlane.xlu0 %2519
    %2521 = vadd.xlane.f32.xlu0 %v2490
    %v2522 = vpop.xlane.xlu0 %2521
    %2523 = vadd.xlane.f32.xlu0 %v2492
    %v2524 = vpop.xlane.xlu0 %2523
    %2525 = vadd.xlane.f32.xlu0 %v2494
    %v2526 = vpop.xlane.xlu0 %2525
    %2527 = vadd.xlane.f32.xlu0 %v2496
    %v2528 = vpop.xlane.xlu0 %2527
    %2529 = vadd.xlane.f32.xlu0 %v2498
    %v2530 = vpop.xlane.xlu0 %2529
    %2531 = vadd.xlane.f32.xlu0 %v2500
    %v2532 = vpop.xlane.xlu0 %2531
    %2533 = vadd.xlane.f32.xlu0 %v2502
    %v2534 = vpop.xlane.xlu0 %2533
    %2535 = vadd.xlane.f32.xlu0 %v2504
    %v2536 = vpop.xlane.xlu0 %2535
    %2537 = vadd.xlane.f32.xlu0 %v2506
    %v2538 = vpop.xlane.xlu0 %2537
    %2539 = vadd.xlane.f32.xlu0 %v2508
    %v2540 = vpop.xlane.xlu0 %2539
    %2541 = vadd.xlane.f32.xlu0 %v2510
    %v2542 = vpop.xlane.xlu0 %2541
    %2543 = vadd.xlane.f32.xlu0 %v2512
    %v2544 = vpop.xlane.xlu0 %2543
    %v2545 = vrcp.pop %v2514
    %v2546 = vrcp.pop %v2516
    %v2547 = vrcp.pop %v2518
    %v2548 = vrcp.pop %v2520
    %v2549 = vrcp.pop %v2522
    %v2550 = vrcp.pop %v2524
    %v2551 = vrcp.pop %v2526
    %v2552 = vrcp.pop %v2528
    %v2553 = vrcp.pop %v2530
    %v2554 = vrcp.pop %v2532
    %v2555 = vrcp.pop %v2534
    %v2556 = vrcp.pop %v2536
    %v2557 = vrcp.pop %v2538
    %v2558 = vrcp.pop %v2540
    %v2559 = vrcp.pop %v2542
    %v2560 = vrcp.pop %v2544
    %v2561 = vmul.f32 %v2482, %v2545
    %v2562 = vmul.f32 %v2484, %v2546
    %v2563 = vmul.f32 %v2486, %v2547
    %v2564 = vmul.f32 %v2488, %v2548
    %v2565 = vmul.f32 %v2490, %v2549
    %v2566 = vmul.f32 %v2492, %v2550
    %v2567 = vmul.f32 %v2494, %v2551
    %v2568 = vmul.f32 %v2496, %v2552
    %v2569 = vmul.f32 %v2498, %v2553
    %v2570 = vmul.f32 %v2500, %v2554
    %v2571 = vmul.f32 %v2502, %v2555
    %v2572 = vmul.f32 %v2504, %v2556
    %v2573 = vmul.f32 %v2506, %v2557
    %v2574 = vmul.f32 %v2508, %v2558
    %v2575 = vmul.f32 %v2510, %v2559
    %v2576 = vmul.f32 %v2512, %v2560
    %v2577 = vpack.c.bf16 %v2562, %v2561
    %v2578 = vpack.c.bf16 %v2564, %v2563
    %v2579 = vpack.c.bf16 %v2566, %v2565
    %v2580 = vpack.c.bf16 %v2568, %v2567
    %v2581 = vpack.c.bf16 %v2570, %v2569
    %v2582 = vpack.c.bf16 %v2572, %v2571
    %v2583 = vpack.c.bf16 %v2574, %v2573
    %v2584 = vpack.c.bf16 %v2576, %v2575
    %2585 = vmatprep.subr.bf16.mxu0 0
    %2586 = vmatpush1.bf16.xpose.msra.mxu0 %v2577
    %2587 = vmatprep.subr.bf16.mxu0 0
    %2588 = vmatpush1.bf16.xpose.msra.mxu0 %v2578
    %2589 = vmatprep.subr.bf16.mxu0 0
    %2590 = vmatpush1.bf16.xpose.msra.mxu0 %v2579
    %2591 = vmatprep.subr.bf16.mxu0 0
    %2592 = vmatpush1.bf16.xpose.msra.mxu0 %v2580
    %2593 = vmatprep.subr.bf16.mxu0 0
    %2594 = vmatpush1.bf16.xpose.msra.mxu0 %v2581
    %2595 = vmatprep.subr.bf16.mxu0 0
    %2596 = vmatpush1.bf16.xpose.msra.mxu0 %v2582
    %2597 = vmatprep.subr.bf16.mxu0 0
    %2598 = vmatpush1.bf16.xpose.msra.mxu0 %v2583
    %2599 = vmatprep.subr.bf16.mxu0 0
    %2600 = vmatpush1.bf16.xpose.msra.mxu0 %v2584
    %2601 = vmatprep.subr.bf16.mxu0 0
    %2602 = vmatpush1.bf16.xpose.msra.mxu0 0
    %2603 = vmatprep.subr.bf16.mxu0 0
    %2604 = vmatpush1.bf16.xpose.msra.mxu0 0
    %2605 = vmatprep.subr.bf16.mxu0 0
    %2606 = vmatpush1.bf16.xpose.msra.mxu0 0
    %2607 = vmatprep.subr.bf16.mxu0 0
    %2608 = vmatpush1.bf16.xpose.msra.mxu0 0
    %2609 = vmatprep.subr.bf16.mxu0 0
    %2610 = vmatpush1.bf16.xpose.msra.mxu0 0
    %2611 = vmatprep.subr.bf16.mxu0 0
    %2612 = vmatpush1.bf16.xpose.msra.mxu0 0
    %2613 = vmatprep.subr.bf16.mxu0 0
    %2614 = vmatpush1.bf16.xpose.msra.mxu0 0
    %2615 = vmatprep.subr.bf16.mxu0 0
    %2616 = vmatpush1.bf16.xpose.msra.mxu0 0
    %2617 = vmatprep.mubr.bf16.mxu0 0
    %2618 = vmatmul.mubr.bf16.gmra.mrb[0].mxu0 %v2241
    %v2619 = vpop.f32.mrb[0].mxu0
    %v2620 = vadd.f32 0.0, %v2619
    %v2621 = vpop.f32.mrb[0].mxu0
    %v2622 = vpop.f32.mrb[0].mxu0
    %v2623 = vpop.f32.mrb[0].mxu0
    %2624 = vdwg.mxu0
    %s2625 = scalar_lea.vmem [#allocation3], 24
    %2626 = vst [vmem:[%s2625] sm:$0xff] %v2620
    %s2627 = scalar_lea.vmem [#allocation2], 48
    %v2628 = vld [vmem:[%s2627] sm:$0xff]
    %v2629 = vld [vmem:[%s2627 + $0x8] sm:$0xf]
    %2630 = vxpose.xlu0.c.b16.start [1/8] %v2628, 128
    %2631 = vxpose.xlu0.c.b16.cont [2/8] 0, 128
    %2632 = vxpose.xlu0.c.b16.cont [3/8] 0, 128
    %2633 = vxpose.xlu0.c.b16.cont [4/8] 0, 128
    %2634 = vxpose.xlu0.c.b16.cont [5/8] 0, 128
    %2635 = vxpose.xlu0.c.b16.cont [6/8] 0, 128
    %2636 = vxpose.xlu0.c.b16.cont [7/8] 0, 128
    %2637 = vxpose.xlu0.c.b16.end [8/8] 0, 128
    %v2638 = vpop.trf.xlu0
    %v2639 = vpop.trf.xlu0
    %v2640 = vpop.trf.xlu0
    %v2641 = vpop.trf.xlu0
    %v2642 = vpop.trf.xlu0
    %v2643 = vpop.trf.xlu0
    %v2644 = vpop.trf.xlu0
    %v2645 = vpop.trf.xlu0
    %v2647 = vunpack.c.h.b16 %v2628
    %v2648 = vpack.c.b16 %v2647, %v2647
    %v2650 = vsel %vm1096, %v2638, 0
    %v2653 = vsel %vm1096, %v2639, 0
    %v2656 = vsel %vm1096, %v2640, 0
    %v2659 = vsel %vm1096, %v2641, 0
    %v2662 = vsel %vm1096, %v2642, 0
    %v2665 = vsel %vm1096, %v2643, 0
    %v2668 = vsel %vm1096, %v2644, 0
    %v2671 = vsel %vm1096, %v2645, 0
    %v2674 = vsel %vm1121, %v2648, 0
    %2676 = vmatprep.subr.bf16.mxu0 0
    %2677 = vmatpush1.bf16.msra.mxu0 %v2674
    %2678 = vmatprep.subr.bf16.mxu0 0
    %2679 = vmatpush1.bf16.msra.mxu0 0
    %2680 = vmatprep.subr.bf16.mxu0 0
    %2681 = vmatpush1.bf16.msra.mxu0 0
    %2682 = vmatprep.subr.bf16.mxu0 0
    %2683 = vmatpush1.bf16.msra.mxu0 0
    %2684 = vmatprep.subr.bf16.mxu0 0
    %2685 = vmatpush1.bf16.msra.mxu0 0
    %2686 = vmatprep.subr.bf16.mxu0 0
    %2687 = vmatpush1.bf16.msra.mxu0 0
    %2688 = vmatprep.subr.bf16.mxu0 0
    %2689 = vmatpush1.bf16.msra.mxu0 0
    %2690 = vmatprep.subr.bf16.mxu0 0
    %2691 = vmatpush1.bf16.msra.mxu0 0
    %2692 = vmatprep.subr.bf16.mxu0 0
    %2693 = vmatpush1.bf16.msra.mxu0 0
    %2694 = vmatprep.subr.bf16.mxu0 0
    %2695 = vmatpush1.bf16.msra.mxu0 0
    %2696 = vmatprep.subr.bf16.mxu0 0
    %2697 = vmatpush1.bf16.msra.mxu0 0
    %2698 = vmatprep.subr.bf16.mxu0 0
    %2699 = vmatpush1.bf16.msra.mxu0 0
    %2700 = vmatprep.subr.bf16.mxu0 0
    %2701 = vmatpush1.bf16.msra.mxu0 0
    %2702 = vmatprep.subr.bf16.mxu0 0
    %2703 = vmatpush1.bf16.msra.mxu0 0
    %2704 = vmatprep.subr.bf16.mxu0 0
    %2705 = vmatpush1.bf16.msra.mxu0 0
    %2706 = vmatprep.subr.bf16.mxu0 0
    %2707 = vmatpush1.bf16.msra.mxu0 0
    %2708 = vmatprep.mubr.bf16.mxu0 0
    %2709 = vmatmul.mubr.bf16.gmra.mrb[0].mxu0 %v2650
    %v2710 = vpop.f32.mrb[0].mxu0
    %v2711 = vadd.f32 0.0, %v2710
    %v2712 = vpop.f32.mrb[0].mxu0
    %v2713 = vpop.f32.mrb[0].mxu0
    %v2714 = vadd.f32 0.0, %v2713
    %v2715 = vpop.f32.mrb[0].mxu0
    %2716 = vmatprep.mubr.bf16.mxu0 0
    %2717 = vmatmul.mubr.bf16.gmra.mrb[0].mxu0 %v2653
    %v2718 = vpop.f32.mrb[0].mxu0
    %v2719 = vadd.f32 0.0, %v2718
    %v2720 = vpop.f32.mrb[0].mxu0
    %v2721 = vpop.f32.mrb[0].mxu0
    %v2722 = vadd.f32 0.0, %v2721
    %v2723 = vpop.f32.mrb[0].mxu0
    %2724 = vmatprep.mubr.bf16.mxu0 0
    %2725 = vmatmul.mubr.bf16.gmra.mrb[0].mxu0 %v2656
    %v2726 = vpop.f32.mrb[0].mxu0
    %v2727 = vadd.f32 0.0, %v2726
    %v2728 = vpop.f32.mrb[0].mxu0
    %v2729 = vpop.f32.mrb[0].mxu0
    %v2730 = vadd.f32 0.0, %v2729
    %v2731 = vpop.f32.mrb[0].mxu0
    %2732 = vmatprep.mubr.bf16.mxu0 0
    %2733 = vmatmul.mubr.bf16.gmra.mrb[0].mxu0 %v2659
    %v2734 = vpop.f32.mrb[0].mxu0
    %v2735 = vadd.f32 0.0, %v2734
    %v2736 = vpop.f32.mrb[0].mxu0
    %v2737 = vpop.f32.mrb[0].mxu0
    %v2738 = vadd.f32 0.0, %v2737
    %v2739 = vpop.f32.mrb[0].mxu0
    %2740 = vmatprep.mubr.bf16.mxu0 0
    %2741 = vmatmul.mubr.bf16.gmra.mrb[0].mxu0 %v2662
    %v2742 = vpop.f32.mrb[0].mxu0
    %v2743 = vadd.f32 0.0, %v2742
    %v2744 = vpop.f32.mrb[0].mxu0
    %v2745 = vpop.f32.mrb[0].mxu0
    %v2746 = vadd.f32 0.0, %v2745
    %v2747 = vpop.f32.mrb[0].mxu0
    %2748 = vmatprep.mubr.bf16.mxu0 0
    %2749 = vmatmul.mubr.bf16.gmra.mrb[0].mxu0 %v2665
    %v2750 = vpop.f32.mrb[0].mxu0
    %v2751 = vadd.f32 0.0, %v2750
    %v2752 = vpop.f32.mrb[0].mxu0
    %v2753 = vpop.f32.mrb[0].mxu0
    %v2754 = vadd.f32 0.0, %v2753
    %v2755 = vpop.f32.mrb[0].mxu0
    %2756 = vmatprep.mubr.bf16.mxu0 0
    %2757 = vmatmul.mubr.bf16.gmra.mrb[0].mxu0 %v2668
    %v2758 = vpop.f32.mrb[0].mxu0
    %v2759 = vadd.f32 0.0, %v2758
    %v2760 = vpop.f32.mrb[0].mxu0
    %v2761 = vpop.f32.mrb[0].mxu0
    %v2762 = vadd.f32 0.0, %v2761
    %v2763 = vpop.f32.mrb[0].mxu0
    %2764 = vmatprep.mubr.bf16.mxu0 0
    %2765 = vmatmul.mubr.bf16.gmra.mrb[0].mxu0 %v2671
    %v2766 = vpop.f32.mrb[0].mxu0
    %v2767 = vadd.f32 0.0, %v2766
    %v2768 = vpop.f32.mrb[0].mxu0
    %v2769 = vpop.f32.mrb[0].mxu0
    %v2770 = vadd.f32 0.0, %v2769
    %v2771 = vpop.f32.mrb[0].mxu0
    %2772 = vdwg.mxu0
    %v2773 = vmul.f32 %v2711, 0.17677669
    %v2774 = vmul.f32 %v2714, 0.17677669
    %v2775 = vmul.f32 %v2719, 0.17677669
    %v2776 = vmul.f32 %v2722, 0.17677669
    %v2777 = vmul.f32 %v2727, 0.17677669
    %v2778 = vmul.f32 %v2730, 0.17677669
    %v2779 = vmul.f32 %v2735, 0.17677669
    %v2780 = vmul.f32 %v2738, 0.17677669
    %v2781 = vmul.f32 %v2743, 0.17677669
    %v2782 = vmul.f32 %v2746, 0.17677669
    %v2783 = vmul.f32 %v2751, 0.17677669
    %v2784 = vmul.f32 %v2754, 0.17677669
    %v2785 = vmul.f32 %v2759, 0.17677669
    %v2786 = vmul.f32 %v2762, 0.17677669
    %v2787 = vmul.f32 %v2767, 0.17677669
    %v2788 = vmul.f32 %v2770, 0.17677669
    %v2789 = vld [vmem:[#allocation9] sm:$0xff]
    %v2790 = vld [vmem:[#allocation9 + $0x8] sm:$0xff]
    %v2791 = vld [vmem:[#allocation9 + $0x10] sm:$0xff]
    %v2792 = vld [vmem:[#allocation9 + $0x18] sm:$0xff]
    %v2793 = vld [vmem:[#allocation9 + $0x20] sm:$0xff]
    %v2794 = vld [vmem:[#allocation9 + $0x28] sm:$0xff]
    %v2795 = vld [vmem:[#allocation9 + $0x30] sm:$0xff]
    %v2796 = vld [vmem:[#allocation9 + $0x38] sm:$0xff]
    %v2797 = vld [vmem:[#allocation9 + $0x40] sm:$0xff]
    %v2798 = vld [vmem:[#allocation9 + $0x48] sm:$0xff]
    %v2799 = vld [vmem:[#allocation9 + $0x50] sm:$0xff]
    %v2800 = vld [vmem:[#allocation9 + $0x58] sm:$0xff]
    %v2801 = vld [vmem:[#allocation9 + $0x60] sm:$0xff]
    %v2802 = vld [vmem:[#allocation9 + $0x68] sm:$0xff]
    %v2803 = vld [vmem:[#allocation9 + $0x70] sm:$0xff]
    %v2804 = vld [vmem:[#allocation9 + $0x78] sm:$0xff]
    %v2805 = vadd.f32 %v2773, %v2789
    %v2806 = vadd.f32 %v2774, %v2790
    %v2807 = vadd.f32 %v2775, %v2791
    %v2808 = vadd.f32 %v2776, %v2792
    %v2809 = vadd.f32 %v2777, %v2793
    %v2810 = vadd.f32 %v2778, %v2794
    %v2811 = vadd.f32 %v2779, %v2795
    %v2812 = vadd.f32 %v2780, %v2796
    %v2813 = vadd.f32 %v2781, %v2797
    %v2814 = vadd.f32 %v2782, %v2798
    %v2815 = vadd.f32 %v2783, %v2799
    %v2816 = vadd.f32 %v2784, %v2800
    %v2817 = vadd.f32 %v2785, %v2801
    %v2818 = vadd.f32 %v2786, %v2802
    %v2819 = vadd.f32 %v2787, %v2803
    %v2820 = vadd.f32 %v2788, %v2804
    %2821 = vmax.xlane.f32.xlu0 %v2805
    %v2822 = vpop.xlane.xlu0 %2821
    %2823 = vmax.xlane.f32.xlu0 %v2806
    %v2824 = vpop.xlane.xlu0 %2823
    %2825 = vmax.xlane.f32.xlu0 %v2807
    %v2826 = vpop.xlane.xlu0 %2825
    %2827 = vmax.xlane.f32.xlu0 %v2808
    %v2828 = vpop.xlane.xlu0 %2827
    %2829 = vmax.xlane.f32.xlu0 %v2809
    %v2830 = vpop.xlane.xlu0 %2829
    %2831 = vmax.xlane.f32.xlu0 %v2810
    %v2832 = vpop.xlane.xlu0 %2831
    %2833 = vmax.xlane.f32.xlu0 %v2811
    %v2834 = vpop.xlane.xlu0 %2833
    %2835 = vmax.xlane.f32.xlu0 %v2812
    %v2836 = vpop.xlane.xlu0 %2835
    %2837 = vmax.xlane.f32.xlu0 %v2813
    %v2838 = vpop.xlane.xlu0 %2837
    %2839 = vmax.xlane.f32.xlu0 %v2814
    %v2840 = vpop.xlane.xlu0 %2839
    %2841 = vmax.xlane.f32.xlu0 %v2815
    %v2842 = vpop.xlane.xlu0 %2841
    %2843 = vmax.xlane.f32.xlu0 %v2816
    %v2844 = vpop.xlane.xlu0 %2843
    %2845 = vmax.xlane.f32.xlu0 %v2817
    %v2846 = vpop.xlane.xlu0 %2845
    %2847 = vmax.xlane.f32.xlu0 %v2818
    %v2848 = vpop.xlane.xlu0 %2847
    %2849 = vmax.xlane.f32.xlu0 %v2819
    %v2850 = vpop.xlane.xlu0 %2849
    %2851 = vmax.xlane.f32.xlu0 %v2820
    %v2852 = vpop.xlane.xlu0 %2851
    %v2853 = vsub.f32 %v2805, %v2822
    %v2854 = vsub.f32 %v2806, %v2824
    %v2855 = vsub.f32 %v2807, %v2826
    %v2856 = vsub.f32 %v2808, %v2828
    %v2857 = vsub.f32 %v2809, %v2830
    %v2858 = vsub.f32 %v2810, %v2832
    %v2859 = vsub.f32 %v2811, %v2834
    %v2860 = vsub.f32 %v2812, %v2836
    %v2861 = vsub.f32 %v2813, %v2838
    %v2862 = vsub.f32 %v2814, %v2840
    %v2863 = vsub.f32 %v2815, %v2842
    %v2864 = vsub.f32 %v2816, %v2844
    %v2865 = vsub.f32 %v2817, %v2846
    %v2866 = vsub.f32 %v2818, %v2848
    %v2867 = vsub.f32 %v2819, %v2850
    %v2868 = vsub.f32 %v2820, %v2852
    %v2869 = vmul.f32 %v2853, 1.442695
    %v2870 = vpow.pop %v2869
    %v2871 = vmul.f32 %v2854, 1.442695
    %v2872 = vpow.pop %v2871
    %v2873 = vmul.f32 %v2855, 1.442695
    %v2874 = vpow.pop %v2873
    %v2875 = vmul.f32 %v2856, 1.442695
    %v2876 = vpow.pop %v2875
    %v2877 = vmul.f32 %v2857, 1.442695
    %v2878 = vpow.pop %v2877
    %v2879 = vmul.f32 %v2858, 1.442695
    %v2880 = vpow.pop %v2879
    %v2881 = vmul.f32 %v2859, 1.442695
    %v2882 = vpow.pop %v2881
    %v2883 = vmul.f32 %v2860, 1.442695
    %v2884 = vpow.pop %v2883
    %v2885 = vmul.f32 %v2861, 1.442695
    %v2886 = vpow.pop %v2885
    %v2887 = vmul.f32 %v2862, 1.442695
    %v2888 = vpow.pop %v2887
    %v2889 = vmul.f32 %v2863, 1.442695
    %v2890 = vpow.pop %v2889
    %v2891 = vmul.f32 %v2864, 1.442695
    %v2892 = vpow.pop %v2891
    %v2893 = vmul.f32 %v2865, 1.442695
    %v2894 = vpow.pop %v2893
    %v2895 = vmul.f32 %v2866, 1.442695
    %v2896 = vpow.pop %v2895
    %v2897 = vmul.f32 %v2867, 1.442695
    %v2898 = vpow.pop %v2897
    %v2899 = vmul.f32 %v2868, 1.442695
    %v2900 = vpow.pop %v2899
    %2901 = vadd.xlane.f32.xlu0 %v2870
    %v2902 = vpop.xlane.xlu0 %2901
    %2903 = vadd.xlane.f32.xlu0 %v2872
    %v2904 = vpop.xlane.xlu0 %2903
    %2905 = vadd.xlane.f32.xlu0 %v2874
    %v2906 = vpop.xlane.xlu0 %2905
    %2907 = vadd.xlane.f32.xlu0 %v2876
    %v2908 = vpop.xlane.xlu0 %2907
    %2909 = vadd.xlane.f32.xlu0 %v2878
    %v2910 = vpop.xlane.xlu0 %2909
    %2911 = vadd.xlane.f32.xlu0 %v2880
    %v2912 = vpop.xlane.xlu0 %2911
    %2913 = vadd.xlane.f32.xlu0 %v2882
    %v2914 = vpop.xlane.xlu0 %2913
    %2915 = vadd.xlane.f32.xlu0 %v2884
    %v2916 = vpop.xlane.xlu0 %2915
    %2917 = vadd.xlane.f32.xlu0 %v2886
    %v2918 = vpop.xlane.xlu0 %2917
    %2919 = vadd.xlane.f32.xlu0 %v2888
    %v2920 = vpop.xlane.xlu0 %2919
    %2921 = vadd.xlane.f32.xlu0 %v2890
    %v2922 = vpop.xlane.xlu0 %2921
    %2923 = vadd.xlane.f32.xlu0 %v2892
    %v2924 = vpop.xlane.xlu0 %2923
    %2925 = vadd.xlane.f32.xlu0 %v2894
    %v2926 = vpop.xlane.xlu0 %2925
    %2927 = vadd.xlane.f32.xlu0 %v2896
    %v2928 = vpop.xlane.xlu0 %2927
    %2929 = vadd.xlane.f32.xlu0 %v2898
    %v2930 = vpop.xlane.xlu0 %2929
    %2931 = vadd.xlane.f32.xlu0 %v2900
    %v2932 = vpop.xlane.xlu0 %2931
    %v2933 = vrcp.pop %v2902
    %v2934 = vrcp.pop %v2904
    %v2935 = vrcp.pop %v2906
    %v2936 = vrcp.pop %v2908
    %v2937 = vrcp.pop %v2910
    %v2938 = vrcp.pop %v2912
    %v2939 = vrcp.pop %v2914
    %v2940 = vrcp.pop %v2916
    %v2941 = vrcp.pop %v2918
    %v2942 = vrcp.pop %v2920
    %v2943 = vrcp.pop %v2922
    %v2944 = vrcp.pop %v2924
    %v2945 = vrcp.pop %v2926
    %v2946 = vrcp.pop %v2928
    %v2947 = vrcp.pop %v2930
    %v2948 = vrcp.pop %v2932
    %v2949 = vmul.f32 %v2870, %v2933
    %v2950 = vmul.f32 %v2872, %v2934
    %v2951 = vmul.f32 %v2874, %v2935
    %v2952 = vmul.f32 %v2876, %v2936
    %v2953 = vmul.f32 %v2878, %v2937
    %v2954 = vmul.f32 %v2880, %v2938
    %v2955 = vmul.f32 %v2882, %v2939
    %v2956 = vmul.f32 %v2884, %v2940
    %v2957 = vmul.f32 %v2886, %v2941
    %v2958 = vmul.f32 %v2888, %v2942
    %v2959 = vmul.f32 %v2890, %v2943
    %v2960 = vmul.f32 %v2892, %v2944
    %v2961 = vmul.f32 %v2894, %v2945
    %v2962 = vmul.f32 %v2896, %v2946
    %v2963 = vmul.f32 %v2898, %v2947
    %v2964 = vmul.f32 %v2900, %v2948
    %v2965 = vpack.c.bf16 %v2950, %v2949
    %v2966 = vpack.c.bf16 %v2952, %v2951
    %v2967 = vpack.c.bf16 %v2954, %v2953
    %v2968 = vpack.c.bf16 %v2956, %v2955
    %v2969 = vpack.c.bf16 %v2958, %v2957
    %v2970 = vpack.c.bf16 %v2960, %v2959
    %v2971 = vpack.c.bf16 %v2962, %v2961
    %v2972 = vpack.c.bf16 %v2964, %v2963
    %2973 = vmatprep.subr.bf16.mxu0 0
    %2974 = vmatpush1.bf16.xpose.msra.mxu0 %v2965
    %2975 = vmatprep.subr.bf16.mxu0 0
    %2976 = vmatpush1.bf16.xpose.msra.mxu0 %v2966
    %2977 = vmatprep.subr.bf16.mxu0 0
    %2978 = vmatpush1.bf16.xpose.msra.mxu0 %v2967
    %2979 = vmatprep.subr.bf16.mxu0 0
    %2980 = vmatpush1.bf16.xpose.msra.mxu0 %v2968
    %2981 = vmatprep.subr.bf16.mxu0 0
    %2982 = vmatpush1.bf16.xpose.msra.mxu0 %v2969
    %2983 = vmatprep.subr.bf16.mxu0 0
    %2984 = vmatpush1.bf16.xpose.msra.mxu0 %v2970
    %2985 = vmatprep.subr.bf16.mxu0 0
    %2986 = vmatpush1.bf16.xpose.msra.mxu0 %v2971
    %2987 = vmatprep.subr.bf16.mxu0 0
    %2988 = vmatpush1.bf16.xpose.msra.mxu0 %v2972
    %2989 = vmatprep.subr.bf16.mxu0 0
    %2990 = vmatpush1.bf16.xpose.msra.mxu0 0
    %2991 = vmatprep.subr.bf16.mxu0 0
    %2992 = vmatpush1.bf16.xpose.msra.mxu0 0
    %2993 = vmatprep.subr.bf16.mxu0 0
    %2994 = vmatpush1.bf16.xpose.msra.mxu0 0
    %2995 = vmatprep.subr.bf16.mxu0 0
    %2996 = vmatpush1.bf16.xpose.msra.mxu0 0
    %2997 = vmatprep.subr.bf16.mxu0 0
    %2998 = vmatpush1.bf16.xpose.msra.mxu0 0
    %2999 = vmatprep.subr.bf16.mxu0 0
    %3000 = vmatpush1.bf16.xpose.msra.mxu0 0
    %3001 = vmatprep.subr.bf16.mxu0 0
    %3002 = vmatpush1.bf16.xpose.msra.mxu0 0
    %3003 = vmatprep.subr.bf16.mxu0 0
    %3004 = vmatpush1.bf16.xpose.msra.mxu0 0
    %3005 = vmatprep.mubr.bf16.mxu0 0
    %3006 = vmatmul.mubr.bf16.gmra.mrb[0].mxu0 %v2629
    %v3007 = vpop.f32.mrb[0].mxu0
    %v3008 = vadd.f32 0.0, %v3007
    %v3009 = vpop.f32.mrb[0].mxu0
    %v3010 = vpop.f32.mrb[0].mxu0
    %v3011 = vpop.f32.mrb[0].mxu0
    %3012 = vdwg.mxu0
    %s3013 = scalar_lea.vmem [#allocation3], 32
    %3014 = vst [vmem:[%s3013] sm:$0xff] %v3008
    %s3015 = scalar_lea.vmem [#allocation2], 60
    %v3016 = vld [vmem:[%s3015] sm:$0xff]
    %v3017 = vld [vmem:[%s3015 + $0x8] sm:$0xf]
    %3018 = vxpose.xlu0.c.b16.start [1/8] %v3016, 128
    %3019 = vxpose.xlu0.c.b16.cont [2/8] 0, 128
    %3020 = vxpose.xlu0.c.b16.cont [3/8] 0, 128
    %3021 = vxpose.xlu0.c.b16.cont [4/8] 0, 128
    %3022 = vxpose.xlu0.c.b16.cont [5/8] 0, 128
    %3023 = vxpose.xlu0.c.b16.cont [6/8] 0, 128
    %3024 = vxpose.xlu0.c.b16.cont [7/8] 0, 128
    %3025 = vxpose.xlu0.c.b16.end [8/8] 0, 128
    %v3026 = vpop.trf.xlu0
    %v3027 = vpop.trf.xlu0
    %v3028 = vpop.trf.xlu0
    %v3029 = vpop.trf.xlu0
    %v3030 = vpop.trf.xlu0
    %v3031 = vpop.trf.xlu0
    %v3032 = vpop.trf.xlu0
    %v3033 = vpop.trf.xlu0
    %v3035 = vunpack.c.h.b16 %v3016
    %v3036 = vpack.c.b16 %v3035, %v3035
    %v3038 = vsel %vm1096, %v3026, 0
    %v3041 = vsel %vm1096, %v3027, 0
    %v3044 = vsel %vm1096, %v3028, 0
    %v3047 = vsel %vm1096, %v3029, 0
    %v3050 = vsel %vm1096, %v3030, 0
    %v3053 = vsel %vm1096, %v3031, 0
    %v3056 = vsel %vm1096, %v3032, 0
    %v3059 = vsel %vm1096, %v3033, 0
    %v3062 = vsel %vm1121, %v3036, 0
    %3064 = vmatprep.subr.bf16.mxu0 0
    %3065 = vmatpush1.bf16.msra.mxu0 %v3062
    %3066 = vmatprep.subr.bf16.mxu0 0
    %3067 = vmatpush1.bf16.msra.mxu0 0
    %3068 = vmatprep.subr.bf16.mxu0 0
    %3069 = vmatpush1.bf16.msra.mxu0 0
    %3070 = vmatprep.subr.bf16.mxu0 0
    %3071 = vmatpush1.bf16.msra.mxu0 0
    %3072 = vmatprep.subr.bf16.mxu0 0
    %3073 = vmatpush1.bf16.msra.mxu0 0
    %3074 = vmatprep.subr.bf16.mxu0 0
    %3075 = vmatpush1.bf16.msra.mxu0 0
    %3076 = vmatprep.subr.bf16.mxu0 0
    %3077 = vmatpush1.bf16.msra.mxu0 0
    %3078 = vmatprep.subr.bf16.mxu0 0
    %3079 = vmatpush1.bf16.msra.mxu0 0
    %3080 = vmatprep.subr.bf16.mxu0 0
    %3081 = vmatpush1.bf16.msra.mxu0 0
    %3082 = vmatprep.subr.bf16.mxu0 0
    %3083 = vmatpush1.bf16.msra.mxu0 0
    %3084 = vmatprep.subr.bf16.mxu0 0
    %3085 = vmatpush1.bf16.msra.mxu0 0
    %3086 = vmatprep.subr.bf16.mxu0 0
    %3087 = vmatpush1.bf16.msra.mxu0 0
    %3088 = vmatprep.subr.bf16.mxu0 0
    %3089 = vmatpush1.bf16.msra.mxu0 0
    %3090 = vmatprep.subr.bf16.mxu0 0
    %3091 = vmatpush1.bf16.msra.mxu0 0
    %3092 = vmatprep.subr.bf16.mxu0 0
    %3093 = vmatpush1.bf16.msra.mxu0 0
    %3094 = vmatprep.subr.bf16.mxu0 0
    %3095 = vmatpush1.bf16.msra.mxu0 0
    %3096 = vmatprep.mubr.bf16.mxu0 0
    %3097 = vmatmul.mubr.bf16.gmra.mrb[0].mxu0 %v3038
    %v3098 = vpop.f32.mrb[0].mxu0
    %v3099 = vadd.f32 0.0, %v3098
    %v3100 = vpop.f32.mrb[0].mxu0
    %v3101 = vpop.f32.mrb[0].mxu0
    %v3102 = vadd.f32 0.0, %v3101
    %v3103 = vpop.f32.mrb[0].mxu0
    %3104 = vmatprep.mubr.bf16.mxu0 0
    %3105 = vmatmul.mubr.bf16.gmra.mrb[0].mxu0 %v3041
    %v3106 = vpop.f32.mrb[0].mxu0
    %v3107 = vadd.f32 0.0, %v3106
    %v3108 = vpop.f32.mrb[0].mxu0
    %v3109 = vpop.f32.mrb[0].mxu0
    %v3110 = vadd.f32 0.0, %v3109
    %v3111 = vpop.f32.mrb[0].mxu0
    %3112 = vmatprep.mubr.bf16.mxu0 0
    %3113 = vmatmul.mubr.bf16.gmra.mrb[0].mxu0 %v3044
    %v3114 = vpop.f32.mrb[0].mxu0
    %v3115 = vadd.f32 0.0, %v3114
    %v3116 = vpop.f32.mrb[0].mxu0
    %v3117 = vpop.f32.mrb[0].mxu0
    %v3118 = vadd.f32 0.0, %v3117
    %v3119 = vpop.f32.mrb[0].mxu0
    %3120 = vmatprep.mubr.bf16.mxu0 0
    %3121 = vmatmul.mubr.bf16.gmra.mrb[0].mxu0 %v3047
    %v3122 = vpop.f32.mrb[0].mxu0
    %v3123 = vadd.f32 0.0, %v3122
    %v3124 = vpop.f32.mrb[0].mxu0
    %v3125 = vpop.f32.mrb[0].mxu0
    %v3126 = vadd.f32 0.0, %v3125
    %v3127 = vpop.f32.mrb[0].mxu0
    %3128 = vmatprep.mubr.bf16.mxu0 0
    %3129 = vmatmul.mubr.bf16.gmra.mrb[0].mxu0 %v3050
    %v3130 = vpop.f32.mrb[0].mxu0
    %v3131 = vadd.f32 0.0, %v3130
    %v3132 = vpop.f32.mrb[0].mxu0
    %v3133 = vpop.f32.mrb[0].mxu0
    %v3134 = vadd.f32 0.0, %v3133
    %v3135 = vpop.f32.mrb[0].mxu0
    %3136 = vmatprep.mubr.bf16.mxu0 0
    %3137 = vmatmul.mubr.bf16.gmra.mrb[0].mxu0 %v3053
    %v3138 = vpop.f32.mrb[0].mxu0
    %v3139 = vadd.f32 0.0, %v3138
    %v3140 = vpop.f32.mrb[0].mxu0
    %v3141 = vpop.f32.mrb[0].mxu0
    %v3142 = vadd.f32 0.0, %v3141
    %v3143 = vpop.f32.mrb[0].mxu0
    %3144 = vmatprep.mubr.bf16.mxu0 0
    %3145 = vmatmul.mubr.bf16.gmra.mrb[0].mxu0 %v3056
    %v3146 = vpop.f32.mrb[0].mxu0
    %v3147 = vadd.f32 0.0, %v3146
    %v3148 = vpop.f32.mrb[0].mxu0
    %v3149 = vpop.f32.mrb[0].mxu0
    %v3150 = vadd.f32 0.0, %v3149
    %v3151 = vpop.f32.mrb[0].mxu0
    %3152 = vmatprep.mubr.bf16.mxu0 0
    %3153 = vmatmul.mubr.bf16.gmra.mrb[0].mxu0 %v3059
    %v3154 = vpop.f32.mrb[0].mxu0
    %v3155 = vadd.f32 0.0, %v3154
    %v3156 = vpop.f32.mrb[0].mxu0
    %v3157 = vpop.f32.mrb[0].mxu0
    %v3158 = vadd.f32 0.0, %v3157
    %v3159 = vpop.f32.mrb[0].mxu0
    %3160 = vdwg.mxu0
    %v3161 = vmul.f32 %v3099, 0.17677669
    %v3162 = vmul.f32 %v3102, 0.17677669
    %v3163 = vmul.f32 %v3107, 0.17677669
    %v3164 = vmul.f32 %v3110, 0.17677669
    %v3165 = vmul.f32 %v3115, 0.17677669
    %v3166 = vmul.f32 %v3118, 0.17677669
    %v3167 = vmul.f32 %v3123, 0.17677669
    %v3168 = vmul.f32 %v3126, 0.17677669
    %v3169 = vmul.f32 %v3131, 0.17677669
    %v3170 = vmul.f32 %v3134, 0.17677669
    %v3171 = vmul.f32 %v3139, 0.17677669
    %v3172 = vmul.f32 %v3142, 0.17677669
    %v3173 = vmul.f32 %v3147, 0.17677669
    %v3174 = vmul.f32 %v3150, 0.17677669
    %v3175 = vmul.f32 %v3155, 0.17677669
    %v3176 = vmul.f32 %v3158, 0.17677669
    %v3177 = vld [vmem:[#allocation9] sm:$0xff]
    %v3178 = vld [vmem:[#allocation9 + $0x8] sm:$0xff]
    %v3179 = vld [vmem:[#allocation9 + $0x10] sm:$0xff]
    %v3180 = vld [vmem:[#allocation9 + $0x18] sm:$0xff]
    %v3181 = vld [vmem:[#allocation9 + $0x20] sm:$0xff]
    %v3182 = vld [vmem:[#allocation9 + $0x28] sm:$0xff]
    %v3183 = vld [vmem:[#allocation9 + $0x30] sm:$0xff]
    %v3184 = vld [vmem:[#allocation9 + $0x38] sm:$0xff]
    %v3185 = vld [vmem:[#allocation9 + $0x40] sm:$0xff]
    %v3186 = vld [vmem:[#allocation9 + $0x48] sm:$0xff]
    %v3187 = vld [vmem:[#allocation9 + $0x50] sm:$0xff]
    %v3188 = vld [vmem:[#allocation9 + $0x58] sm:$0xff]
    %v3189 = vld [vmem:[#allocation9 + $0x60] sm:$0xff]
    %v3190 = vld [vmem:[#allocation9 + $0x68] sm:$0xff]
    %v3191 = vld [vmem:[#allocation9 + $0x70] sm:$0xff]
    %v3192 = vld [vmem:[#allocation9 + $0x78] sm:$0xff]
    %v3193 = vadd.f32 %v3161, %v3177
    %v3194 = vadd.f32 %v3162, %v3178
    %v3195 = vadd.f32 %v3163, %v3179
    %v3196 = vadd.f32 %v3164, %v3180
    %v3197 = vadd.f32 %v3165, %v3181
    %v3198 = vadd.f32 %v3166, %v3182
    %v3199 = vadd.f32 %v3167, %v3183
    %v3200 = vadd.f32 %v3168, %v3184
    %v3201 = vadd.f32 %v3169, %v3185
    %v3202 = vadd.f32 %v3170, %v3186
    %v3203 = vadd.f32 %v3171, %v3187
    %v3204 = vadd.f32 %v3172, %v3188
    %v3205 = vadd.f32 %v3173, %v3189
    %v3206 = vadd.f32 %v3174, %v3190
    %v3207 = vadd.f32 %v3175, %v3191
    %v3208 = vadd.f32 %v3176, %v3192
    %3209 = vmax.xlane.f32.xlu0 %v3193
    %v3210 = vpop.xlane.xlu0 %3209
    %3211 = vmax.xlane.f32.xlu0 %v3194
    %v3212 = vpop.xlane.xlu0 %3211
    %3213 = vmax.xlane.f32.xlu0 %v3195
    %v3214 = vpop.xlane.xlu0 %3213
    %3215 = vmax.xlane.f32.xlu0 %v3196
    %v3216 = vpop.xlane.xlu0 %3215
    %3217 = vmax.xlane.f32.xlu0 %v3197
    %v3218 = vpop.xlane.xlu0 %3217
    %3219 = vmax.xlane.f32.xlu0 %v3198
    %v3220 = vpop.xlane.xlu0 %3219
    %3221 = vmax.xlane.f32.xlu0 %v3199
    %v3222 = vpop.xlane.xlu0 %3221
    %3223 = vmax.xlane.f32.xlu0 %v3200
    %v3224 = vpop.xlane.xlu0 %3223
    %3225 = vmax.xlane.f32.xlu0 %v3201
    %v3226 = vpop.xlane.xlu0 %3225
    %3227 = vmax.xlane.f32.xlu0 %v3202
    %v3228 = vpop.xlane.xlu0 %3227
    %3229 = vmax.xlane.f32.xlu0 %v3203
    %v3230 = vpop.xlane.xlu0 %3229
    %3231 = vmax.xlane.f32.xlu0 %v3204
    %v3232 = vpop.xlane.xlu0 %3231
    %3233 = vmax.xlane.f32.xlu0 %v3205
    %v3234 = vpop.xlane.xlu0 %3233
    %3235 = vmax.xlane.f32.xlu0 %v3206
    %v3236 = vpop.xlane.xlu0 %3235
    %3237 = vmax.xlane.f32.xlu0 %v3207
    %v3238 = vpop.xlane.xlu0 %3237
    %3239 = vmax.xlane.f32.xlu0 %v3208
    %v3240 = vpop.xlane.xlu0 %3239
    %v3241 = vsub.f32 %v3193, %v3210
    %v3242 = vsub.f32 %v3194, %v3212
    %v3243 = vsub.f32 %v3195, %v3214
    %v3244 = vsub.f32 %v3196, %v3216
    %v3245 = vsub.f32 %v3197, %v3218
    %v3246 = vsub.f32 %v3198, %v3220
    %v3247 = vsub.f32 %v3199, %v3222
    %v3248 = vsub.f32 %v3200, %v3224
    %v3249 = vsub.f32 %v3201, %v3226
    %v3250 = vsub.f32 %v3202, %v3228
    %v3251 = vsub.f32 %v3203, %v3230
    %v3252 = vsub.f32 %v3204, %v3232
    %v3253 = vsub.f32 %v3205, %v3234
    %v3254 = vsub.f32 %v3206, %v3236
    %v3255 = vsub.f32 %v3207, %v3238
    %v3256 = vsub.f32 %v3208, %v3240
    %v3257 = vmul.f32 %v3241, 1.442695
    %v3258 = vpow.pop %v3257
    %v3259 = vmul.f32 %v3242, 1.442695
    %v3260 = vpow.pop %v3259
    %v3261 = vmul.f32 %v3243, 1.442695
    %v3262 = vpow.pop %v3261
    %v3263 = vmul.f32 %v3244, 1.442695
    %v3264 = vpow.pop %v3263
    %v3265 = vmul.f32 %v3245, 1.442695
    %v3266 = vpow.pop %v3265
    %v3267 = vmul.f32 %v3246, 1.442695
    %v3268 = vpow.pop %v3267
    %v3269 = vmul.f32 %v3247, 1.442695
    %v3270 = vpow.pop %v3269
    %v3271 = vmul.f32 %v3248, 1.442695
    %v3272 = vpow.pop %v3271
    %v3273 = vmul.f32 %v3249, 1.442695
    %v3274 = vpow.pop %v3273
    %v3275 = vmul.f32 %v3250, 1.442695
    %v3276 = vpow.pop %v3275
    %v3277 = vmul.f32 %v3251, 1.442695
    %v3278 = vpow.pop %v3277
    %v3279 = vmul.f32 %v3252, 1.442695
    %v3280 = vpow.pop %v3279
    %v3281 = vmul.f32 %v3253, 1.442695
    %v3282 = vpow.pop %v3281
    %v3283 = vmul.f32 %v3254, 1.442695
    %v3284 = vpow.pop %v3283
    %v3285 = vmul.f32 %v3255, 1.442695
    %v3286 = vpow.pop %v3285
    %v3287 = vmul.f32 %v3256, 1.442695
    %v3288 = vpow.pop %v3287
    %3289 = vadd.xlane.f32.xlu0 %v3258
    %v3290 = vpop.xlane.xlu0 %3289
    %3291 = vadd.xlane.f32.xlu0 %v3260
    %v3292 = vpop.xlane.xlu0 %3291
    %3293 = vadd.xlane.f32.xlu0 %v3262
    %v3294 = vpop.xlane.xlu0 %3293
    %3295 = vadd.xlane.f32.xlu0 %v3264
    %v3296 = vpop.xlane.xlu0 %3295
    %3297 = vadd.xlane.f32.xlu0 %v3266
    %v3298 = vpop.xlane.xlu0 %3297
    %3299 = vadd.xlane.f32.xlu0 %v3268
    %v3300 = vpop.xlane.xlu0 %3299
    %3301 = vadd.xlane.f32.xlu0 %v3270
    %v3302 = vpop.xlane.xlu0 %3301
    %3303 = vadd.xlane.f32.xlu0 %v3272
    %v3304 = vpop.xlane.xlu0 %3303
    %3305 = vadd.xlane.f32.xlu0 %v3274
    %v3306 = vpop.xlane.xlu0 %3305
    %3307 = vadd.xlane.f32.xlu0 %v3276
    %v3308 = vpop.xlane.xlu0 %3307
    %3309 = vadd.xlane.f32.xlu0 %v3278
    %v3310 = vpop.xlane.xlu0 %3309
    %3311 = vadd.xlane.f32.xlu0 %v3280
    %v3312 = vpop.xlane.xlu0 %3311
    %3313 = vadd.xlane.f32.xlu0 %v3282
    %v3314 = vpop.xlane.xlu0 %3313
    %3315 = vadd.xlane.f32.xlu0 %v3284
    %v3316 = vpop.xlane.xlu0 %3315
    %3317 = vadd.xlane.f32.xlu0 %v3286
    %v3318 = vpop.xlane.xlu0 %3317
    %3319 = vadd.xlane.f32.xlu0 %v3288
    %v3320 = vpop.xlane.xlu0 %3319
    %v3321 = vrcp.pop %v3290
    %v3322 = vrcp.pop %v3292
    %v3323 = vrcp.pop %v3294
    %v3324 = vrcp.pop %v3296
    %v3325 = vrcp.pop %v3298
    %v3326 = vrcp.pop %v3300
    %v3327 = vrcp.pop %v3302
    %v3328 = vrcp.pop %v3304
    %v3329 = vrcp.pop %v3306
    %v3330 = vrcp.pop %v3308
    %v3331 = vrcp.pop %v3310
    %v3332 = vrcp.pop %v3312
    %v3333 = vrcp.pop %v3314
    %v3334 = vrcp.pop %v3316
    %v3335 = vrcp.pop %v3318
    %v3336 = vrcp.pop %v3320
    %v3337 = vmul.f32 %v3258, %v3321
    %v3338 = vmul.f32 %v3260, %v3322
    %v3339 = vmul.f32 %v3262, %v3323
    %v3340 = vmul.f32 %v3264, %v3324
    %v3341 = vmul.f32 %v3266, %v3325
    %v3342 = vmul.f32 %v3268, %v3326
    %v3343 = vmul.f32 %v3270, %v3327
    %v3344 = vmul.f32 %v3272, %v3328
    %v3345 = vmul.f32 %v3274, %v3329
    %v3346 = vmul.f32 %v3276, %v3330
    %v3347 = vmul.f32 %v3278, %v3331
    %v3348 = vmul.f32 %v3280, %v3332
    %v3349 = vmul.f32 %v3282, %v3333
    %v3350 = vmul.f32 %v3284, %v3334
    %v3351 = vmul.f32 %v3286, %v3335
    %v3352 = vmul.f32 %v3288, %v3336
    %v3353 = vpack.c.bf16 %v3338, %v3337
    %v3354 = vpack.c.bf16 %v3340, %v3339
    %v3355 = vpack.c.bf16 %v3342, %v3341
    %v3356 = vpack.c.bf16 %v3344, %v3343
    %v3357 = vpack.c.bf16 %v3346, %v3345
    %v3358 = vpack.c.bf16 %v3348, %v3347
    %v3359 = vpack.c.bf16 %v3350, %v3349
    %v3360 = vpack.c.bf16 %v3352, %v3351
    %3361 = vmatprep.subr.bf16.mxu0 0
    %3362 = vmatpush1.bf16.xpose.msra.mxu0 %v3353
    %3363 = vmatprep.subr.bf16.mxu0 0
    %3364 = vmatpush1.bf16.xpose.msra.mxu0 %v3354
    %3365 = vmatprep.subr.bf16.mxu0 0
    %3366 = vmatpush1.bf16.xpose.msra.mxu0 %v3355
    %3367 = vmatprep.subr.bf16.mxu0 0
    %3368 = vmatpush1.bf16.xpose.msra.mxu0 %v3356
    %3369 = vmatprep.subr.bf16.mxu0 0
    %3370 = vmatpush1.bf16.xpose.msra.mxu0 %v3357
    %3371 = vmatprep.subr.bf16.mxu0 0
    %3372 = vmatpush1.bf16.xpose.msra.mxu0 %v3358
    %3373 = vmatprep.subr.bf16.mxu0 0
    %3374 = vmatpush1.bf16.xpose.msra.mxu0 %v3359
    %3375 = vmatprep.subr.bf16.mxu0 0
    %3376 = vmatpush1.bf16.xpose.msra.mxu0 %v3360
    %3377 = vmatprep.subr.bf16.mxu0 0
    %3378 = vmatpush1.bf16.xpose.msra.mxu0 0
    %3379 = vmatprep.subr.bf16.mxu0 0
    %3380 = vmatpush1.bf16.xpose.msra.mxu0 0
    %3381 = vmatprep.subr.bf16.mxu0 0
    %3382 = vmatpush1.bf16.xpose.msra.mxu0 0
    %3383 = vmatprep.subr.bf16.mxu0 0
    %3384 = vmatpush1.bf16.xpose.msra.mxu0 0
    %3385 = vmatprep.subr.bf16.mxu0 0
    %3386 = vmatpush1.bf16.xpose.msra.mxu0 0
    %3387 = vmatprep.subr.bf16.mxu0 0
    %3388 = vmatpush1.bf16.xpose.msra.mxu0 0
    %3389 = vmatprep.subr.bf16.mxu0 0
    %3390 = vmatpush1.bf16.xpose.msra.mxu0 0
    %3391 = vmatprep.subr.bf16.mxu0 0
    %3392 = vmatpush1.bf16.xpose.msra.mxu0 0
    %3393 = vmatprep.mubr.bf16.mxu0 0
    %3394 = vmatmul.mubr.bf16.gmra.mrb[0].mxu0 %v3017
    %v3395 = vpop.f32.mrb[0].mxu0
    %v3396 = vadd.f32 0.0, %v3395
    %v3397 = vpop.f32.mrb[0].mxu0
    %v3398 = vpop.f32.mrb[0].mxu0
    %v3399 = vpop.f32.mrb[0].mxu0
    %3400 = vdwg.mxu0
    %s3401 = scalar_lea.vmem [#allocation3], 40
    %3402 = vst [vmem:[%s3401] sm:$0xff] %v3396
    %s3403 = scalar_lea.vmem [#allocation2], 72
    %v3404 = vld [vmem:[%s3403] sm:$0xff]
    %v3405 = vld [vmem:[%s3403 + $0x8] sm:$0xf]
    %3406 = vxpose.xlu0.c.b16.start [1/8] %v3404, 128
    %3407 = vxpose.xlu0.c.b16.cont [2/8] 0, 128
    %3408 = vxpose.xlu0.c.b16.cont [3/8] 0, 128
    %3409 = vxpose.xlu0.c.b16.cont [4/8] 0, 128
    %3410 = vxpose.xlu0.c.b16.cont [5/8] 0, 128
    %3411 = vxpose.xlu0.c.b16.cont [6/8] 0, 128
    %3412 = vxpose.xlu0.c.b16.cont [7/8] 0, 128
    %3413 = vxpose.xlu0.c.b16.end [8/8] 0, 128
    %v3414 = vpop.trf.xlu0
    %v3415 = vpop.trf.xlu0
    %v3416 = vpop.trf.xlu0
    %v3417 = vpop.trf.xlu0
    %v3418 = vpop.trf.xlu0
    %v3419 = vpop.trf.xlu0
    %v3420 = vpop.trf.xlu0
    %v3421 = vpop.trf.xlu0
    %v3423 = vunpack.c.h.b16 %v3404
    %v3424 = vpack.c.b16 %v3423, %v3423
    %v3426 = vsel %vm1096, %v3414, 0
    %v3429 = vsel %vm1096, %v3415, 0
    %v3432 = vsel %vm1096, %v3416, 0
    %v3435 = vsel %vm1096, %v3417, 0
    %v3438 = vsel %vm1096, %v3418, 0
    %v3441 = vsel %vm1096, %v3419, 0
    %v3444 = vsel %vm1096, %v3420, 0
    %v3447 = vsel %vm1096, %v3421, 0
    %v3450 = vsel %vm1121, %v3424, 0
    %3452 = vmatprep.subr.bf16.mxu0 0
    %3453 = vmatpush1.bf16.msra.mxu0 %v3450
    %3454 = vmatprep.subr.bf16.mxu0 0
    %3455 = vmatpush1.bf16.msra.mxu0 0
    %3456 = vmatprep.subr.bf16.mxu0 0
    %3457 = vmatpush1.bf16.msra.mxu0 0
    %3458 = vmatprep.subr.bf16.mxu0 0
    %3459 = vmatpush1.bf16.msra.mxu0 0
    %3460 = vmatprep.subr.bf16.mxu0 0
    %3461 = vmatpush1.bf16.msra.mxu0 0
    %3462 = vmatprep.subr.bf16.mxu0 0
    %3463 = vmatpush1.bf16.msra.mxu0 0
    %3464 = vmatprep.subr.bf16.mxu0 0
    %3465 = vmatpush1.bf16.msra.mxu0 0
    %3466 = vmatprep.subr.bf16.mxu0 0
    %3467 = vmatpush1.bf16.msra.mxu0 0
    %3468 = vmatprep.subr.bf16.mxu0 0
    %3469 = vmatpush1.bf16.msra.mxu0 0
    %3470 = vmatprep.subr.bf16.mxu0 0
    %3471 = vmatpush1.bf16.msra.mxu0 0
    %3472 = vmatprep.subr.bf16.mxu0 0
    %3473 = vmatpush1.bf16.msra.mxu0 0
    %3474 = vmatprep.subr.bf16.mxu0 0
    %3475 = vmatpush1.bf16.msra.mxu0 0
    %3476 = vmatprep.subr.bf16.mxu0 0
    %3477 = vmatpush1.bf16.msra.mxu0 0
    %3478 = vmatprep.subr.bf16.mxu0 0
    %3479 = vmatpush1.bf16.msra.mxu0 0
    %3480 = vmatprep.subr.bf16.mxu0 0
    %3481 = vmatpush1.bf16.msra.mxu0 0
    %3482 = vmatprep.subr.bf16.mxu0 0
    %3483 = vmatpush1.bf16.msra.mxu0 0
    %3484 = vmatprep.mubr.bf16.mxu0 0
    %3485 = vmatmul.mubr.bf16.gmra.mrb[0].mxu0 %v3426
    %v3486 = vpop.f32.mrb[0].mxu0
    %v3487 = vadd.f32 0.0, %v3486
    %v3488 = vpop.f32.mrb[0].mxu0
    %v3489 = vpop.f32.mrb[0].mxu0
    %v3490 = vadd.f32 0.0, %v3489
    %v3491 = vpop.f32.mrb[0].mxu0
    %3492 = vmatprep.mubr.bf16.mxu0 0
    %3493 = vmatmul.mubr.bf16.gmra.mrb[0].mxu0 %v3429
    %v3494 = vpop.f32.mrb[0].mxu0
    %v3495 = vadd.f32 0.0, %v3494
    %v3496 = vpop.f32.mrb[0].mxu0
    %v3497 = vpop.f32.mrb[0].mxu0
    %v3498 = vadd.f32 0.0, %v3497
    %v3499 = vpop.f32.mrb[0].mxu0
    %3500 = vmatprep.mubr.bf16.mxu0 0
    %3501 = vmatmul.mubr.bf16.gmra.mrb[0].mxu0 %v3432
    %v3502 = vpop.f32.mrb[0].mxu0
    %v3503 = vadd.f32 0.0, %v3502
    %v3504 = vpop.f32.mrb[0].mxu0
    %v3505 = vpop.f32.mrb[0].mxu0
    %v3506 = vadd.f32 0.0, %v3505
    %v3507 = vpop.f32.mrb[0].mxu0
    %3508 = vmatprep.mubr.bf16.mxu0 0
    %3509 = vmatmul.mubr.bf16.gmra.mrb[0].mxu0 %v3435
    %v3510 = vpop.f32.mrb[0].mxu0
    %v3511 = vadd.f32 0.0, %v3510
    %v3512 = vpop.f32.mrb[0].mxu0
    %v3513 = vpop.f32.mrb[0].mxu0
    %v3514 = vadd.f32 0.0, %v3513
    %v3515 = vpop.f32.mrb[0].mxu0
    %3516 = vmatprep.mubr.bf16.mxu0 0
    %3517 = vmatmul.mubr.bf16.gmra.mrb[0].mxu0 %v3438
    %v3518 = vpop.f32.mrb[0].mxu0
    %v3519 = vadd.f32 0.0, %v3518
    %v3520 = vpop.f32.mrb[0].mxu0
    %v3521 = vpop.f32.mrb[0].mxu0
    %v3522 = vadd.f32 0.0, %v3521
    %v3523 = vpop.f32.mrb[0].mxu0
    %3524 = vmatprep.mubr.bf16.mxu0 0
    %3525 = vmatmul.mubr.bf16.gmra.mrb[0].mxu0 %v3441
    %v3526 = vpop.f32.mrb[0].mxu0
    %v3527 = vadd.f32 0.0, %v3526
    %v3528 = vpop.f32.mrb[0].mxu0
    %v3529 = vpop.f32.mrb[0].mxu0
    %v3530 = vadd.f32 0.0, %v3529
    %v3531 = vpop.f32.mrb[0].mxu0
    %3532 = vmatprep.mubr.bf16.mxu0 0
    %3533 = vmatmul.mubr.bf16.gmra.mrb[0].mxu0 %v3444
    %v3534 = vpop.f32.mrb[0].mxu0
    %v3535 = vadd.f32 0.0, %v3534
    %v3536 = vpop.f32.mrb[0].mxu0
    %v3537 = vpop.f32.mrb[0].mxu0
    %v3538 = vadd.f32 0.0, %v3537
    %v3539 = vpop.f32.mrb[0].mxu0
    %3540 = vmatprep.mubr.bf16.mxu0 0
    %3541 = vmatmul.mubr.bf16.gmra.mrb[0].mxu0 %v3447
    %v3542 = vpop.f32.mrb[0].mxu0
    %v3543 = vadd.f32 0.0, %v3542
    %v3544 = vpop.f32.mrb[0].mxu0
    %v3545 = vpop.f32.mrb[0].mxu0
    %v3546 = vadd.f32 0.0, %v3545
    %v3547 = vpop.f32.mrb[0].mxu0
    %3548 = vdwg.mxu0
    %v3549 = vmul.f32 %v3487, 0.17677669
    %v3550 = vmul.f32 %v3490, 0.17677669
    %v3551 = vmul.f32 %v3495, 0.17677669
    %v3552 = vmul.f32 %v3498, 0.17677669
    %v3553 = vmul.f32 %v3503, 0.17677669
    %v3554 = vmul.f32 %v3506, 0.17677669
    %v3555 = vmul.f32 %v3511, 0.17677669
    %v3556 = vmul.f32 %v3514, 0.17677669
    %v3557 = vmul.f32 %v3519, 0.17677669
    %v3558 = vmul.f32 %v3522, 0.17677669
    %v3559 = vmul.f32 %v3527, 0.17677669
    %v3560 = vmul.f32 %v3530, 0.17677669
    %v3561 = vmul.f32 %v3535, 0.17677669
    %v3562 = vmul.f32 %v3538, 0.17677669
    %v3563 = vmul.f32 %v3543, 0.17677669
    %v3564 = vmul.f32 %v3546, 0.17677669
    %v3565 = vld [vmem:[#allocation9] sm:$0xff]
    %v3566 = vld [vmem:[#allocation9 + $0x8] sm:$0xff]
    %v3567 = vld [vmem:[#allocation9 + $0x10] sm:$0xff]
    %v3568 = vld [vmem:[#allocation9 + $0x18] sm:$0xff]
    %v3569 = vld [vmem:[#allocation9 + $0x20] sm:$0xff]
    %v3570 = vld [vmem:[#allocation9 + $0x28] sm:$0xff]
    %v3571 = vld [vmem:[#allocation9 + $0x30] sm:$0xff]
    %v3572 = vld [vmem:[#allocation9 + $0x38] sm:$0xff]
    %v3573 = vld [vmem:[#allocation9 + $0x40] sm:$0xff]
    %v3574 = vld [vmem:[#allocation9 + $0x48] sm:$0xff]
    %v3575 = vld [vmem:[#allocation9 + $0x50] sm:$0xff]
    %v3576 = vld [vmem:[#allocation9 + $0x58] sm:$0xff]
    %v3577 = vld [vmem:[#allocation9 + $0x60] sm:$0xff]
    %v3578 = vld [vmem:[#allocation9 + $0x68] sm:$0xff]
    %v3579 = vld [vmem:[#allocation9 + $0x70] sm:$0xff]
    %v3580 = vld [vmem:[#allocation9 + $0x78] sm:$0xff]
    %v3581 = vadd.f32 %v3549, %v3565
    %v3582 = vadd.f32 %v3550, %v3566
    %v3583 = vadd.f32 %v3551, %v3567
    %v3584 = vadd.f32 %v3552, %v3568
    %v3585 = vadd.f32 %v3553, %v3569
    %v3586 = vadd.f32 %v3554, %v3570
    %v3587 = vadd.f32 %v3555, %v3571
    %v3588 = vadd.f32 %v3556, %v3572
    %v3589 = vadd.f32 %v3557, %v3573
    %v3590 = vadd.f32 %v3558, %v3574
    %v3591 = vadd.f32 %v3559, %v3575
    %v3592 = vadd.f32 %v3560, %v3576
    %v3593 = vadd.f32 %v3561, %v3577
    %v3594 = vadd.f32 %v3562, %v3578
    %v3595 = vadd.f32 %v3563, %v3579
    %v3596 = vadd.f32 %v3564, %v3580
    %3597 = vmax.xlane.f32.xlu0 %v3581
    %v3598 = vpop.xlane.xlu0 %3597
    %3599 = vmax.xlane.f32.xlu0 %v3582
    %v3600 = vpop.xlane.xlu0 %3599
    %3601 = vmax.xlane.f32.xlu0 %v3583
    %v3602 = vpop.xlane.xlu0 %3601
    %3603 = vmax.xlane.f32.xlu0 %v3584
    %v3604 = vpop.xlane.xlu0 %3603
    %3605 = vmax.xlane.f32.xlu0 %v3585
    %v3606 = vpop.xlane.xlu0 %3605
    %3607 = vmax.xlane.f32.xlu0 %v3586
    %v3608 = vpop.xlane.xlu0 %3607
    %3609 = vmax.xlane.f32.xlu0 %v3587
    %v3610 = vpop.xlane.xlu0 %3609
    %3611 = vmax.xlane.f32.xlu0 %v3588
    %v3612 = vpop.xlane.xlu0 %3611
    %3613 = vmax.xlane.f32.xlu0 %v3589
    %v3614 = vpop.xlane.xlu0 %3613
    %3615 = vmax.xlane.f32.xlu0 %v3590
    %v3616 = vpop.xlane.xlu0 %3615
    %3617 = vmax.xlane.f32.xlu0 %v3591
    %v3618 = vpop.xlane.xlu0 %3617
    %3619 = vmax.xlane.f32.xlu0 %v3592
    %v3620 = vpop.xlane.xlu0 %3619
    %3621 = vmax.xlane.f32.xlu0 %v3593
    %v3622 = vpop.xlane.xlu0 %3621
    %3623 = vmax.xlane.f32.xlu0 %v3594
    %v3624 = vpop.xlane.xlu0 %3623
    %3625 = vmax.xlane.f32.xlu0 %v3595
    %v3626 = vpop.xlane.xlu0 %3625
    %3627 = vmax.xlane.f32.xlu0 %v3596
    %v3628 = vpop.xlane.xlu0 %3627
    %v3629 = vsub.f32 %v3581, %v3598
    %v3630 = vsub.f32 %v3582, %v3600
    %v3631 = vsub.f32 %v3583, %v3602
    %v3632 = vsub.f32 %v3584, %v3604
    %v3633 = vsub.f32 %v3585, %v3606
    %v3634 = vsub.f32 %v3586, %v3608
    %v3635 = vsub.f32 %v3587, %v3610
    %v3636 = vsub.f32 %v3588, %v3612
    %v3637 = vsub.f32 %v3589, %v3614
    %v3638 = vsub.f32 %v3590, %v3616
    %v3639 = vsub.f32 %v3591, %v3618
    %v3640 = vsub.f32 %v3592, %v3620
    %v3641 = vsub.f32 %v3593, %v3622
    %v3642 = vsub.f32 %v3594, %v3624
    %v3643 = vsub.f32 %v3595, %v3626
    %v3644 = vsub.f32 %v3596, %v3628
    %v3645 = vmul.f32 %v3629, 1.442695
    %v3646 = vpow.pop %v3645
    %v3647 = vmul.f32 %v3630, 1.442695
    %v3648 = vpow.pop %v3647
    %v3649 = vmul.f32 %v3631, 1.442695
    %v3650 = vpow.pop %v3649
    %v3651 = vmul.f32 %v3632, 1.442695
    %v3652 = vpow.pop %v3651
    %v3653 = vmul.f32 %v3633, 1.442695
    %v3654 = vpow.pop %v3653
    %v3655 = vmul.f32 %v3634, 1.442695
    %v3656 = vpow.pop %v3655
    %v3657 = vmul.f32 %v3635, 1.442695
    %v3658 = vpow.pop %v3657
    %v3659 = vmul.f32 %v3636, 1.442695
    %v3660 = vpow.pop %v3659
    %v3661 = vmul.f32 %v3637, 1.442695
    %v3662 = vpow.pop %v3661
    %v3663 = vmul.f32 %v3638, 1.442695
    %v3664 = vpow.pop %v3663
    %v3665 = vmul.f32 %v3639, 1.442695
    %v3666 = vpow.pop %v3665
    %v3667 = vmul.f32 %v3640, 1.442695
    %v3668 = vpow.pop %v3667
    %v3669 = vmul.f32 %v3641, 1.442695
    %v3670 = vpow.pop %v3669
    %v3671 = vmul.f32 %v3642, 1.442695
    %v3672 = vpow.pop %v3671
    %v3673 = vmul.f32 %v3643, 1.442695
    %v3674 = vpow.pop %v3673
    %v3675 = vmul.f32 %v3644, 1.442695
    %v3676 = vpow.pop %v3675
    %3677 = vadd.xlane.f32.xlu0 %v3646
    %v3678 = vpop.xlane.xlu0 %3677
    %3679 = vadd.xlane.f32.xlu0 %v3648
    %v3680 = vpop.xlane.xlu0 %3679
    %3681 = vadd.xlane.f32.xlu0 %v3650
    %v3682 = vpop.xlane.xlu0 %3681
    %3683 = vadd.xlane.f32.xlu0 %v3652
    %v3684 = vpop.xlane.xlu0 %3683
    %3685 = vadd.xlane.f32.xlu0 %v3654
    %v3686 = vpop.xlane.xlu0 %3685
    %3687 = vadd.xlane.f32.xlu0 %v3656
    %v3688 = vpop.xlane.xlu0 %3687
    %3689 = vadd.xlane.f32.xlu0 %v3658
    %v3690 = vpop.xlane.xlu0 %3689
    %3691 = vadd.xlane.f32.xlu0 %v3660
    %v3692 = vpop.xlane.xlu0 %3691
    %3693 = vadd.xlane.f32.xlu0 %v3662
    %v3694 = vpop.xlane.xlu0 %3693
    %3695 = vadd.xlane.f32.xlu0 %v3664
    %v3696 = vpop.xlane.xlu0 %3695
    %3697 = vadd.xlane.f32.xlu0 %v3666
    %v3698 = vpop.xlane.xlu0 %3697
    %3699 = vadd.xlane.f32.xlu0 %v3668
    %v3700 = vpop.xlane.xlu0 %3699
    %3701 = vadd.xlane.f32.xlu0 %v3670
    %v3702 = vpop.xlane.xlu0 %3701
    %3703 = vadd.xlane.f32.xlu0 %v3672
    %v3704 = vpop.xlane.xlu0 %3703
    %3705 = vadd.xlane.f32.xlu0 %v3674
    %v3706 = vpop.xlane.xlu0 %3705
    %3707 = vadd.xlane.f32.xlu0 %v3676
    %v3708 = vpop.xlane.xlu0 %3707
    %v3709 = vrcp.pop %v3678
    %v3710 = vrcp.pop %v3680
    %v3711 = vrcp.pop %v3682
    %v3712 = vrcp.pop %v3684
    %v3713 = vrcp.pop %v3686
    %v3714 = vrcp.pop %v3688
    %v3715 = vrcp.pop %v3690
    %v3716 = vrcp.pop %v3692
    %v3717 = vrcp.pop %v3694
    %v3718 = vrcp.pop %v3696
    %v3719 = vrcp.pop %v3698
    %v3720 = vrcp.pop %v3700
    %v3721 = vrcp.pop %v3702
    %v3722 = vrcp.pop %v3704
    %v3723 = vrcp.pop %v3706
    %v3724 = vrcp.pop %v3708
    %v3725 = vmul.f32 %v3646, %v3709
    %v3726 = vmul.f32 %v3648, %v3710
    %v3727 = vmul.f32 %v3650, %v3711
    %v3728 = vmul.f32 %v3652, %v3712
    %v3729 = vmul.f32 %v3654, %v3713
    %v3730 = vmul.f32 %v3656, %v3714
    %v3731 = vmul.f32 %v3658, %v3715
    %v3732 = vmul.f32 %v3660, %v3716
    %v3733 = vmul.f32 %v3662, %v3717
    %v3734 = vmul.f32 %v3664, %v3718
    %v3735 = vmul.f32 %v3666, %v3719
    %v3736 = vmul.f32 %v3668, %v3720
    %v3737 = vmul.f32 %v3670, %v3721
    %v3738 = vmul.f32 %v3672, %v3722
    %v3739 = vmul.f32 %v3674, %v3723
    %v3740 = vmul.f32 %v3676, %v3724
    %v3741 = vpack.c.bf16 %v3726, %v3725
    %v3742 = vpack.c.bf16 %v3728, %v3727
    %v3743 = vpack.c.bf16 %v3730, %v3729
    %v3744 = vpack.c.bf16 %v3732, %v3731
    %v3745 = vpack.c.bf16 %v3734, %v3733
    %v3746 = vpack.c.bf16 %v3736, %v3735
    %v3747 = vpack.c.bf16 %v3738, %v3737
    %v3748 = vpack.c.bf16 %v3740, %v3739
    %3749 = vmatprep.subr.bf16.mxu0 0
    %3750 = vmatpush1.bf16.xpose.msra.mxu0 %v3741
    %3751 = vmatprep.subr.bf16.mxu0 0
    %3752 = vmatpush1.bf16.xpose.msra.mxu0 %v3742
    %3753 = vmatprep.subr.bf16.mxu0 0
    %3754 = vmatpush1.bf16.xpose.msra.mxu0 %v3743
    %3755 = vmatprep.subr.bf16.mxu0 0
    %3756 = vmatpush1.bf16.xpose.msra.mxu0 %v3744
    %3757 = vmatprep.subr.bf16.mxu0 0
    %3758 = vmatpush1.bf16.xpose.msra.mxu0 %v3745
    %3759 = vmatprep.subr.bf16.mxu0 0
    %3760 = vmatpush1.bf16.xpose.msra.mxu0 %v3746
    %3761 = vmatprep.subr.bf16.mxu0 0
    %3762 = vmatpush1.bf16.xpose.msra.mxu0 %v3747
    %3763 = vmatprep.subr.bf16.mxu0 0
    %3764 = vmatpush1.bf16.xpose.msra.mxu0 %v3748
    %3765 = vmatprep.subr.bf16.mxu0 0
    %3766 = vmatpush1.bf16.xpose.msra.mxu0 0
    %3767 = vmatprep.subr.bf16.mxu0 0
    %3768 = vmatpush1.bf16.xpose.msra.mxu0 0
    %3769 = vmatprep.subr.bf16.mxu0 0
    %3770 = vmatpush1.bf16.xpose.msra.mxu0 0
    %3771 = vmatprep.subr.bf16.mxu0 0
    %3772 = vmatpush1.bf16.xpose.msra.mxu0 0
    %3773 = vmatprep.subr.bf16.mxu0 0
    %3774 = vmatpush1.bf16.xpose.msra.mxu0 0
    %3775 = vmatprep.subr.bf16.mxu0 0
    %3776 = vmatpush1.bf16.xpose.msra.mxu0 0
    %3777 = vmatprep.subr.bf16.mxu0 0
    %3778 = vmatpush1.bf16.xpose.msra.mxu0 0
    %3779 = vmatprep.subr.bf16.mxu0 0
    %3780 = vmatpush1.bf16.xpose.msra.mxu0 0
    %3781 = vmatprep.mubr.bf16.mxu0 0
    %3782 = vmatmul.mubr.bf16.gmra.mrb[0].mxu0 %v3405
    %v3783 = vpop.f32.mrb[0].mxu0
    %v3784 = vadd.f32 0.0, %v3783
    %v3785 = vpop.f32.mrb[0].mxu0
    %v3786 = vpop.f32.mrb[0].mxu0
    %v3787 = vpop.f32.mrb[0].mxu0
    %3788 = vdwg.mxu0
    %s3789 = scalar_lea.vmem [#allocation3], 48
    %3790 = vst [vmem:[%s3789] sm:$0xff] %v3784
    %s3791 = scalar_lea.vmem [#allocation2], 84
    %v3792 = vld [vmem:[%s3791] sm:$0xff]
    %v3793 = vld [vmem:[%s3791 + $0x8] sm:$0xf]
    %3794 = vxpose.xlu0.c.b16.start [1/8] %v3792, 128
    %3795 = vxpose.xlu0.c.b16.cont [2/8] 0, 128
    %3796 = vxpose.xlu0.c.b16.cont [3/8] 0, 128
    %3797 = vxpose.xlu0.c.b16.cont [4/8] 0, 128
    %3798 = vxpose.xlu0.c.b16.cont [5/8] 0, 128
    %3799 = vxpose.xlu0.c.b16.cont [6/8] 0, 128
    %3800 = vxpose.xlu0.c.b16.cont [7/8] 0, 128
    %3801 = vxpose.xlu0.c.b16.end [8/8] 0, 128
    %v3802 = vpop.trf.xlu0
    %v3803 = vpop.trf.xlu0
    %v3804 = vpop.trf.xlu0
    %v3805 = vpop.trf.xlu0
    %v3806 = vpop.trf.xlu0
    %v3807 = vpop.trf.xlu0
    %v3808 = vpop.trf.xlu0
    %v3809 = vpop.trf.xlu0
    %v3811 = vunpack.c.h.b16 %v3792
    %v3812 = vpack.c.b16 %v3811, %v3811
    %v3814 = vsel %vm1096, %v3802, 0
    %v3817 = vsel %vm1096, %v3803, 0
    %v3820 = vsel %vm1096, %v3804, 0
    %v3823 = vsel %vm1096, %v3805, 0
    %v3826 = vsel %vm1096, %v3806, 0
    %v3829 = vsel %vm1096, %v3807, 0
    %v3832 = vsel %vm1096, %v3808, 0
    %v3835 = vsel %vm1096, %v3809, 0
    %v3838 = vsel %vm1121, %v3812, 0
    %3840 = vmatprep.subr.bf16.mxu0 0
    %3841 = vmatpush1.bf16.msra.mxu0 %v3838
    %3842 = vmatprep.subr.bf16.mxu0 0
    %3843 = vmatpush1.bf16.msra.mxu0 0
    %3844 = vmatprep.subr.bf16.mxu0 0
    %3845 = vmatpush1.bf16.msra.mxu0 0
    %3846 = vmatprep.subr.bf16.mxu0 0
    %3847 = vmatpush1.bf16.msra.mxu0 0
    %3848 = vmatprep.subr.bf16.mxu0 0
    %3849 = vmatpush1.bf16.msra.mxu0 0
    %3850 = vmatprep.subr.bf16.mxu0 0
    %3851 = vmatpush1.bf16.msra.mxu0 0
    %3852 = vmatprep.subr.bf16.mxu0 0
    %3853 = vmatpush1.bf16.msra.mxu0 0
    %3854 = vmatprep.subr.bf16.mxu0 0
    %3855 = vmatpush1.bf16.msra.mxu0 0
    %3856 = vmatprep.subr.bf16.mxu0 0
    %3857 = vmatpush1.bf16.msra.mxu0 0
    %3858 = vmatprep.subr.bf16.mxu0 0
    %3859 = vmatpush1.bf16.msra.mxu0 0
    %3860 = vmatprep.subr.bf16.mxu0 0
    %3861 = vmatpush1.bf16.msra.mxu0 0
    %3862 = vmatprep.subr.bf16.mxu0 0
    %3863 = vmatpush1.bf16.msra.mxu0 0
    %3864 = vmatprep.subr.bf16.mxu0 0
    %3865 = vmatpush1.bf16.msra.mxu0 0
    %3866 = vmatprep.subr.bf16.mxu0 0
    %3867 = vmatpush1.bf16.msra.mxu0 0
    %3868 = vmatprep.subr.bf16.mxu0 0
    %3869 = vmatpush1.bf16.msra.mxu0 0
    %3870 = vmatprep.subr.bf16.mxu0 0
    %3871 = vmatpush1.bf16.msra.mxu0 0
    %3872 = vmatprep.mubr.bf16.mxu0 0
    %3873 = vmatmul.mubr.bf16.gmra.mrb[0].mxu0 %v3814
    %v3874 = vpop.f32.mrb[0].mxu0
    %v3875 = vadd.f32 0.0, %v3874
    %v3876 = vpop.f32.mrb[0].mxu0
    %v3877 = vpop.f32.mrb[0].mxu0
    %v3878 = vadd.f32 0.0, %v3877
    %v3879 = vpop.f32.mrb[0].mxu0
    %3880 = vmatprep.mubr.bf16.mxu0 0
    %3881 = vmatmul.mubr.bf16.gmra.mrb[0].mxu0 %v3817
    %v3882 = vpop.f32.mrb[0].mxu0
    %v3883 = vadd.f32 0.0, %v3882
    %v3884 = vpop.f32.mrb[0].mxu0
    %v3885 = vpop.f32.mrb[0].mxu0
    %v3886 = vadd.f32 0.0, %v3885
    %v3887 = vpop.f32.mrb[0].mxu0
    %3888 = vmatprep.mubr.bf16.mxu0 0
    %3889 = vmatmul.mubr.bf16.gmra.mrb[0].mxu0 %v3820
    %v3890 = vpop.f32.mrb[0].mxu0
    %v3891 = vadd.f32 0.0, %v3890
    %v3892 = vpop.f32.mrb[0].mxu0
    %v3893 = vpop.f32.mrb[0].mxu0
    %v3894 = vadd.f32 0.0, %v3893
    %v3895 = vpop.f32.mrb[0].mxu0
    %3896 = vmatprep.mubr.bf16.mxu0 0
    %3897 = vmatmul.mubr.bf16.gmra.mrb[0].mxu0 %v3823
    %v3898 = vpop.f32.mrb[0].mxu0
    %v3899 = vadd.f32 0.0, %v3898
    %v3900 = vpop.f32.mrb[0].mxu0
    %v3901 = vpop.f32.mrb[0].mxu0
    %v3902 = vadd.f32 0.0, %v3901
    %v3903 = vpop.f32.mrb[0].mxu0
    %3904 = vmatprep.mubr.bf16.mxu0 0
    %3905 = vmatmul.mubr.bf16.gmra.mrb[0].mxu0 %v3826
    %v3906 = vpop.f32.mrb[0].mxu0
    %v3907 = vadd.f32 0.0, %v3906
    %v3908 = vpop.f32.mrb[0].mxu0
    %v3909 = vpop.f32.mrb[0].mxu0
    %v3910 = vadd.f32 0.0, %v3909
    %v3911 = vpop.f32.mrb[0].mxu0
    %3912 = vmatprep.mubr.bf16.mxu0 0
    %3913 = vmatmul.mubr.bf16.gmra.mrb[0].mxu0 %v3829
    %v3914 = vpop.f32.mrb[0].mxu0
    %v3915 = vadd.f32 0.0, %v3914
    %v3916 = vpop.f32.mrb[0].mxu0
    %v3917 = vpop.f32.mrb[0].mxu0
    %v3918 = vadd.f32 0.0, %v3917
    %v3919 = vpop.f32.mrb[0].mxu0
    %3920 = vmatprep.mubr.bf16.mxu0 0
    %3921 = vmatmul.mubr.bf16.gmra.mrb[0].mxu0 %v3832
    %v3922 = vpop.f32.mrb[0].mxu0
    %v3923 = vadd.f32 0.0, %v3922
    %v3924 = vpop.f32.mrb[0].mxu0
    %v3925 = vpop.f32.mrb[0].mxu0
    %v3926 = vadd.f32 0.0, %v3925
    %v3927 = vpop.f32.mrb[0].mxu0
    %3928 = vmatprep.mubr.bf16.mxu0 0
    %3929 = vmatmul.mubr.bf16.gmra.mrb[0].mxu0 %v3835
    %v3930 = vpop.f32.mrb[0].mxu0
    %v3931 = vadd.f32 0.0, %v3930
    %v3932 = vpop.f32.mrb[0].mxu0
    %v3933 = vpop.f32.mrb[0].mxu0
    %v3934 = vadd.f32 0.0, %v3933
    %v3935 = vpop.f32.mrb[0].mxu0
    %3936 = vdwg.mxu0
    %v3937 = vmul.f32 %v3875, 0.17677669
    %v3938 = vmul.f32 %v3878, 0.17677669
    %v3939 = vmul.f32 %v3883, 0.17677669
    %v3940 = vmul.f32 %v3886, 0.17677669
    %v3941 = vmul.f32 %v3891, 0.17677669
    %v3942 = vmul.f32 %v3894, 0.17677669
    %v3943 = vmul.f32 %v3899, 0.17677669
    %v3944 = vmul.f32 %v3902, 0.17677669
    %v3945 = vmul.f32 %v3907, 0.17677669
    %v3946 = vmul.f32 %v3910, 0.17677669
    %v3947 = vmul.f32 %v3915, 0.17677669
    %v3948 = vmul.f32 %v3918, 0.17677669
    %v3949 = vmul.f32 %v3923, 0.17677669
    %v3950 = vmul.f32 %v3926, 0.17677669
    %v3951 = vmul.f32 %v3931, 0.17677669
    %v3952 = vmul.f32 %v3934, 0.17677669
    %v3953 = vld [vmem:[#allocation9] sm:$0xff]
    %v3954 = vld [vmem:[#allocation9 + $0x8] sm:$0xff]
    %v3955 = vld [vmem:[#allocation9 + $0x10] sm:$0xff]
    %v3956 = vld [vmem:[#allocation9 + $0x18] sm:$0xff]
    %v3957 = vld [vmem:[#allocation9 + $0x20] sm:$0xff]
    %v3958 = vld [vmem:[#allocation9 + $0x28] sm:$0xff]
    %v3959 = vld [vmem:[#allocation9 + $0x30] sm:$0xff]
    %v3960 = vld [vmem:[#allocation9 + $0x38] sm:$0xff]
    %v3961 = vld [vmem:[#allocation9 + $0x40] sm:$0xff]
    %v3962 = vld [vmem:[#allocation9 + $0x48] sm:$0xff]
    %v3963 = vld [vmem:[#allocation9 + $0x50] sm:$0xff]
    %v3964 = vld [vmem:[#allocation9 + $0x58] sm:$0xff]
    %v3965 = vld [vmem:[#allocation9 + $0x60] sm:$0xff]
    %v3966 = vld [vmem:[#allocation9 + $0x68] sm:$0xff]
    %v3967 = vld [vmem:[#allocation9 + $0x70] sm:$0xff]
    %v3968 = vld [vmem:[#allocation9 + $0x78] sm:$0xff]
    %v3969 = vadd.f32 %v3937, %v3953
    %v3970 = vadd.f32 %v3938, %v3954
    %v3971 = vadd.f32 %v3939, %v3955
    %v3972 = vadd.f32 %v3940, %v3956
    %v3973 = vadd.f32 %v3941, %v3957
    %v3974 = vadd.f32 %v3942, %v3958
    %v3975 = vadd.f32 %v3943, %v3959
    %v3976 = vadd.f32 %v3944, %v3960
    %v3977 = vadd.f32 %v3945, %v3961
    %v3978 = vadd.f32 %v3946, %v3962
    %v3979 = vadd.f32 %v3947, %v3963
    %v3980 = vadd.f32 %v3948, %v3964
    %v3981 = vadd.f32 %v3949, %v3965
    %v3982 = vadd.f32 %v3950, %v3966
    %v3983 = vadd.f32 %v3951, %v3967
    %v3984 = vadd.f32 %v3952, %v3968
    %3985 = vmax.xlane.f32.xlu0 %v3969
    %v3986 = vpop.xlane.xlu0 %3985
    %3987 = vmax.xlane.f32.xlu0 %v3970
    %v3988 = vpop.xlane.xlu0 %3987
    %3989 = vmax.xlane.f32.xlu0 %v3971
    %v3990 = vpop.xlane.xlu0 %3989
    %3991 = vmax.xlane.f32.xlu0 %v3972
    %v3992 = vpop.xlane.xlu0 %3991
    %3993 = vmax.xlane.f32.xlu0 %v3973
    %v3994 = vpop.xlane.xlu0 %3993
    %3995 = vmax.xlane.f32.xlu0 %v3974
    %v3996 = vpop.xlane.xlu0 %3995
    %3997 = vmax.xlane.f32.xlu0 %v3975
    %v3998 = vpop.xlane.xlu0 %3997
    %3999 = vmax.xlane.f32.xlu0 %v3976
    %v4000 = vpop.xlane.xlu0 %3999
    %4001 = vmax.xlane.f32.xlu0 %v3977
    %v4002 = vpop.xlane.xlu0 %4001
    %4003 = vmax.xlane.f32.xlu0 %v3978
    %v4004 = vpop.xlane.xlu0 %4003
    %4005 = vmax.xlane.f32.xlu0 %v3979
    %v4006 = vpop.xlane.xlu0 %4005
    %4007 = vmax.xlane.f32.xlu0 %v3980
    %v4008 = vpop.xlane.xlu0 %4007
    %4009 = vmax.xlane.f32.xlu0 %v3981
    %v4010 = vpop.xlane.xlu0 %4009
    %4011 = vmax.xlane.f32.xlu0 %v3982
    %v4012 = vpop.xlane.xlu0 %4011
    %4013 = vmax.xlane.f32.xlu0 %v3983
    %v4014 = vpop.xlane.xlu0 %4013
    %4015 = vmax.xlane.f32.xlu0 %v3984
    %v4016 = vpop.xlane.xlu0 %4015
    %v4017 = vsub.f32 %v3969, %v3986
    %v4018 = vsub.f32 %v3970, %v3988
    %v4019 = vsub.f32 %v3971, %v3990
    %v4020 = vsub.f32 %v3972, %v3992
    %v4021 = vsub.f32 %v3973, %v3994
    %v4022 = vsub.f32 %v3974, %v3996
    %v4023 = vsub.f32 %v3975, %v3998
    %v4024 = vsub.f32 %v3976, %v4000
    %v4025 = vsub.f32 %v3977, %v4002
    %v4026 = vsub.f32 %v3978, %v4004
    %v4027 = vsub.f32 %v3979, %v4006
    %v4028 = vsub.f32 %v3980, %v4008
    %v4029 = vsub.f32 %v3981, %v4010
    %v4030 = vsub.f32 %v3982, %v4012
    %v4031 = vsub.f32 %v3983, %v4014
    %v4032 = vsub.f32 %v3984, %v4016
    %v4033 = vmul.f32 %v4017, 1.442695
    %v4034 = vpow.pop %v4033
    %v4035 = vmul.f32 %v4018, 1.442695
    %v4036 = vpow.pop %v4035
    %v4037 = vmul.f32 %v4019, 1.442695
    %v4038 = vpow.pop %v4037
    %v4039 = vmul.f32 %v4020, 1.442695
    %v4040 = vpow.pop %v4039
    %v4041 = vmul.f32 %v4021, 1.442695
    %v4042 = vpow.pop %v4041
    %v4043 = vmul.f32 %v4022, 1.442695
    %v4044 = vpow.pop %v4043
    %v4045 = vmul.f32 %v4023, 1.442695
    %v4046 = vpow.pop %v4045
    %v4047 = vmul.f32 %v4024, 1.442695
    %v4048 = vpow.pop %v4047
    %v4049 = vmul.f32 %v4025, 1.442695
    %v4050 = vpow.pop %v4049
    %v4051 = vmul.f32 %v4026, 1.442695
    %v4052 = vpow.pop %v4051
    %v4053 = vmul.f32 %v4027, 1.442695
    %v4054 = vpow.pop %v4053
    %v4055 = vmul.f32 %v4028, 1.442695
    %v4056 = vpow.pop %v4055
    %v4057 = vmul.f32 %v4029, 1.442695
    %v4058 = vpow.pop %v4057
    %v4059 = vmul.f32 %v4030, 1.442695
    %v4060 = vpow.pop %v4059
    %v4061 = vmul.f32 %v4031, 1.442695
    %v4062 = vpow.pop %v4061
    %v4063 = vmul.f32 %v4032, 1.442695
    %v4064 = vpow.pop %v4063
    %4065 = vadd.xlane.f32.xlu0 %v4034
    %v4066 = vpop.xlane.xlu0 %4065
    %4067 = vadd.xlane.f32.xlu0 %v4036
    %v4068 = vpop.xlane.xlu0 %4067
    %4069 = vadd.xlane.f32.xlu0 %v4038
    %v4070 = vpop.xlane.xlu0 %4069
    %4071 = vadd.xlane.f32.xlu0 %v4040
    %v4072 = vpop.xlane.xlu0 %4071
    %4073 = vadd.xlane.f32.xlu0 %v4042
    %v4074 = vpop.xlane.xlu0 %4073
    %4075 = vadd.xlane.f32.xlu0 %v4044
    %v4076 = vpop.xlane.xlu0 %4075
    %4077 = vadd.xlane.f32.xlu0 %v4046
    %v4078 = vpop.xlane.xlu0 %4077
    %4079 = vadd.xlane.f32.xlu0 %v4048
    %v4080 = vpop.xlane.xlu0 %4079
    %4081 = vadd.xlane.f32.xlu0 %v4050
    %v4082 = vpop.xlane.xlu0 %4081
    %4083 = vadd.xlane.f32.xlu0 %v4052
    %v4084 = vpop.xlane.xlu0 %4083
    %4085 = vadd.xlane.f32.xlu0 %v4054
    %v4086 = vpop.xlane.xlu0 %4085
    %4087 = vadd.xlane.f32.xlu0 %v4056
    %v4088 = vpop.xlane.xlu0 %4087
    %4089 = vadd.xlane.f32.xlu0 %v4058
    %v4090 = vpop.xlane.xlu0 %4089
    %4091 = vadd.xlane.f32.xlu0 %v4060
    %v4092 = vpop.xlane.xlu0 %4091
    %4093 = vadd.xlane.f32.xlu0 %v4062
    %v4094 = vpop.xlane.xlu0 %4093
    %4095 = vadd.xlane.f32.xlu0 %v4064
    %v4096 = vpop.xlane.xlu0 %4095
    %v4097 = vrcp.pop %v4066
    %v4098 = vrcp.pop %v4068
    %v4099 = vrcp.pop %v4070
    %v4100 = vrcp.pop %v4072
    %v4101 = vrcp.pop %v4074
    %v4102 = vrcp.pop %v4076
    %v4103 = vrcp.pop %v4078
    %v4104 = vrcp.pop %v4080
    %v4105 = vrcp.pop %v4082
    %v4106 = vrcp.pop %v4084
    %v4107 = vrcp.pop %v4086
    %v4108 = vrcp.pop %v4088
    %v4109 = vrcp.pop %v4090
    %v4110 = vrcp.pop %v4092
    %v4111 = vrcp.pop %v4094
    %v4112 = vrcp.pop %v4096
    %v4113 = vmul.f32 %v4034, %v4097
    %v4114 = vmul.f32 %v4036, %v4098
    %v4115 = vmul.f32 %v4038, %v4099
    %v4116 = vmul.f32 %v4040, %v4100
    %v4117 = vmul.f32 %v4042, %v4101
    %v4118 = vmul.f32 %v4044, %v4102
    %v4119 = vmul.f32 %v4046, %v4103
    %v4120 = vmul.f32 %v4048, %v4104
    %v4121 = vmul.f32 %v4050, %v4105
    %v4122 = vmul.f32 %v4052, %v4106
    %v4123 = vmul.f32 %v4054, %v4107
    %v4124 = vmul.f32 %v4056, %v4108
    %v4125 = vmul.f32 %v4058, %v4109
    %v4126 = vmul.f32 %v4060, %v4110
    %v4127 = vmul.f32 %v4062, %v4111
    %v4128 = vmul.f32 %v4064, %v4112
    %v4129 = vpack.c.bf16 %v4114, %v4113
    %v4130 = vpack.c.bf16 %v4116, %v4115
    %v4131 = vpack.c.bf16 %v4118, %v4117
    %v4132 = vpack.c.bf16 %v4120, %v4119
    %v4133 = vpack.c.bf16 %v4122, %v4121
    %v4134 = vpack.c.bf16 %v4124, %v4123
    %v4135 = vpack.c.bf16 %v4126, %v4125
    %v4136 = vpack.c.bf16 %v4128, %v4127
    %4137 = vmatprep.subr.bf16.mxu0 0
    %4138 = vmatpush1.bf16.xpose.msra.mxu0 %v4129
    %4139 = vmatprep.subr.bf16.mxu0 0
    %4140 = vmatpush1.bf16.xpose.msra.mxu0 %v4130
    %4141 = vmatprep.subr.bf16.mxu0 0
    %4142 = vmatpush1.bf16.xpose.msra.mxu0 %v4131
    %4143 = vmatprep.subr.bf16.mxu0 0
    %4144 = vmatpush1.bf16.xpose.msra.mxu0 %v4132
    %4145 = vmatprep.subr.bf16.mxu0 0
    %4146 = vmatpush1.bf16.xpose.msra.mxu0 %v4133
    %4147 = vmatprep.subr.bf16.mxu0 0
    %4148 = vmatpush1.bf16.xpose.msra.mxu0 %v4134
    %4149 = vmatprep.subr.bf16.mxu0 0
    %4150 = vmatpush1.bf16.xpose.msra.mxu0 %v4135
    %4151 = vmatprep.subr.bf16.mxu0 0
    %4152 = vmatpush1.bf16.xpose.msra.mxu0 %v4136
    %4153 = vmatprep.subr.bf16.mxu0 0
    %4154 = vmatpush1.bf16.xpose.msra.mxu0 0
    %4155 = vmatprep.subr.bf16.mxu0 0
    %4156 = vmatpush1.bf16.xpose.msra.mxu0 0
    %4157 = vmatprep.subr.bf16.mxu0 0
    %4158 = vmatpush1.bf16.xpose.msra.mxu0 0
    %4159 = vmatprep.subr.bf16.mxu0 0
    %4160 = vmatpush1.bf16.xpose.msra.mxu0 0
    %4161 = vmatprep.subr.bf16.mxu0 0
    %4162 = vmatpush1.bf16.xpose.msra.mxu0 0
    %4163 = vmatprep.subr.bf16.mxu0 0
    %4164 = vmatpush1.bf16.xpose.msra.mxu0 0
    %4165 = vmatprep.subr.bf16.mxu0 0
    %4166 = vmatpush1.bf16.xpose.msra.mxu0 0
    %4167 = vmatprep.subr.bf16.mxu0 0
    %4168 = vmatpush1.bf16.xpose.msra.mxu0 0
    %4169 = vmatprep.mubr.bf16.mxu0 0
    %4170 = vmatmul.mubr.bf16.gmra.mrb[0].mxu0 %v3793
    %v4171 = vpop.f32.mrb[0].mxu0
    %v4172 = vadd.f32 0.0, %v4171
    %v4173 = vpop.f32.mrb[0].mxu0
    %v4174 = vpop.f32.mrb[0].mxu0
    %v4175 = vpop.f32.mrb[0].mxu0
    %4176 = vdwg.mxu0
    %s4177 = scalar_lea.vmem [#allocation3], 56
    %4178 = vst [vmem:[%s4177] sm:$0xff] %v4172
    %v4179 = vld [vmem:[#allocation3] sm:$0xff]
    %v4180 = vld [vmem:[#allocation3 + $0x8] sm:$0xff]
    %v4181 = vld [vmem:[#allocation3 + $0x10] sm:$0xff]
    %v4182 = vld [vmem:[#allocation3 + $0x18] sm:$0xff]
    %v4183 = vld [vmem:[#allocation3 + $0x20] sm:$0xff]
    %v4184 = vld [vmem:[#allocation3 + $0x28] sm:$0xff]
    %v4185 = vld [vmem:[#allocation3 + $0x30] sm:$0xff]
    %v4186 = vld [vmem:[#allocation3 + $0x38] sm:$0xff]
    %v4187 = vpack.c.bf16 %v4180, %v4179
    %v4188 = vpack.c.bf16 %v4182, %v4181
    %v4189 = vpack.c.bf16 %v4184, %v4183
    %v4190 = vpack.c.bf16 %v4186, %v4185
    %v4191 = vld [vmem:[#allocation12] sm:$0xf]
    %v4192 = vld [vmem:[#allocation12 + $0x4] sm:$0xf]
    %v4193 = vld [vmem:[#allocation12 + $0x8] sm:$0xf]
    %v4194 = vld [vmem:[#allocation12 + $0xc] sm:$0xf]
    %v4195 = vld [vmem:[#allocation12 + $0x10] sm:$0xf]
    %v4196 = vld [vmem:[#allocation12 + $0x14] sm:$0xf]
    %v4197 = vld [vmem:[#allocation12 + $0x18] sm:$0xf]
    %v4198 = vld [vmem:[#allocation12 + $0x1c] sm:$0xf]
    %v4199 = vld [vmem:[#allocation12 + $0x20] sm:$0xf]
    %v4200 = vld [vmem:[#allocation12 + $0x24] sm:$0xf]
    %v4201 = vld [vmem:[#allocation12 + $0x28] sm:$0xf]
    %v4202 = vld [vmem:[#allocation12 + $0x2c] sm:$0xf]
    %v4203 = vld [vmem:[#allocation12 + $0x30] sm:$0xf]
    %v4204 = vld [vmem:[#allocation12 + $0x34] sm:$0xf]
    %v4205 = vld [vmem:[#allocation12 + $0x38] sm:$0xf]
    %v4206 = vld [vmem:[#allocation12 + $0x3c] sm:$0xf]
    %v4207 = vld [vmem:[%s8] sm:$0x1]
    %v4209 = vlaneseq
    %v4210 = vshrl.u32 %v4209, 7
    %v4211 = vsub.s32 0, %v4210
    %v4212 = vrot.slane %v4207, %v4211
    %v4230 = vunpack.c.l.b16 %v4191
    %v4231 = vunpack.c.l.b16 %v4192
    %v4232 = vunpack.c.l.b16 %v4193
    %v4233 = vunpack.c.l.b16 %v4194
    %v4234 = vunpack.c.l.b16 %v4195
    %v4235 = vunpack.c.l.b16 %v4196
    %v4236 = vunpack.c.l.b16 %v4197
    %v4237 = vunpack.c.l.b16 %v4198
    %v4238 = vunpack.c.l.b16 %v4199
    %v4239 = vunpack.c.l.b16 %v4200
    %v4240 = vunpack.c.l.b16 %v4201
    %v4241 = vunpack.c.l.b16 %v4202
    %v4242 = vunpack.c.l.b16 %v4203
    %v4243 = vunpack.c.l.b16 %v4204
    %v4244 = vunpack.c.l.b16 %v4205
    %v4245 = vunpack.c.l.b16 %v4206
    %v4246 = vpack.c.b16 %v4231, %v4230
    %v4247 = vpack.c.b16 %v4233, %v4232
    %v4248 = vpack.c.b16 %v4235, %v4234
    %v4249 = vpack.c.b16 %v4237, %v4236
    %v4250 = vpack.c.b16 %v4239, %v4238
    %v4251 = vpack.c.b16 %v4241, %v4240
    %v4252 = vpack.c.b16 %v4243, %v4242
    %v4253 = vpack.c.b16 %v4245, %v4244
    %4262 = vmatprep.subr.bf16.mxu0 0
    %4263 = vmatpush1.bf16.msra.mxu0 %v4246
    %4264 = vmatprep.subr.bf16.mxu0 0
    %4265 = vmatpush1.bf16.msra.mxu0 %v4247
    %4266 = vmatprep.subr.bf16.mxu0 0
    %4267 = vmatpush1.bf16.msra.mxu0 %v4248
    %4268 = vmatprep.subr.bf16.mxu0 0
    %4269 = vmatpush1.bf16.msra.mxu0 %v4249
    %4270 = vmatprep.subr.bf16.mxu0 0
    %4271 = vmatpush1.bf16.msra.mxu0 %v4250
    %4272 = vmatprep.subr.bf16.mxu0 0
    %4273 = vmatpush1.bf16.msra.mxu0 %v4251
    %4274 = vmatprep.subr.bf16.mxu0 0
    %4275 = vmatpush1.bf16.msra.mxu0 %v4252
    %4276 = vmatprep.subr.bf16.mxu0 0
    %4277 = vmatpush1.bf16.msra.mxu0 %v4253
    %4278 = vmatprep.subr.bf16.mxu0 0
    %4279 = vmatpush1.bf16.msra.mxu0 0
    %4280 = vmatprep.subr.bf16.mxu0 0
    %4281 = vmatpush1.bf16.msra.mxu0 0
    %4282 = vmatprep.subr.bf16.mxu0 0
    %4283 = vmatpush1.bf16.msra.mxu0 0
    %4284 = vmatprep.subr.bf16.mxu0 0
    %4285 = vmatpush1.bf16.msra.mxu0 0
    %4286 = vmatprep.subr.bf16.mxu0 0
    %4287 = vmatpush1.bf16.msra.mxu0 0
    %4288 = vmatprep.subr.bf16.mxu0 0
    %4289 = vmatpush1.bf16.msra.mxu0 0
    %4290 = vmatprep.subr.bf16.mxu0 0
    %4291 = vmatpush1.bf16.msra.mxu0 0
    %4292 = vmatprep.subr.bf16.mxu0 0
    %4293 = vmatpush1.bf16.msra.mxu0 0
    %4294 = vmatprep.mubr.bf16.mxu0 0
    %4295 = vmatmul.mubr.bf16.gmra.mrb[0].mxu0 %v4187
    %v4296 = vpop.f32.mrb[0].mxu0
    %v4297 = vadd.f32 %v4212, %v4296
    %v4298 = vpop.f32.mrb[0].mxu0
    %v4299 = vpop.f32.mrb[0].mxu0
    %v4300 = vadd.f32 %v4212, %v4299
    %v4301 = vpop.f32.mrb[0].mxu0
    %4302 = vmatprep.mubr.bf16.mxu0 0
    %4303 = vmatmul.mubr.bf16.gmra.mrb[0].mxu0 %v4188
    %v4304 = vpop.f32.mrb[0].mxu0
    %v4305 = vadd.f32 %v4212, %v4304
    %v4306 = vpop.f32.mrb[0].mxu0
    %v4307 = vpop.f32.mrb[0].mxu0
    %v4308 = vadd.f32 %v4212, %v4307
    %v4309 = vpop.f32.mrb[0].mxu0
    %4310 = vmatprep.mubr.bf16.mxu0 0
    %4311 = vmatmul.mubr.bf16.gmra.mrb[0].mxu0 %v4189
    %v4312 = vpop.f32.mrb[0].mxu0
    %v4313 = vadd.f32 %v4212, %v4312
    %v4314 = vpop.f32.mrb[0].mxu0
    %v4315 = vpop.f32.mrb[0].mxu0
    %v4316 = vadd.f32 %v4212, %v4315
    %v4317 = vpop.f32.mrb[0].mxu0
    %4318 = vmatprep.mubr.bf16.mxu0 0
    %4319 = vmatmul.mubr.bf16.gmra.mrb[0].mxu0 %v4190
    %v4320 = vpop.f32.mrb[0].mxu0
    %v4321 = vadd.f32 %v4212, %v4320
    %v4322 = vpop.f32.mrb[0].mxu0
    %v4323 = vpop.f32.mrb[0].mxu0
    %v4324 = vadd.f32 %v4212, %v4323
    %v4325 = vpop.f32.mrb[0].mxu0
    %4326 = vdwg.mxu0
    %v4327 = vld [vmem:[#allocation4] sm:$0xff]
    %v4328 = vld [vmem:[#allocation4 + $0x8] sm:$0xff]
    %v4329 = vld [vmem:[#allocation4 + $0x10] sm:$0xff]
    %v4330 = vld [vmem:[#allocation4 + $0x18] sm:$0xff]
    %v4331 = vld [vmem:[#allocation4 + $0x20] sm:$0xff]
    %v4332 = vld [vmem:[#allocation4 + $0x28] sm:$0xff]
    %v4333 = vld [vmem:[#allocation4 + $0x30] sm:$0xff]
    %v4334 = vld [vmem:[#allocation4 + $0x38] sm:$0xff]
    %v4335 = vadd.f32 %v4297, %v4327
    %v4336 = vadd.f32 %v4300, %v4328
    %v4337 = vadd.f32 %v4305, %v4329
    %v4338 = vadd.f32 %v4308, %v4330
    %v4339 = vadd.f32 %v4313, %v4331
    %v4340 = vadd.f32 %v4316, %v4332
    %v4341 = vadd.f32 %v4321, %v4333
    %v4342 = vadd.f32 %v4324, %v4334
    %4343 = vst [vmem:[#allocation13] sm:$0xff] %v4335
    %4344 = vst [vmem:[#allocation13 + $0x8] sm:$0xff] %v4336
    %4345 = vst [vmem:[#allocation13 + $0x10] sm:$0xff] %v4337
    %4346 = vst [vmem:[#allocation13 + $0x18] sm:$0xff] %v4338
    %4347 = vst [vmem:[#allocation13 + $0x20] sm:$0xff] %v4339
    %4348 = vst [vmem:[#allocation13 + $0x28] sm:$0xff] %v4340
    %4349 = vst [vmem:[#allocation13 + $0x30] sm:$0xff] %v4341
    %4350 = vst [vmem:[#allocation13 + $0x38] sm:$0xff] %v4342
    // Predicated region
    $region58: #{tpu_custom_call.1} parent=1 // pred_check
      _
    $region59: #{tpu_custom_call.1} parent=1 // pred_check_branch
      %4352 = sbr.rel (0) target = $region61
    $region60: #{tpu_custom_call.1} parent=1 // pred_region
      %s4354 = ssub.s32 1024, 1024
      %4355 = vsyncadd [#allocation6], %s4354
      %s4356 = sshll.u32 [#allocation13], 4
      %s4357 = int_to_ptr.vmem [resolvable:$true] %s4356
      %4362 = dma.vmem_to_hbm [thread:$0]  %s4357, 1024, %s9, [#allocation6], 128, 128, 8
    $region61: #{tpu_custom_call.1} parent=1 // pred_fallthru
      _
    // Predicated region
    $region62: #{tpu_custom_call.1} parent=1 // pred_check
      _
    $region63: #{tpu_custom_call.1} parent=1 // pred_check_branch
      %4364 = sbr.rel (0) target = $region65
    $region64: #{tpu_custom_call.1} parent=1 // pred_region
      %4365 = dma.done [#allocation6], 1024
    $region65: #{tpu_custom_call.1} parent=1 // pred_fallthru
      _
    %4366 = vsyncpa [#allocation5], 1
    %4367 = vsyncpa [#allocation8], 1
    %4368 = vsyncpa [#allocation11], 1
    %4369 = vsyncpa [#allocation6], 1

</llo_original>
